<compile_context>
chip_gen: v5e
topology: v5e:2x2
jax: 0.10.0
libtpu: 0.0.40
codegen_flags: <defaults>
</compile_context>

<pallas_src>
import functools
import numpy as np
import jax
import jax.numpy as jnp
from jax.experimental import pallas as pl
from jax.experimental.pallas import tpu as pltpu

H_PAD = 128  # padded hidden / gate-block width (lane-dense)


def _round_up(x, m):
    return ((x + m - 1) // m) * m


# ----------------------------- fused Pallas kernel -----------------------------

def _grunet_kernel(seq_ref, wih1_ref, bih1_ref, whh1_ref, bhh1_ref,
                   wih2_ref, bih2_ref, whh2_ref, bhh2_ref,
                   wfc_ref, bfc_ref, o_ref, xg1_ref, *, T, TN):
    """One grid step == one independent block of TN sequence rows (all T timesteps)."""
    Hp = whh1_ref.shape[0]

    # Layer-1 input projection for ALL timesteps in one tall matmul (T*TN rows),
    # stored in VMEM scratch; cast to bf16 happens inside the kernel.
    seq2d = seq_ref[0].astype(jnp.bfloat16)                         # (T*TN, F)
    xg1_ref[...] = (jnp.dot(seq2d, wih1_ref[...],
                            preferred_element_type=jnp.float32) + bih1_ref[...])

    def gru_cell(xg, h, whh_ref, bhh_ref):
        # fused (Hp, 3Hp) recurrent matmul; f32 gates + epilogue (PyTorch GRU math, r|z|n)
        hg = jnp.dot(h.astype(jnp.bfloat16), whh_ref[...],
                     preferred_element_type=jnp.float32) + bhh_ref[...]
        r = jax.nn.sigmoid(xg[:, :Hp] + hg[:, :Hp])
        z = jax.nn.sigmoid(xg[:, Hp:2 * Hp] + hg[:, Hp:2 * Hp])
        n = jnp.tanh(xg[:, 2 * Hp:] + r * hg[:, 2 * Hp:])
        return (1.0 - z) * n + z * h

    h1 = jnp.zeros((TN, Hp), jnp.float32)
    h2 = jnp.zeros((TN, Hp), jnp.float32)
    for t in range(T):  # statically unrolled: scheduler sees across-timestep ILP
        xg1_t = xg1_ref[t * TN:(t + 1) * TN, :]                     # static, 8-aligned slice
        h1 = gru_cell(xg1_t, h1, whh1_ref, bhh1_ref)
        # nn.GRU inter-layer dropout (p=0.2) is identity in eval mode
        xg2_t = jnp.dot(h1.astype(jnp.bfloat16), wih2_ref[...],
                        preferred_element_type=jnp.float32) + bih2_ref[...]
        h2 = gru_cell(xg2_t, h2, whh2_ref, bhh2_ref)

    # fc(relu(out))[:, -1]  ==  fc(relu(h2 at last step))
    last = jnp.maximum(h2, 0.0)
    o_ref[...] = (jnp.dot(last.astype(jnp.bfloat16), wfc_ref[...],
                          preferred_element_type=jnp.float32) + bfc_ref[...])


def fused_grunet_pallas(seq_blk, p, *, T, TN, F):
    """seq_blk: (nblk, T*TN, F) f32, time-major rows within each row block."""
    nblk = seq_blk.shape[0]
    Hp = H_PAD
    Op = p["W_fc"].shape[1]

    def const_spec(arr):
        # constant index_map -> block never changes -> fetched once, VMEM-resident
        return pl.BlockSpec(arr.shape, lambda r: (0,) * arr.ndim)

    kernel = functools.partial(_grunet_kernel, T=T, TN=TN)

    return pl.pallas_call(
        kernel,
        out_shape=jax.ShapeDtypeStruct((nblk * TN, Op), jnp.float32),
        grid=(nblk,),
        in_specs=[
            pl.BlockSpec((1, T * TN, F), lambda r: (r, 0, 0)),      # per-block sequence rows
            const_spec(p["W_ih1"]), const_spec(p["b_ih1"]),
            const_spec(p["W_hh1"]), const_spec(p["b_hh1"]),
            const_spec(p["W_ih2"]), const_spec(p["b_ih2"]),
            const_spec(p["W_hh2"]), const_spec(p["b_hh2"]),
            const_spec(p["W_fc"]), const_spec(p["b_fc"]),
        ],
        out_specs=pl.BlockSpec((TN, Op), lambda r: (r, 0)),
        scratch_shapes=[pltpu.VMEM((T * TN, 3 * Hp), jnp.float32)],  # xg1 for all T
        compiler_params=pltpu.CompilerParams(
            dimension_semantics=("parallel",)),                     # rows independent -> both TCs on v7x
    )(seq_blk,
      p["W_ih1"], p["b_ih1"], p["W_hh1"], p["b_hh1"],
      p["W_ih2"], p["b_ih2"], p["W_hh2"], p["b_hh2"],
      p["W_fc"], p["b_fc"])


# ----------------------------- parameters -----------------------------

def init_grunet_params(key, input_dim, hidden_dim, output_dim, n_layers=2):
    # matches torch nn.GRU / nn.Linear default init: U(-1/sqrt(H), 1/sqrt(H))
    H = hidden_dim
    bound = 1.0 / np.sqrt(H)
    keys = jax.random.split(key, 4 * n_layers + 2)

    def u(k, shape):
        return jax.random.uniform(k, shape, jnp.float32, -bound, bound)

    layers, d = [], input_dim
    for i in range(n_layers):
        layers.append({
            "W_ih": u(keys[4 * i + 0], (d, 3 * H)),   # gates ordered r | z | n
            "W_hh": u(keys[4 * i + 1], (H, 3 * H)),
            "b_ih": u(keys[4 * i + 2], (3 * H,)),
            "b_hh": u(keys[4 * i + 3], (3 * H,)),
        })
        d = H
    fc = {"W": u(keys[-2], (H, output_dim)), "b": u(keys[-1], (output_dim,))}
    return {"layers": layers, "fc": fc, "hidden_dim": H, "output_dim": output_dim}


def pack_grunet_params(params):
    """Zero-pad to lane-dense (128-wide) layout and cast MXU inputs to bf16.

    Padding invariant (keep if modifying): padded weight/bias columns and padded
    weight rows are exactly zero, so padded hidden lanes stay exactly 0 forever.
    """
    H = params["hidden_dim"]
    Hp = H_PAD
    assert H <= Hp
    out_dim = params["output_dim"]
    Op = _round_up(out_dim, 128)
    l1, l2 = params["layers"]

    def pad_gate_cols(W):           # (rows, 3H) -> (rows, 3Hp); r|z|n blocks at Hp offsets
        out = jnp.zeros((W.shape[0], 3 * Hp), jnp.float32)
        for g in range(3):
            out = out.at[:, g * Hp:g * Hp + H].set(W[:, g * H:(g + 1) * H])
        return out

    def pad_rows(W):                # (H, c) -> (Hp, c)
        return jnp.zeros((Hp, W.shape[1]), W.dtype).at[:W.shape[0]].set(W)

    def pad_gate_bias(b):           # (3H,) -> (1, 3Hp)
        out = jnp.zeros((3 * Hp,), jnp.float32)
        for g in range(3):
            out = out.at[g * Hp:g * Hp + H].set(b[g * H:(g + 1) * H])
        return out[None, :]

    W_fc = jnp.zeros((H, Op), jnp.float32).at[:, :out_dim].set(params["fc"]["W"])
    b_fc = jnp.zeros((1, Op), jnp.float32).at[0, :out_dim].set(params["fc"]["b"])

    return {
        "W_ih1": pad_gate_cols(l1["W_ih"]).astype(jnp.bfloat16),
        "b_ih1": pad_gate_bias(l1["b_ih"]),
        "W_hh1": pad_rows(pad_gate_cols(l1["W_hh"])).astype(jnp.bfloat16),
        "b_hh1": pad_gate_bias(l1["b_hh"]),
        "W_ih2": pad_rows(pad_gate_cols(l2["W_ih"])).astype(jnp.bfloat16),
        "b_ih2": pad_gate_bias(l2["b_ih"]),
        "W_hh2": pad_rows(pad_gate_cols(l2["W_hh"])).astype(jnp.bfloat16),
        "b_hh2": pad_gate_bias(l2["b_hh"]),
        "W_fc": pad_rows(W_fc).astype(jnp.bfloat16),
        "b_fc": b_fc,
    }


# ----------------------------- forward -----------------------------

def grunet_forward(packed, x, output_dim):
    # x: (B, T, K, F) -> transpose(1,2).reshape(B*K, T, F), 2-layer GRU, fc(relu(out))[:, -1]
    B, T, K, F = x.shape
    N = B * K
    TN = min(_round_up(N, 8), 256)          # row tile: raise MXU row occupancy up to 256 rows
    nblk = (N + TN - 1) // TN
    Nr = nblk * TN

    seq = jnp.transpose(x, (0, 2, 1, 3)).reshape(N, T, F)           # batch_first rows (as in torch)
    if Nr != N:
        seq = jnp.concatenate([seq, jnp.zeros((Nr - N, T, F), seq.dtype)], axis=0)
    # per row-block time-major layout: (nblk, T*TN, F); row t*TN+i is (row i, time t)
    seq_blk = jnp.transpose(seq.reshape(nblk, TN, T, F), (0, 2, 1, 3)).reshape(nblk, T * TN, F)

    out = fused_grunet_pallas(seq_blk, packed, T=T, TN=TN, F=F)     # (Nr, Op)
    return out[:N, :output_dim]


# ----------------------------- pure-JAX reference -----------------------------

def grunet_reference(params, x):
    B, T, K, F = x.shape
    N = B * K
    H = params["hidden_dim"]
    inp = jnp.transpose(x, (0, 2, 1, 3)).reshape(N, T, F)
    for layer in params["layers"]:
        h = jnp.zeros((N, H), jnp.float32)
        outs = []
        for t in range(T):
            xg = inp[:, t] @ layer["W_ih"] + layer["b_ih"]
            hg = h @ layer["W_hh"] + layer["b_hh"]
            r = jax.nn.sigmoid(xg[:, :H] + hg[:, :H])
            z = jax.nn.sigmoid(xg[:, H:2 * H] + hg[:, H:2 * H])
            n = jnp.tanh(xg[:, 2 * H:] + r * hg[:, 2 * H:])
            h = (1.0 - z) * n + z * h
            outs.append(h)
        inp = jnp.stack(outs, axis=1)
    last = jnp.maximum(inp[:, -1], 0.0)
    return last @ params["fc"]["W"] + params["fc"]["b"][None, :]


# ----------------------------- main -----------------------------

if __name__ == "__main__":
    B, T, K, F = 2, 8, 4, 16          # x: (B, T, K, nf)
    hidden_dim, output_dim = 32, 16

    key = jax.random.PRNGKey(0)
    kx, kp = jax.random.split(key)
    x = jax.random.normal(kx, (B, T, K, F), jnp.float32)

    params = init_grunet_params(kp, F, hidden_dim, output_dim, n_layers=2)
    packed = pack_grunet_params(params)

    out = grunet_forward(packed, x, output_dim)
    out = jax.block_until_ready(out)
    assert out.shape == (B * K, output_dim)

    # correctness check vs pure-JAX f32 reference (tolerance covers bf16 MXU inputs)
    ref = grunet_reference(params, x)
    np.testing.assert_allclose(np.asarray(out), np.asarray(ref), rtol=1e-1, atol=5e-2)

    print("KERNEL_OK")
</pallas_src>

<mosaic_0001>
module attributes {stable_mosaic.version = 11 : i64} {
  func.func @_grunet_kernel(%arg0: i32, %arg1: memref<1x64x16xf32, #tpu.memory_space<vmem>>, %arg2: memref<16x384xbf16, #tpu.memory_space<vmem>>, %arg3: memref<1x384xf32, #tpu.memory_space<vmem>>, %arg4: memref<128x384xbf16, #tpu.memory_space<vmem>>, %arg5: memref<1x384xf32, #tpu.memory_space<vmem>>, %arg6: memref<128x384xbf16, #tpu.memory_space<vmem>>, %arg7: memref<1x384xf32, #tpu.memory_space<vmem>>, %arg8: memref<128x384xbf16, #tpu.memory_space<vmem>>, %arg9: memref<1x384xf32, #tpu.memory_space<vmem>>, %arg10: memref<128x128xbf16, #tpu.memory_space<vmem>>, %arg11: memref<1x128xf32, #tpu.memory_space<vmem>>, %arg12: memref<8x128xf32, #tpu.memory_space<vmem>>, %arg13: memref<64x384xf32, #tpu.memory_space<vmem>>) attributes {dimension_semantics = [#tpu.dimension_semantics<parallel>], iteration_bounds = array<i64: 1>, scalar_prefetch = 0 : i64, scratch_operands = 1 : i64, tpu.core_type = #tpu.core_type<tc>, window_params = [{transform_indices = @transform_0, window_bounds = array<i64: 1, 64, 16>}, {pipeline_mode = #tpu.pipeline_mode<synchronous>, transform_indices = @transform_1, window_bounds = array<i64: 16, 384>}, {pipeline_mode = #tpu.pipeline_mode<synchronous>, transform_indices = @transform_2, window_bounds = array<i64: 1, 384>}, {pipeline_mode = #tpu.pipeline_mode<synchronous>, transform_indices = @transform_3, window_bounds = array<i64: 128, 384>}, {pipeline_mode = #tpu.pipeline_mode<synchronous>, transform_indices = @transform_4, window_bounds = array<i64: 1, 384>}, {pipeline_mode = #tpu.pipeline_mode<synchronous>, transform_indices = @transform_5, window_bounds = array<i64: 128, 384>}, {pipeline_mode = #tpu.pipeline_mode<synchronous>, transform_indices = @transform_6, window_bounds = array<i64: 1, 384>}, {pipeline_mode = #tpu.pipeline_mode<synchronous>, transform_indices = @transform_7, window_bounds = array<i64: 128, 384>}, {pipeline_mode = #tpu.pipeline_mode<synchronous>, transform_indices = @transform_8, window_bounds = array<i64: 1, 384>}, {pipeline_mode = #tpu.pipeline_mode<synchronous>, transform_indices = @transform_9, window_bounds = array<i64: 128, 128>}, {pipeline_mode = #tpu.pipeline_mode<synchronous>, transform_indices = @transform_10, window_bounds = array<i64: 1, 128>}, {transform_indices = @transform_11, window_bounds = array<i64: 8, 128>}]} {
    %c0 = arith.constant 0 : index
    %c0_0 = arith.constant 0 : index
    %c0_1 = arith.constant 0 : index
    %0 = vector.load %arg1[%c0, %c0_0, %c0_1] : memref<1x64x16xf32, #tpu.memory_space<vmem>>, vector<1x64x16xf32>
    %1 = vector.shape_cast %0 : vector<1x64x16xf32> to vector<64x16xf32>
    %2 = arith.truncf %1 : vector<64x16xf32> to vector<64x16xbf16>
    %c0_2 = arith.constant 0 : index
    %c0_3 = arith.constant 0 : index
    %3 = vector.load %arg2[%c0_2, %c0_3] : memref<16x384xbf16, #tpu.memory_space<vmem>>, vector<16x384xbf16>
    %cst = arith.constant dense<0.000000e+00> : vector<64x384xf32>
    %4 = tpu.matmul %2, %3, %cst {dimension_numbers = #tpu.dot_dimension_numbers<[1], [0], [0], [1], [0, 0, 1, 1], [], []>} : vector<64x16xbf16>, vector<16x384xbf16>, vector<64x384xf32> -> vector<64x384xf32>
    %c0_4 = arith.constant 0 : index
    %c0_5 = arith.constant 0 : index
    %5 = vector.load %arg3[%c0_4, %c0_5] : memref<1x384xf32, #tpu.memory_space<vmem>>, vector<1x384xf32>
    %6 = vector.broadcast %5 : vector<1x384xf32> to vector<64x384xf32>
    %7 = arith.addf %4, %6 : vector<64x384xf32>
    %c0_6 = arith.constant 0 : index
    %c0_7 = arith.constant 0 : index
    %8 = vector.load %arg13[%c0_6, %c0_7] : memref<64x384xf32, #tpu.memory_space<vmem>>, vector<64x384xf32>
    tpu.vector_store %arg13[%c0_6, %c0_7], %7 {strides = array<i32>} : memref<64x384xf32, #tpu.memory_space<vmem>>, vector<64x384xf32>,
    %cst_8 = arith.constant 0.000000e+00 : f32
    %9 = vector.broadcast %cst_8 : f32 to vector<8x128xf32>
    %cst_9 = arith.constant 0.000000e+00 : f32
    %10 = vector.broadcast %cst_9 : f32 to vector<8x128xf32>
    %c0_10 = arith.constant 0 : index
    %c0_11 = arith.constant 0 : index
    %11 = vector.load %arg13[%c0_10, %c0_11] : memref<64x384xf32, #tpu.memory_space<vmem>>, vector<8x384xf32>
    %12 = arith.truncf %9 : vector<8x128xf32> to vector<8x128xbf16>
    %c0_12 = arith.constant 0 : index
    %c0_13 = arith.constant 0 : index
    %13 = vector.load %arg4[%c0_12, %c0_13] : memref<128x384xbf16, #tpu.memory_space<vmem>>, vector<128x384xbf16>
    %cst_14 = arith.constant dense<0.000000e+00> : vector<8x384xf32>
    %14 = tpu.matmul %12, %13, %cst_14 {dimension_numbers = #tpu.dot_dimension_numbers<[1], [0], [0], [1], [0, 0, 1, 1], [], []>} : vector<8x128xbf16>, vector<128x384xbf16>, vector<8x384xf32> -> vector<8x384xf32>
    %c0_15 = arith.constant 0 : index
    %c0_16 = arith.constant 0 : index
    %15 = vector.load %arg5[%c0_15, %c0_16] : memref<1x384xf32, #tpu.memory_space<vmem>>, vector<1x384xf32>
    %16 = vector.broadcast %15 : vector<1x384xf32> to vector<8x384xf32>
    %17 = arith.addf %14, %16 : vector<8x384xf32>
    %18 = vector.extract_strided_slice %11 {offsets = [0, 0], sizes = [8, 128], strides = [1, 1]} : vector<8x384xf32> to vector<8x128xf32>
    %19 = vector.extract_strided_slice %17 {offsets = [0, 0], sizes = [8, 128], strides = [1, 1]} : vector<8x384xf32> to vector<8x128xf32>
    %20 = arith.addf %18, %19 : vector<8x128xf32>
    %21 = arith.negf %20 : vector<8x128xf32>
    %22 = math.exp %21 : vector<8x128xf32>
    %cst_17 = arith.constant 1.000000e+00 : f32
    %23 = vector.broadcast %cst_17 : f32 to vector<8x128xf32>
    %24 = arith.addf %23, %22 : vector<8x128xf32>
    %25 = arith.divf %23, %24 : vector<8x128xf32>
    %26 = vector.extract_strided_slice %11 {offsets = [0, 128], sizes = [8, 128], strides = [1, 1]} : vector<8x384xf32> to vector<8x128xf32>
    %27 = vector.extract_strided_slice %17 {offsets = [0, 128], sizes = [8, 128], strides = [1, 1]} : vector<8x384xf32> to vector<8x128xf32>
    %28 = arith.addf %26, %27 : vector<8x128xf32>
    %29 = arith.negf %28 : vector<8x128xf32>
    %30 = math.exp %29 : vector<8x128xf32>
    %cst_18 = arith.constant 1.000000e+00 : f32
    %31 = vector.broadcast %cst_18 : f32 to vector<8x128xf32>
    %32 = arith.addf %31, %30 : vector<8x128xf32>
    %33 = arith.divf %31, %32 : vector<8x128xf32>
    %34 = vector.extract_strided_slice %11 {offsets = [0, 256], sizes = [8, 128], strides = [1, 1]} : vector<8x384xf32> to vector<8x128xf32>
    %35 = vector.extract_strided_slice %17 {offsets = [0, 256], sizes = [8, 128], strides = [1, 1]} : vector<8x384xf32> to vector<8x128xf32>
    %36 = arith.mulf %25, %35 : vector<8x128xf32>
    %37 = arith.addf %34, %36 : vector<8x128xf32>
    %38 = math.tanh %37 : vector<8x128xf32>
    %cst_19 = arith.constant 1.000000e+00 : f32
    %39 = vector.broadcast %cst_19 : f32 to vector<8x128xf32>
    %40 = arith.subf %39, %33 : vector<8x128xf32>
    %41 = arith.mulf %40, %38 : vector<8x128xf32>
    %42 = arith.mulf %33, %9 : vector<8x128xf32>
    %43 = arith.addf %41, %42 : vector<8x128xf32>
    %44 = arith.truncf %43 : vector<8x128xf32> to vector<8x128xbf16>
    %c0_20 = arith.constant 0 : index
    %c0_21 = arith.constant 0 : index
    %45 = vector.load %arg6[%c0_20, %c0_21] : memref<128x384xbf16, #tpu.memory_space<vmem>>, vector<128x384xbf16>
    %cst_22 = arith.constant dense<0.000000e+00> : vector<8x384xf32>
    %46 = tpu.matmul %44, %45, %cst_22 {dimension_numbers = #tpu.dot_dimension_numbers<[1], [0], [0], [1], [0, 0, 1, 1], [], []>} : vector<8x128xbf16>, vector<128x384xbf16>, vector<8x384xf32> -> vector<8x384xf32>
    %c0_23 = arith.constant 0 : index
    %c0_24 = arith.constant 0 : index
    %47 = vector.load %arg7[%c0_23, %c0_24] : memref<1x384xf32, #tpu.memory_space<vmem>>, vector<1x384xf32>
    %48 = vector.broadcast %47 : vector<1x384xf32> to vector<8x384xf32>
    %49 = arith.addf %46, %48 : vector<8x384xf32>
    %50 = arith.truncf %10 : vector<8x128xf32> to vector<8x128xbf16>
    %c0_25 = arith.constant 0 : index
    %c0_26 = arith.constant 0 : index
    %51 = vector.load %arg8[%c0_25, %c0_26] : memref<128x384xbf16, #tpu.memory_space<vmem>>, vector<128x384xbf16>
    %cst_27 = arith.constant dense<0.000000e+00> : vector<8x384xf32>
    %52 = tpu.matmul %50, %51, %cst_27 {dimension_numbers = #tpu.dot_dimension_numbers<[1], [0], [0], [1], [0, 0, 1, 1], [], []>} : vector<8x128xbf16>, vector<128x384xbf16>, vector<8x384xf32> -> vector<8x384xf32>
    %c0_28 = arith.constant 0 : index
    %c0_29 = arith.constant 0 : index
    %53 = vector.load %arg9[%c0_28, %c0_29] : memref<1x384xf32, #tpu.memory_space<vmem>>, vector<1x384xf32>
    %54 = vector.broadcast %53 : vector<1x384xf32> to vector<8x384xf32>
    %55 = arith.addf %52, %54 : vector<8x384xf32>
    %56 = vector.extract_strided_slice %49 {offsets = [0, 0], sizes = [8, 128], strides = [1, 1]} : vector<8x384xf32> to vector<8x128xf32>
    %57 = vector.extract_strided_slice %55 {offsets = [0, 0], sizes = [8, 128], strides = [1, 1]} : vector<8x384xf32> to vector<8x128xf32>
    %58 = arith.addf %56, %57 : vector<8x128xf32>
    %59 = arith.negf %58 : vector<8x128xf32>
    %60 = math.exp %59 : vector<8x128xf32>
    %cst_30 = arith.constant 1.000000e+00 : f32
    %61 = vector.broadcast %cst_30 : f32 to vector<8x128xf32>
    %62 = arith.addf %61, %60 : vector<8x128xf32>
    %63 = arith.divf %61, %62 : vector<8x128xf32>
    %64 = vector.extract_strided_slice %49 {offsets = [0, 128], sizes = [8, 128], strides = [1, 1]} : vector<8x384xf32> to vector<8x128xf32>
    %65 = vector.extract_strided_slice %55 {offsets = [0, 128], sizes = [8, 128], strides = [1, 1]} : vector<8x384xf32> to vector<8x128xf32>
    %66 = arith.addf %64, %65 : vector<8x128xf32>
    %67 = arith.negf %66 : vector<8x128xf32>
    %68 = math.exp %67 : vector<8x128xf32>
    %cst_31 = arith.constant 1.000000e+00 : f32
    %69 = vector.broadcast %cst_31 : f32 to vector<8x128xf32>
    %70 = arith.addf %69, %68 : vector<8x128xf32>
    %71 = arith.divf %69, %70 : vector<8x128xf32>
    %72 = vector.extract_strided_slice %49 {offsets = [0, 256], sizes = [8, 128], strides = [1, 1]} : vector<8x384xf32> to vector<8x128xf32>
    %73 = vector.extract_strided_slice %55 {offsets = [0, 256], sizes = [8, 128], strides = [1, 1]} : vector<8x384xf32> to vector<8x128xf32>
    %74 = arith.mulf %63, %73 : vector<8x128xf32>
    %75 = arith.addf %72, %74 : vector<8x128xf32>
    %76 = math.tanh %75 : vector<8x128xf32>
    %cst_32 = arith.constant 1.000000e+00 : f32
    %77 = vector.broadcast %cst_32 : f32 to vector<8x128xf32>
    %78 = arith.subf %77, %71 : vector<8x128xf32>
    %79 = arith.mulf %78, %76 : vector<8x128xf32>
    %80 = arith.mulf %71, %10 : vector<8x128xf32>
    %81 = arith.addf %79, %80 : vector<8x128xf32>
    %c8 = arith.constant 8 : index
    %c0_33 = arith.constant 0 : index
    %82 = vector.load %arg13[%c8, %c0_33] : memref<64x384xf32, #tpu.memory_space<vmem>>, vector<8x384xf32>
    %83 = arith.truncf %43 : vector<8x128xf32> to vector<8x128xbf16>
    %c0_34 = arith.constant 0 : index
    %c0_35 = arith.constant 0 : index
    %84 = vector.load %arg4[%c0_34, %c0_35] : memref<128x384xbf16, #tpu.memory_space<vmem>>, vector<128x384xbf16>
    %cst_36 = arith.constant dense<0.000000e+00> : vector<8x384xf32>
    %85 = tpu.matmul %83, %84, %cst_36 {dimension_numbers = #tpu.dot_dimension_numbers<[1], [0], [0], [1], [0, 0, 1, 1], [], []>} : vector<8x128xbf16>, vector<128x384xbf16>, vector<8x384xf32> -> vector<8x384xf32>
    %c0_37 = arith.constant 0 : index
    %c0_38 = arith.constant 0 : index
    %86 = vector.load %arg5[%c0_37, %c0_38] : memref<1x384xf32, #tpu.memory_space<vmem>>, vector<1x384xf32>
    %87 = vector.broadcast %86 : vector<1x384xf32> to vector<8x384xf32>
    %88 = arith.addf %85, %87 : vector<8x384xf32>
    %89 = vector.extract_strided_slice %82 {offsets = [0, 0], sizes = [8, 128], strides = [1, 1]} : vector<8x384xf32> to vector<8x128xf32>
    %90 = vector.extract_strided_slice %88 {offsets = [0, 0], sizes = [8, 128], strides = [1, 1]} : vector<8x384xf32> to vector<8x128xf32>
    %91 = arith.addf %89, %90 : vector<8x128xf32>
    %92 = arith.negf %91 : vector<8x128xf32>
    %93 = math.exp %92 : vector<8x128xf32>
    %cst_39 = arith.constant 1.000000e+00 : f32
    %94 = vector.broadcast %cst_39 : f32 to vector<8x128xf32>
    %95 = arith.addf %94, %93 : vector<8x128xf32>
    %96 = arith.divf %94, %95 : vector<8x128xf32>
    %97 = vector.extract_strided_slice %82 {offsets = [0, 128], sizes = [8, 128], strides = [1, 1]} : vector<8x384xf32> to vector<8x128xf32>
    %98 = vector.extract_strided_slice %88 {offsets = [0, 128], sizes = [8, 128], strides = [1, 1]} : vector<8x384xf32> to vector<8x128xf32>
    %99 = arith.addf %97, %98 : vector<8x128xf32>
    %100 = arith.negf %99 : vector<8x128xf32>
    %101 = math.exp %100 : vector<8x128xf32>
    %cst_40 = arith.constant 1.000000e+00 : f32
    %102 = vector.broadcast %cst_40 : f32 to vector<8x128xf32>
    %103 = arith.addf %102, %101 : vector<8x128xf32>
    %104 = arith.divf %102, %103 : vector<8x128xf32>
    %105 = vector.extract_strided_slice %82 {offsets = [0, 256], sizes = [8, 128], strides = [1, 1]} : vector<8x384xf32> to vector<8x128xf32>
    %106 = vector.extract_strided_slice %88 {offsets = [0, 256], sizes = [8, 128], strides = [1, 1]} : vector<8x384xf32> to vector<8x128xf32>
    %107 = arith.mulf %96, %106 : vector<8x128xf32>
    %108 = arith.addf %105, %107 : vector<8x128xf32>
    %109 = math.tanh %108 : vector<8x128xf32>
    %cst_41 = arith.constant 1.000000e+00 : f32
    %110 = vector.broadcast %cst_41 : f32 to vector<8x128xf32>
    %111 = arith.subf %110, %104 : vector<8x128xf32>
    %112 = arith.mulf %111, %109 : vector<8x128xf32>
    %113 = arith.mulf %104, %43 : vector<8x128xf32>
    %114 = arith.addf %112, %113 : vector<8x128xf32>
    %115 = arith.truncf %114 : vector<8x128xf32> to vector<8x128xbf16>
    %c0_42 = arith.constant 0 : index
    %c0_43 = arith.constant 0 : index
    %116 = vector.load %arg6[%c0_42, %c0_43] : memref<128x384xbf16, #tpu.memory_space<vmem>>, vector<128x384xbf16>
    %cst_44 = arith.constant dense<0.000000e+00> : vector<8x384xf32>
    %117 = tpu.matmul %115, %116, %cst_44 {dimension_numbers = #tpu.dot_dimension_numbers<[1], [0], [0], [1], [0, 0, 1, 1], [], []>} : vector<8x128xbf16>, vector<128x384xbf16>, vector<8x384xf32> -> vector<8x384xf32>
    %c0_45 = arith.constant 0 : index
    %c0_46 = arith.constant 0 : index
    %118 = vector.load %arg7[%c0_45, %c0_46] : memref<1x384xf32, #tpu.memory_space<vmem>>, vector<1x384xf32>
    %119 = vector.broadcast %118 : vector<1x384xf32> to vector<8x384xf32>
    %120 = arith.addf %117, %119 : vector<8x384xf32>
    %121 = arith.truncf %81 : vector<8x128xf32> to vector<8x128xbf16>
    %c0_47 = arith.constant 0 : index
    %c0_48 = arith.constant 0 : index
    %122 = vector.load %arg8[%c0_47, %c0_48] : memref<128x384xbf16, #tpu.memory_space<vmem>>, vector<128x384xbf16>
    %cst_49 = arith.constant dense<0.000000e+00> : vector<8x384xf32>
    %123 = tpu.matmul %121, %122, %cst_49 {dimension_numbers = #tpu.dot_dimension_numbers<[1], [0], [0], [1], [0, 0, 1, 1], [], []>} : vector<8x128xbf16>, vector<128x384xbf16>, vector<8x384xf32> -> vector<8x384xf32>
    %c0_50 = arith.constant 0 : index
    %c0_51 = arith.constant 0 : index
    %124 = vector.load %arg9[%c0_50, %c0_51] : memref<1x384xf32, #tpu.memory_space<vmem>>, vector<1x384xf32>
    %125 = vector.broadcast %124 : vector<1x384xf32> to vector<8x384xf32>
    %126 = arith.addf %123, %125 : vector<8x384xf32>
    %127 = vector.extract_strided_slice %120 {offsets = [0, 0], sizes = [8, 128], strides = [1, 1]} : vector<8x384xf32> to vector<8x128xf32>
    %128 = vector.extract_strided_slice %126 {offsets = [0, 0], sizes = [8, 128], strides = [1, 1]} : vector<8x384xf32> to vector<8x128xf32>
    %129 = arith.addf %127, %128 : vector<8x128xf32>
    %130 = arith.negf %129 : vector<8x128xf32>
    %131 = math.exp %130 : vector<8x128xf32>
    %cst_52 = arith.constant 1.000000e+00 : f32
    %132 = vector.broadcast %cst_52 : f32 to vector<8x128xf32>
    %133 = arith.addf %132, %131 : vector<8x128xf32>
    %134 = arith.divf %132, %133 : vector<8x128xf32>
    %135 = vector.extract_strided_slice %120 {offsets = [0, 128], sizes = [8, 128], strides = [1, 1]} : vector<8x384xf32> to vector<8x128xf32>
    %136 = vector.extract_strided_slice %126 {offsets = [0, 128], sizes = [8, 128], strides = [1, 1]} : vector<8x384xf32> to vector<8x128xf32>
    %137 = arith.addf %135, %136 : vector<8x128xf32>
    %138 = arith.negf %137 : vector<8x128xf32>
    %139 = math.exp %138 : vector<8x128xf32>
    %cst_53 = arith.constant 1.000000e+00 : f32
    %140 = vector.broadcast %cst_53 : f32 to vector<8x128xf32>
    %141 = arith.addf %140, %139 : vector<8x128xf32>
    %142 = arith.divf %140, %141 : vector<8x128xf32>
    %143 = vector.extract_strided_slice %120 {offsets = [0, 256], sizes = [8, 128], strides = [1, 1]} : vector<8x384xf32> to vector<8x128xf32>
    %144 = vector.extract_strided_slice %126 {offsets = [0, 256], sizes = [8, 128], strides = [1, 1]} : vector<8x384xf32> to vector<8x128xf32>
    %145 = arith.mulf %134, %144 : vector<8x128xf32>
    %146 = arith.addf %143, %145 : vector<8x128xf32>
    %147 = math.tanh %146 : vector<8x128xf32>
    %cst_54 = arith.constant 1.000000e+00 : f32
    %148 = vector.broadcast %cst_54 : f32 to vector<8x128xf32>
    %149 = arith.subf %148, %142 : vector<8x128xf32>
    %150 = arith.mulf %149, %147 : vector<8x128xf32>
    %151 = arith.mulf %142, %81 : vector<8x128xf32>
    %152 = arith.addf %150, %151 : vector<8x128xf32>
    %c16 = arith.constant 16 : index
    %c0_55 = arith.constant 0 : index
    %153 = vector.load %arg13[%c16, %c0_55] : memref<64x384xf32, #tpu.memory_space<vmem>>, vector<8x384xf32>
    %154 = arith.truncf %114 : vector<8x128xf32> to vector<8x128xbf16>
    %c0_56 = arith.constant 0 : index
    %c0_57 = arith.constant 0 : index
    %155 = vector.load %arg4[%c0_56, %c0_57] : memref<128x384xbf16, #tpu.memory_space<vmem>>, vector<128x384xbf16>
    %cst_58 = arith.constant dense<0.000000e+00> : vector<8x384xf32>
    %156 = tpu.matmul %154, %155, %cst_58 {dimension_numbers = #tpu.dot_dimension_numbers<[1], [0], [0], [1], [0, 0, 1, 1], [], []>} : vector<8x128xbf16>, vector<128x384xbf16>, vector<8x384xf32> -> vector<8x384xf32>
    %c0_59 = arith.constant 0 : index
    %c0_60 = arith.constant 0 : index
    %157 = vector.load %arg5[%c0_59, %c0_60] : memref<1x384xf32, #tpu.memory_space<vmem>>, vector<1x384xf32>
    %158 = vector.broadcast %157 : vector<1x384xf32> to vector<8x384xf32>
    %159 = arith.addf %156, %158 : vector<8x384xf32>
    %160 = vector.extract_strided_slice %153 {offsets = [0, 0], sizes = [8, 128], strides = [1, 1]} : vector<8x384xf32> to vector<8x128xf32>
    %161 = vector.extract_strided_slice %159 {offsets = [0, 0], sizes = [8, 128], strides = [1, 1]} : vector<8x384xf32> to vector<8x128xf32>
    %162 = arith.addf %160, %161 : vector<8x128xf32>
    %163 = arith.negf %162 : vector<8x128xf32>
    %164 = math.exp %163 : vector<8x128xf32>
    %cst_61 = arith.constant 1.000000e+00 : f32
    %165 = vector.broadcast %cst_61 : f32 to vector<8x128xf32>
    %166 = arith.addf %165, %164 : vector<8x128xf32>
    %167 = arith.divf %165, %166 : vector<8x128xf32>
    %168 = vector.extract_strided_slice %153 {offsets = [0, 128], sizes = [8, 128], strides = [1, 1]} : vector<8x384xf32> to vector<8x128xf32>
    %169 = vector.extract_strided_slice %159 {offsets = [0, 128], sizes = [8, 128], strides = [1, 1]} : vector<8x384xf32> to vector<8x128xf32>
    %170 = arith.addf %168, %169 : vector<8x128xf32>
    %171 = arith.negf %170 : vector<8x128xf32>
    %172 = math.exp %171 : vector<8x128xf32>
    %cst_62 = arith.constant 1.000000e+00 : f32
    %173 = vector.broadcast %cst_62 : f32 to vector<8x128xf32>
    %174 = arith.addf %173, %172 : vector<8x128xf32>
    %175 = arith.divf %173, %174 : vector<8x128xf32>
    %176 = vector.extract_strided_slice %153 {offsets = [0, 256], sizes = [8, 128], strides = [1, 1]} : vector<8x384xf32> to vector<8x128xf32>
    %177 = vector.extract_strided_slice %159 {offsets = [0, 256], sizes = [8, 128], strides = [1, 1]} : vector<8x384xf32> to vector<8x128xf32>
    %178 = arith.mulf %167, %177 : vector<8x128xf32>
    %179 = arith.addf %176, %178 : vector<8x128xf32>
    %180 = math.tanh %179 : vector<8x128xf32>
    %cst_63 = arith.constant 1.000000e+00 : f32
    %181 = vector.broadcast %cst_63 : f32 to vector<8x128xf32>
    %182 = arith.subf %181, %175 : vector<8x128xf32>
    %183 = arith.mulf %182, %180 : vector<8x128xf32>
    %184 = arith.mulf %175, %114 : vector<8x128xf32>
    %185 = arith.addf %183, %184 : vector<8x128xf32>
    %186 = arith.truncf %185 : vector<8x128xf32> to vector<8x128xbf16>
    %c0_64 = arith.constant 0 : index
    %c0_65 = arith.constant 0 : index
    %187 = vector.load %arg6[%c0_64, %c0_65] : memref<128x384xbf16, #tpu.memory_space<vmem>>, vector<128x384xbf16>
    %cst_66 = arith.constant dense<0.000000e+00> : vector<8x384xf32>
    %188 = tpu.matmul %186, %187, %cst_66 {dimension_numbers = #tpu.dot_dimension_numbers<[1], [0], [0], [1], [0, 0, 1, 1], [], []>} : vector<8x128xbf16>, vector<128x384xbf16>, vector<8x384xf32> -> vector<8x384xf32>
    %c0_67 = arith.constant 0 : index
    %c0_68 = arith.constant 0 : index
    %189 = vector.load %arg7[%c0_67, %c0_68] : memref<1x384xf32, #tpu.memory_space<vmem>>, vector<1x384xf32>
    %190 = vector.broadcast %189 : vector<1x384xf32> to vector<8x384xf32>
    %191 = arith.addf %188, %190 : vector<8x384xf32>
    %192 = arith.truncf %152 : vector<8x128xf32> to vector<8x128xbf16>
    %c0_69 = arith.constant 0 : index
    %c0_70 = arith.constant 0 : index
    %193 = vector.load %arg8[%c0_69, %c0_70] : memref<128x384xbf16, #tpu.memory_space<vmem>>, vector<128x384xbf16>
    %cst_71 = arith.constant dense<0.000000e+00> : vector<8x384xf32>
    %194 = tpu.matmul %192, %193, %cst_71 {dimension_numbers = #tpu.dot_dimension_numbers<[1], [0], [0], [1], [0, 0, 1, 1], [], []>} : vector<8x128xbf16>, vector<128x384xbf16>, vector<8x384xf32> -> vector<8x384xf32>
    %c0_72 = arith.constant 0 : index
    %c0_73 = arith.constant 0 : index
    %195 = vector.load %arg9[%c0_72, %c0_73] : memref<1x384xf32, #tpu.memory_space<vmem>>, vector<1x384xf32>
    %196 = vector.broadcast %195 : vector<1x384xf32> to vector<8x384xf32>
    %197 = arith.addf %194, %196 : vector<8x384xf32>
    %198 = vector.extract_strided_slice %191 {offsets = [0, 0], sizes = [8, 128], strides = [1, 1]} : vector<8x384xf32> to vector<8x128xf32>
    %199 = vector.extract_strided_slice %197 {offsets = [0, 0], sizes = [8, 128], strides = [1, 1]} : vector<8x384xf32> to vector<8x128xf32>
    %200 = arith.addf %198, %199 : vector<8x128xf32>
    %201 = arith.negf %200 : vector<8x128xf32>
    %202 = math.exp %201 : vector<8x128xf32>
    %cst_74 = arith.constant 1.000000e+00 : f32
    %203 = vector.broadcast %cst_74 : f32 to vector<8x128xf32>
    %204 = arith.addf %203, %202 : vector<8x128xf32>
    %205 = arith.divf %203, %204 : vector<8x128xf32>
    %206 = vector.extract_strided_slice %191 {offsets = [0, 128], sizes = [8, 128], strides = [1, 1]} : vector<8x384xf32> to vector<8x128xf32>
    %207 = vector.extract_strided_slice %197 {offsets = [0, 128], sizes = [8, 128], strides = [1, 1]} : vector<8x384xf32> to vector<8x128xf32>
    %208 = arith.addf %206, %207 : vector<8x128xf32>
    %209 = arith.negf %208 : vector<8x128xf32>
    %210 = math.exp %209 : vector<8x128xf32>
    %cst_75 = arith.constant 1.000000e+00 : f32
    %211 = vector.broadcast %cst_75 : f32 to vector<8x128xf32>
    %212 = arith.addf %211, %210 : vector<8x128xf32>
    %213 = arith.divf %211, %212 : vector<8x128xf32>
    %214 = vector.extract_strided_slice %191 {offsets = [0, 256], sizes = [8, 128], strides = [1, 1]} : vector<8x384xf32> to vector<8x128xf32>
    %215 = vector.extract_strided_slice %197 {offsets = [0, 256], sizes = [8, 128], strides = [1, 1]} : vector<8x384xf32> to vector<8x128xf32>
    %216 = arith.mulf %205, %215 : vector<8x128xf32>
    %217 = arith.addf %214, %216 : vector<8x128xf32>
    %218 = math.tanh %217 : vector<8x128xf32>
    %cst_76 = arith.constant 1.000000e+00 : f32
    %219 = vector.broadcast %cst_76 : f32 to vector<8x128xf32>
    %220 = arith.subf %219, %213 : vector<8x128xf32>
    %221 = arith.mulf %220, %218 : vector<8x128xf32>
    %222 = arith.mulf %213, %152 : vector<8x128xf32>
    %223 = arith.addf %221, %222 : vector<8x128xf32>
    %c24 = arith.constant 24 : index
    %c0_77 = arith.constant 0 : index
    %224 = vector.load %arg13[%c24, %c0_77] : memref<64x384xf32, #tpu.memory_space<vmem>>, vector<8x384xf32>
    %225 = arith.truncf %185 : vector<8x128xf32> to vector<8x128xbf16>
    %c0_78 = arith.constant 0 : index
    %c0_79 = arith.constant 0 : index
    %226 = vector.load %arg4[%c0_78, %c0_79] : memref<128x384xbf16, #tpu.memory_space<vmem>>, vector<128x384xbf16>
    %cst_80 = arith.constant dense<0.000000e+00> : vector<8x384xf32>
    %227 = tpu.matmul %225, %226, %cst_80 {dimension_numbers = #tpu.dot_dimension_numbers<[1], [0], [0], [1], [0, 0, 1, 1], [], []>} : vector<8x128xbf16>, vector<128x384xbf16>, vector<8x384xf32> -> vector<8x384xf32>
    %c0_81 = arith.constant 0 : index
    %c0_82 = arith.constant 0 : index
    %228 = vector.load %arg5[%c0_81, %c0_82] : memref<1x384xf32, #tpu.memory_space<vmem>>, vector<1x384xf32>
    %229 = vector.broadcast %228 : vector<1x384xf32> to vector<8x384xf32>
    %230 = arith.addf %227, %229 : vector<8x384xf32>
    %231 = vector.extract_strided_slice %224 {offsets = [0, 0], sizes = [8, 128], strides = [1, 1]} : vector<8x384xf32> to vector<8x128xf32>
    %232 = vector.extract_strided_slice %230 {offsets = [0, 0], sizes = [8, 128], strides = [1, 1]} : vector<8x384xf32> to vector<8x128xf32>
    %233 = arith.addf %231, %232 : vector<8x128xf32>
    %234 = arith.negf %233 : vector<8x128xf32>
    %235 = math.exp %234 : vector<8x128xf32>
    %cst_83 = arith.constant 1.000000e+00 : f32
    %236 = vector.broadcast %cst_83 : f32 to vector<8x128xf32>
    %237 = arith.addf %236, %235 : vector<8x128xf32>
    %238 = arith.divf %236, %237 : vector<8x128xf32>
    %239 = vector.extract_strided_slice %224 {offsets = [0, 128], sizes = [8, 128], strides = [1, 1]} : vector<8x384xf32> to vector<8x128xf32>
    %240 = vector.extract_strided_slice %230 {offsets = [0, 128], sizes = [8, 128], strides = [1, 1]} : vector<8x384xf32> to vector<8x128xf32>
    %241 = arith.addf %239, %240 : vector<8x128xf32>
    %242 = arith.negf %241 : vector<8x128xf32>
    %243 = math.exp %242 : vector<8x128xf32>
    %cst_84 = arith.constant 1.000000e+00 : f32
    %244 = vector.broadcast %cst_84 : f32 to vector<8x128xf32>
    %245 = arith.addf %244, %243 : vector<8x128xf32>
    %246 = arith.divf %244, %245 : vector<8x128xf32>
    %247 = vector.extract_strided_slice %224 {offsets = [0, 256], sizes = [8, 128], strides = [1, 1]} : vector<8x384xf32> to vector<8x128xf32>
    %248 = vector.extract_strided_slice %230 {offsets = [0, 256], sizes = [8, 128], strides = [1, 1]} : vector<8x384xf32> to vector<8x128xf32>
    %249 = arith.mulf %238, %248 : vector<8x128xf32>
    %250 = arith.addf %247, %249 : vector<8x128xf32>
    %251 = math.tanh %250 : vector<8x128xf32>
    %cst_85 = arith.constant 1.000000e+00 : f32
    %252 = vector.broadcast %cst_85 : f32 to vector<8x128xf32>
    %253 = arith.subf %252, %246 : vector<8x128xf32>
    %254 = arith.mulf %253, %251 : vector<8x128xf32>
    %255 = arith.mulf %246, %185 : vector<8x128xf32>
    %256 = arith.addf %254, %255 : vector<8x128xf32>
    %257 = arith.truncf %256 : vector<8x128xf32> to vector<8x128xbf16>
    %c0_86 = arith.constant 0 : index
    %c0_87 = arith.constant 0 : index
    %258 = vector.load %arg6[%c0_86, %c0_87] : memref<128x384xbf16, #tpu.memory_space<vmem>>, vector<128x384xbf16>
    %cst_88 = arith.constant dense<0.000000e+00> : vector<8x384xf32>
    %259 = tpu.matmul %257, %258, %cst_88 {dimension_numbers = #tpu.dot_dimension_numbers<[1], [0], [0], [1], [0, 0, 1, 1], [], []>} : vector<8x128xbf16>, vector<128x384xbf16>, vector<8x384xf32> -> vector<8x384xf32>
    %c0_89 = arith.constant 0 : index
    %c0_90 = arith.constant 0 : index
    %260 = vector.load %arg7[%c0_89, %c0_90] : memref<1x384xf32, #tpu.memory_space<vmem>>, vector<1x384xf32>
    %261 = vector.broadcast %260 : vector<1x384xf32> to vector<8x384xf32>
    %262 = arith.addf %259, %261 : vector<8x384xf32>
    %263 = arith.truncf %223 : vector<8x128xf32> to vector<8x128xbf16>
    %c0_91 = arith.constant 0 : index
    %c0_92 = arith.constant 0 : index
    %264 = vector.load %arg8[%c0_91, %c0_92] : memref<128x384xbf16, #tpu.memory_space<vmem>>, vector<128x384xbf16>
    %cst_93 = arith.constant dense<0.000000e+00> : vector<8x384xf32>
    %265 = tpu.matmul %263, %264, %cst_93 {dimension_numbers = #tpu.dot_dimension_numbers<[1], [0], [0], [1], [0, 0, 1, 1], [], []>} : vector<8x128xbf16>, vector<128x384xbf16>, vector<8x384xf32> -> vector<8x384xf32>
    %c0_94 = arith.constant 0 : index
    %c0_95 = arith.constant 0 : index
    %266 = vector.load %arg9[%c0_94, %c0_95] : memref<1x384xf32, #tpu.memory_space<vmem>>, vector<1x384xf32>
    %267 = vector.broadcast %266 : vector<1x384xf32> to vector<8x384xf32>
    %268 = arith.addf %265, %267 : vector<8x384xf32>
    %269 = vector.extract_strided_slice %262 {offsets = [0, 0], sizes = [8, 128], strides = [1, 1]} : vector<8x384xf32> to vector<8x128xf32>
    %270 = vector.extract_strided_slice %268 {offsets = [0, 0], sizes = [8, 128], strides = [1, 1]} : vector<8x384xf32> to vector<8x128xf32>
    %271 = arith.addf %269, %270 : vector<8x128xf32>
    %272 = arith.negf %271 : vector<8x128xf32>
    %273 = math.exp %272 : vector<8x128xf32>
    %cst_96 = arith.constant 1.000000e+00 : f32
    %274 = vector.broadcast %cst_96 : f32 to vector<8x128xf32>
    %275 = arith.addf %274, %273 : vector<8x128xf32>
    %276 = arith.divf %274, %275 : vector<8x128xf32>
    %277 = vector.extract_strided_slice %262 {offsets = [0, 128], sizes = [8, 128], strides = [1, 1]} : vector<8x384xf32> to vector<8x128xf32>
    %278 = vector.extract_strided_slice %268 {offsets = [0, 128], sizes = [8, 128], strides = [1, 1]} : vector<8x384xf32> to vector<8x128xf32>
    %279 = arith.addf %277, %278 : vector<8x128xf32>
    %280 = arith.negf %279 : vector<8x128xf32>
    %281 = math.exp %280 : vector<8x128xf32>
    %cst_97 = arith.constant 1.000000e+00 : f32
    %282 = vector.broadcast %cst_97 : f32 to vector<8x128xf32>
    %283 = arith.addf %282, %281 : vector<8x128xf32>
    %284 = arith.divf %282, %283 : vector<8x128xf32>
    %285 = vector.extract_strided_slice %262 {offsets = [0, 256], sizes = [8, 128], strides = [1, 1]} : vector<8x384xf32> to vector<8x128xf32>
    %286 = vector.extract_strided_slice %268 {offsets = [0, 256], sizes = [8, 128], strides = [1, 1]} : vector<8x384xf32> to vector<8x128xf32>
    %287 = arith.mulf %276, %286 : vector<8x128xf32>
    %288 = arith.addf %285, %287 : vector<8x128xf32>
    %289 = math.tanh %288 : vector<8x128xf32>
    %cst_98 = arith.constant 1.000000e+00 : f32
    %290 = vector.broadcast %cst_98 : f32 to vector<8x128xf32>
    %291 = arith.subf %290, %284 : vector<8x128xf32>
    %292 = arith.mulf %291, %289 : vector<8x128xf32>
    %293 = arith.mulf %284, %223 : vector<8x128xf32>
    %294 = arith.addf %292, %293 : vector<8x128xf32>
    %c32 = arith.constant 32 : index
    %c0_99 = arith.constant 0 : index
    %295 = vector.load %arg13[%c32, %c0_99] : memref<64x384xf32, #tpu.memory_space<vmem>>, vector<8x384xf32>
    %296 = arith.truncf %256 : vector<8x128xf32> to vector<8x128xbf16>
    %c0_100 = arith.constant 0 : index
    %c0_101 = arith.constant 0 : index
    %297 = vector.load %arg4[%c0_100, %c0_101] : memref<128x384xbf16, #tpu.memory_space<vmem>>, vector<128x384xbf16>
    %cst_102 = arith.constant dense<0.000000e+00> : vector<8x384xf32>
    %298 = tpu.matmul %296, %297, %cst_102 {dimension_numbers = #tpu.dot_dimension_numbers<[1], [0], [0], [1], [0, 0, 1, 1], [], []>} : vector<8x128xbf16>, vector<128x384xbf16>, vector<8x384xf32> -> vector<8x384xf32>
    %c0_103 = arith.constant 0 : index
    %c0_104 = arith.constant 0 : index
    %299 = vector.load %arg5[%c0_103, %c0_104] : memref<1x384xf32, #tpu.memory_space<vmem>>, vector<1x384xf32>
    %300 = vector.broadcast %299 : vector<1x384xf32> to vector<8x384xf32>
    %301 = arith.addf %298, %300 : vector<8x384xf32>
    %302 = vector.extract_strided_slice %295 {offsets = [0, 0], sizes = [8, 128], strides = [1, 1]} : vector<8x384xf32> to vector<8x128xf32>
    %303 = vector.extract_strided_slice %301 {offsets = [0, 0], sizes = [8, 128], strides = [1, 1]} : vector<8x384xf32> to vector<8x128xf32>
    %304 = arith.addf %302, %303 : vector<8x128xf32>
    %305 = arith.negf %304 : vector<8x128xf32>
    %306 = math.exp %305 : vector<8x128xf32>
    %cst_105 = arith.constant 1.000000e+00 : f32
    %307 = vector.broadcast %cst_105 : f32 to vector<8x128xf32>
    %308 = arith.addf %307, %306 : vector<8x128xf32>
    %309 = arith.divf %307, %308 : vector<8x128xf32>
    %310 = vector.extract_strided_slice %295 {offsets = [0, 128], sizes = [8, 128], strides = [1, 1]} : vector<8x384xf32> to vector<8x128xf32>
    %311 = vector.extract_strided_slice %301 {offsets = [0, 128], sizes = [8, 128], strides = [1, 1]} : vector<8x384xf32> to vector<8x128xf32>
    %312 = arith.addf %310, %311 : vector<8x128xf32>
    %313 = arith.negf %312 : vector<8x128xf32>
    %314 = math.exp %313 : vector<8x128xf32>
    %cst_106 = arith.constant 1.000000e+00 : f32
    %315 = vector.broadcast %cst_106 : f32 to vector<8x128xf32>
    %316 = arith.addf %315, %314 : vector<8x128xf32>
    %317 = arith.divf %315, %316 : vector<8x128xf32>
    %318 = vector.extract_strided_slice %295 {offsets = [0, 256], sizes = [8, 128], strides = [1, 1]} : vector<8x384xf32> to vector<8x128xf32>
    %319 = vector.extract_strided_slice %301 {offsets = [0, 256], sizes = [8, 128], strides = [1, 1]} : vector<8x384xf32> to vector<8x128xf32>
    %320 = arith.mulf %309, %319 : vector<8x128xf32>
    %321 = arith.addf %318, %320 : vector<8x128xf32>
    %322 = math.tanh %321 : vector<8x128xf32>
    %cst_107 = arith.constant 1.000000e+00 : f32
    %323 = vector.broadcast %cst_107 : f32 to vector<8x128xf32>
    %324 = arith.subf %323, %317 : vector<8x128xf32>
    %325 = arith.mulf %324, %322 : vector<8x128xf32>
    %326 = arith.mulf %317, %256 : vector<8x128xf32>
    %327 = arith.addf %325, %326 : vector<8x128xf32>
    %328 = arith.truncf %327 : vector<8x128xf32> to vector<8x128xbf16>
    %c0_108 = arith.constant 0 : index
    %c0_109 = arith.constant 0 : index
    %329 = vector.load %arg6[%c0_108, %c0_109] : memref<128x384xbf16, #tpu.memory_space<vmem>>, vector<128x384xbf16>
    %cst_110 = arith.constant dense<0.000000e+00> : vector<8x384xf32>
    %330 = tpu.matmul %328, %329, %cst_110 {dimension_numbers = #tpu.dot_dimension_numbers<[1], [0], [0], [1], [0, 0, 1, 1], [], []>} : vector<8x128xbf16>, vector<128x384xbf16>, vector<8x384xf32> -> vector<8x384xf32>
    %c0_111 = arith.constant 0 : index
    %c0_112 = arith.constant 0 : index
    %331 = vector.load %arg7[%c0_111, %c0_112] : memref<1x384xf32, #tpu.memory_space<vmem>>, vector<1x384xf32>
    %332 = vector.broadcast %331 : vector<1x384xf32> to vector<8x384xf32>
    %333 = arith.addf %330, %332 : vector<8x384xf32>
    %334 = arith.truncf %294 : vector<8x128xf32> to vector<8x128xbf16>
    %c0_113 = arith.constant 0 : index
    %c0_114 = arith.constant 0 : index
    %335 = vector.load %arg8[%c0_113, %c0_114] : memref<128x384xbf16, #tpu.memory_space<vmem>>, vector<128x384xbf16>
    %cst_115 = arith.constant dense<0.000000e+00> : vector<8x384xf32>
    %336 = tpu.matmul %334, %335, %cst_115 {dimension_numbers = #tpu.dot_dimension_numbers<[1], [0], [0], [1], [0, 0, 1, 1], [], []>} : vector<8x128xbf16>, vector<128x384xbf16>, vector<8x384xf32> -> vector<8x384xf32>
    %c0_116 = arith.constant 0 : index
    %c0_117 = arith.constant 0 : index
    %337 = vector.load %arg9[%c0_116, %c0_117] : memref<1x384xf32, #tpu.memory_space<vmem>>, vector<1x384xf32>
    %338 = vector.broadcast %337 : vector<1x384xf32> to vector<8x384xf32>
    %339 = arith.addf %336, %338 : vector<8x384xf32>
    %340 = vector.extract_strided_slice %333 {offsets = [0, 0], sizes = [8, 128], strides = [1, 1]} : vector<8x384xf32> to vector<8x128xf32>
    %341 = vector.extract_strided_slice %339 {offsets = [0, 0], sizes = [8, 128], strides = [1, 1]} : vector<8x384xf32> to vector<8x128xf32>
    %342 = arith.addf %340, %341 : vector<8x128xf32>
    %343 = arith.negf %342 : vector<8x128xf32>
    %344 = math.exp %343 : vector<8x128xf32>
    %cst_118 = arith.constant 1.000000e+00 : f32
    %345 = vector.broadcast %cst_118 : f32 to vector<8x128xf32>
    %346 = arith.addf %345, %344 : vector<8x128xf32>
    %347 = arith.divf %345, %346 : vector<8x128xf32>
    %348 = vector.extract_strided_slice %333 {offsets = [0, 128], sizes = [8, 128], strides = [1, 1]} : vector<8x384xf32> to vector<8x128xf32>
    %349 = vector.extract_strided_slice %339 {offsets = [0, 128], sizes = [8, 128], strides = [1, 1]} : vector<8x384xf32> to vector<8x128xf32>
    %350 = arith.addf %348, %349 : vector<8x128xf32>
    %351 = arith.negf %350 : vector<8x128xf32>
    %352 = math.exp %351 : vector<8x128xf32>
    %cst_119 = arith.constant 1.000000e+00 : f32
    %353 = vector.broadcast %cst_119 : f32 to vector<8x128xf32>
    %354 = arith.addf %353, %352 : vector<8x128xf32>
    %355 = arith.divf %353, %354 : vector<8x128xf32>
    %356 = vector.extract_strided_slice %333 {offsets = [0, 256], sizes = [8, 128], strides = [1, 1]} : vector<8x384xf32> to vector<8x128xf32>
    %357 = vector.extract_strided_slice %339 {offsets = [0, 256], sizes = [8, 128], strides = [1, 1]} : vector<8x384xf32> to vector<8x128xf32>
    %358 = arith.mulf %347, %357 : vector<8x128xf32>
    %359 = arith.addf %356, %358 : vector<8x128xf32>
    %360 = math.tanh %359 : vector<8x128xf32>
    %cst_120 = arith.constant 1.000000e+00 : f32
    %361 = vector.broadcast %cst_120 : f32 to vector<8x128xf32>
    %362 = arith.subf %361, %355 : vector<8x128xf32>
    %363 = arith.mulf %362, %360 : vector<8x128xf32>
    %364 = arith.mulf %355, %294 : vector<8x128xf32>
    %365 = arith.addf %363, %364 : vector<8x128xf32>
    %c40 = arith.constant 40 : index
    %c0_121 = arith.constant 0 : index
    %366 = vector.load %arg13[%c40, %c0_121] : memref<64x384xf32, #tpu.memory_space<vmem>>, vector<8x384xf32>
    %367 = arith.truncf %327 : vector<8x128xf32> to vector<8x128xbf16>
    %c0_122 = arith.constant 0 : index
    %c0_123 = arith.constant 0 : index
    %368 = vector.load %arg4[%c0_122, %c0_123] : memref<128x384xbf16, #tpu.memory_space<vmem>>, vector<128x384xbf16>
    %cst_124 = arith.constant dense<0.000000e+00> : vector<8x384xf32>
    %369 = tpu.matmul %367, %368, %cst_124 {dimension_numbers = #tpu.dot_dimension_numbers<[1], [0], [0], [1], [0, 0, 1, 1], [], []>} : vector<8x128xbf16>, vector<128x384xbf16>, vector<8x384xf32> -> vector<8x384xf32>
    %c0_125 = arith.constant 0 : index
    %c0_126 = arith.constant 0 : index
    %370 = vector.load %arg5[%c0_125, %c0_126] : memref<1x384xf32, #tpu.memory_space<vmem>>, vector<1x384xf32>
    %371 = vector.broadcast %370 : vector<1x384xf32> to vector<8x384xf32>
    %372 = arith.addf %369, %371 : vector<8x384xf32>
    %373 = vector.extract_strided_slice %366 {offsets = [0, 0], sizes = [8, 128], strides = [1, 1]} : vector<8x384xf32> to vector<8x128xf32>
    %374 = vector.extract_strided_slice %372 {offsets = [0, 0], sizes = [8, 128], strides = [1, 1]} : vector<8x384xf32> to vector<8x128xf32>
    %375 = arith.addf %373, %374 : vector<8x128xf32>
    %376 = arith.negf %375 : vector<8x128xf32>
    %377 = math.exp %376 : vector<8x128xf32>
    %cst_127 = arith.constant 1.000000e+00 : f32
    %378 = vector.broadcast %cst_127 : f32 to vector<8x128xf32>
    %379 = arith.addf %378, %377 : vector<8x128xf32>
    %380 = arith.divf %378, %379 : vector<8x128xf32>
    %381 = vector.extract_strided_slice %366 {offsets = [0, 128], sizes = [8, 128], strides = [1, 1]} : vector<8x384xf32> to vector<8x128xf32>
    %382 = vector.extract_strided_slice %372 {offsets = [0, 128], sizes = [8, 128], strides = [1, 1]} : vector<8x384xf32> to vector<8x128xf32>
    %383 = arith.addf %381, %382 : vector<8x128xf32>
    %384 = arith.negf %383 : vector<8x128xf32>
    %385 = math.exp %384 : vector<8x128xf32>
    %cst_128 = arith.constant 1.000000e+00 : f32
    %386 = vector.broadcast %cst_128 : f32 to vector<8x128xf32>
    %387 = arith.addf %386, %385 : vector<8x128xf32>
    %388 = arith.divf %386, %387 : vector<8x128xf32>
    %389 = vector.extract_strided_slice %366 {offsets = [0, 256], sizes = [8, 128], strides = [1, 1]} : vector<8x384xf32> to vector<8x128xf32>
    %390 = vector.extract_strided_slice %372 {offsets = [0, 256], sizes = [8, 128], strides = [1, 1]} : vector<8x384xf32> to vector<8x128xf32>
    %391 = arith.mulf %380, %390 : vector<8x128xf32>
    %392 = arith.addf %389, %391 : vector<8x128xf32>
    %393 = math.tanh %392 : vector<8x128xf32>
    %cst_129 = arith.constant 1.000000e+00 : f32
    %394 = vector.broadcast %cst_129 : f32 to vector<8x128xf32>
    %395 = arith.subf %394, %388 : vector<8x128xf32>
    %396 = arith.mulf %395, %393 : vector<8x128xf32>
    %397 = arith.mulf %388, %327 : vector<8x128xf32>
    %398 = arith.addf %396, %397 : vector<8x128xf32>
    %399 = arith.truncf %398 : vector<8x128xf32> to vector<8x128xbf16>
    %c0_130 = arith.constant 0 : index
    %c0_131 = arith.constant 0 : index
    %400 = vector.load %arg6[%c0_130, %c0_131] : memref<128x384xbf16, #tpu.memory_space<vmem>>, vector<128x384xbf16>
    %cst_132 = arith.constant dense<0.000000e+00> : vector<8x384xf32>
    %401 = tpu.matmul %399, %400, %cst_132 {dimension_numbers = #tpu.dot_dimension_numbers<[1], [0], [0], [1], [0, 0, 1, 1], [], []>} : vector<8x128xbf16>, vector<128x384xbf16>, vector<8x384xf32> -> vector<8x384xf32>
    %c0_133 = arith.constant 0 : index
    %c0_134 = arith.constant 0 : index
    %402 = vector.load %arg7[%c0_133, %c0_134] : memref<1x384xf32, #tpu.memory_space<vmem>>, vector<1x384xf32>
    %403 = vector.broadcast %402 : vector<1x384xf32> to vector<8x384xf32>
    %404 = arith.addf %401, %403 : vector<8x384xf32>
    %405 = arith.truncf %365 : vector<8x128xf32> to vector<8x128xbf16>
    %c0_135 = arith.constant 0 : index
    %c0_136 = arith.constant 0 : index
    %406 = vector.load %arg8[%c0_135, %c0_136] : memref<128x384xbf16, #tpu.memory_space<vmem>>, vector<128x384xbf16>
    %cst_137 = arith.constant dense<0.000000e+00> : vector<8x384xf32>
    %407 = tpu.matmul %405, %406, %cst_137 {dimension_numbers = #tpu.dot_dimension_numbers<[1], [0], [0], [1], [0, 0, 1, 1], [], []>} : vector<8x128xbf16>, vector<128x384xbf16>, vector<8x384xf32> -> vector<8x384xf32>
    %c0_138 = arith.constant 0 : index
    %c0_139 = arith.constant 0 : index
    %408 = vector.load %arg9[%c0_138, %c0_139] : memref<1x384xf32, #tpu.memory_space<vmem>>, vector<1x384xf32>
    %409 = vector.broadcast %408 : vector<1x384xf32> to vector<8x384xf32>
    %410 = arith.addf %407, %409 : vector<8x384xf32>
    %411 = vector.extract_strided_slice %404 {offsets = [0, 0], sizes = [8, 128], strides = [1, 1]} : vector<8x384xf32> to vector<8x128xf32>
    %412 = vector.extract_strided_slice %410 {offsets = [0, 0], sizes = [8, 128], strides = [1, 1]} : vector<8x384xf32> to vector<8x128xf32>
    %413 = arith.addf %411, %412 : vector<8x128xf32>
    %414 = arith.negf %413 : vector<8x128xf32>
    %415 = math.exp %414 : vector<8x128xf32>
    %cst_140 = arith.constant 1.000000e+00 : f32
    %416 = vector.broadcast %cst_140 : f32 to vector<8x128xf32>
    %417 = arith.addf %416, %415 : vector<8x128xf32>
    %418 = arith.divf %416, %417 : vector<8x128xf32>
    %419 = vector.extract_strided_slice %404 {offsets = [0, 128], sizes = [8, 128], strides = [1, 1]} : vector<8x384xf32> to vector<8x128xf32>
    %420 = vector.extract_strided_slice %410 {offsets = [0, 128], sizes = [8, 128], strides = [1, 1]} : vector<8x384xf32> to vector<8x128xf32>
    %421 = arith.addf %419, %420 : vector<8x128xf32>
    %422 = arith.negf %421 : vector<8x128xf32>
    %423 = math.exp %422 : vector<8x128xf32>
    %cst_141 = arith.constant 1.000000e+00 : f32
    %424 = vector.broadcast %cst_141 : f32 to vector<8x128xf32>
    %425 = arith.addf %424, %423 : vector<8x128xf32>
    %426 = arith.divf %424, %425 : vector<8x128xf32>
    %427 = vector.extract_strided_slice %404 {offsets = [0, 256], sizes = [8, 128], strides = [1, 1]} : vector<8x384xf32> to vector<8x128xf32>
    %428 = vector.extract_strided_slice %410 {offsets = [0, 256], sizes = [8, 128], strides = [1, 1]} : vector<8x384xf32> to vector<8x128xf32>
    %429 = arith.mulf %418, %428 : vector<8x128xf32>
    %430 = arith.addf %427, %429 : vector<8x128xf32>
    %431 = math.tanh %430 : vector<8x128xf32>
    %cst_142 = arith.constant 1.000000e+00 : f32
    %432 = vector.broadcast %cst_142 : f32 to vector<8x128xf32>
    %433 = arith.subf %432, %426 : vector<8x128xf32>
    %434 = arith.mulf %433, %431 : vector<8x128xf32>
    %435 = arith.mulf %426, %365 : vector<8x128xf32>
    %436 = arith.addf %434, %435 : vector<8x128xf32>
    %c48 = arith.constant 48 : index
    %c0_143 = arith.constant 0 : index
    %437 = vector.load %arg13[%c48, %c0_143] : memref<64x384xf32, #tpu.memory_space<vmem>>, vector<8x384xf32>
    %438 = arith.truncf %398 : vector<8x128xf32> to vector<8x128xbf16>
    %c0_144 = arith.constant 0 : index
    %c0_145 = arith.constant 0 : index
    %439 = vector.load %arg4[%c0_144, %c0_145] : memref<128x384xbf16, #tpu.memory_space<vmem>>, vector<128x384xbf16>
    %cst_146 = arith.constant dense<0.000000e+00> : vector<8x384xf32>
    %440 = tpu.matmul %438, %439, %cst_146 {dimension_numbers = #tpu.dot_dimension_numbers<[1], [0], [0], [1], [0, 0, 1, 1], [], []>} : vector<8x128xbf16>, vector<128x384xbf16>, vector<8x384xf32> -> vector<8x384xf32>
    %c0_147 = arith.constant 0 : index
    %c0_148 = arith.constant 0 : index
    %441 = vector.load %arg5[%c0_147, %c0_148] : memref<1x384xf32, #tpu.memory_space<vmem>>, vector<1x384xf32>
    %442 = vector.broadcast %441 : vector<1x384xf32> to vector<8x384xf32>
    %443 = arith.addf %440, %442 : vector<8x384xf32>
    %444 = vector.extract_strided_slice %437 {offsets = [0, 0], sizes = [8, 128], strides = [1, 1]} : vector<8x384xf32> to vector<8x128xf32>
    %445 = vector.extract_strided_slice %443 {offsets = [0, 0], sizes = [8, 128], strides = [1, 1]} : vector<8x384xf32> to vector<8x128xf32>
    %446 = arith.addf %444, %445 : vector<8x128xf32>
    %447 = arith.negf %446 : vector<8x128xf32>
    %448 = math.exp %447 : vector<8x128xf32>
    %cst_149 = arith.constant 1.000000e+00 : f32
    %449 = vector.broadcast %cst_149 : f32 to vector<8x128xf32>
    %450 = arith.addf %449, %448 : vector<8x128xf32>
    %451 = arith.divf %449, %450 : vector<8x128xf32>
    %452 = vector.extract_strided_slice %437 {offsets = [0, 128], sizes = [8, 128], strides = [1, 1]} : vector<8x384xf32> to vector<8x128xf32>
    %453 = vector.extract_strided_slice %443 {offsets = [0, 128], sizes = [8, 128], strides = [1, 1]} : vector<8x384xf32> to vector<8x128xf32>
    %454 = arith.addf %452, %453 : vector<8x128xf32>
    %455 = arith.negf %454 : vector<8x128xf32>
    %456 = math.exp %455 : vector<8x128xf32>
    %cst_150 = arith.constant 1.000000e+00 : f32
    %457 = vector.broadcast %cst_150 : f32 to vector<8x128xf32>
    %458 = arith.addf %457, %456 : vector<8x128xf32>
    %459 = arith.divf %457, %458 : vector<8x128xf32>
    %460 = vector.extract_strided_slice %437 {offsets = [0, 256], sizes = [8, 128], strides = [1, 1]} : vector<8x384xf32> to vector<8x128xf32>
    %461 = vector.extract_strided_slice %443 {offsets = [0, 256], sizes = [8, 128], strides = [1, 1]} : vector<8x384xf32> to vector<8x128xf32>
    %462 = arith.mulf %451, %461 : vector<8x128xf32>
    %463 = arith.addf %460, %462 : vector<8x128xf32>
    %464 = math.tanh %463 : vector<8x128xf32>
    %cst_151 = arith.constant 1.000000e+00 : f32
    %465 = vector.broadcast %cst_151 : f32 to vector<8x128xf32>
    %466 = arith.subf %465, %459 : vector<8x128xf32>
    %467 = arith.mulf %466, %464 : vector<8x128xf32>
    %468 = arith.mulf %459, %398 : vector<8x128xf32>
    %469 = arith.addf %467, %468 : vector<8x128xf32>
    %470 = arith.truncf %469 : vector<8x128xf32> to vector<8x128xbf16>
    %c0_152 = arith.constant 0 : index
    %c0_153 = arith.constant 0 : index
    %471 = vector.load %arg6[%c0_152, %c0_153] : memref<128x384xbf16, #tpu.memory_space<vmem>>, vector<128x384xbf16>
    %cst_154 = arith.constant dense<0.000000e+00> : vector<8x384xf32>
    %472 = tpu.matmul %470, %471, %cst_154 {dimension_numbers = #tpu.dot_dimension_numbers<[1], [0], [0], [1], [0, 0, 1, 1], [], []>} : vector<8x128xbf16>, vector<128x384xbf16>, vector<8x384xf32> -> vector<8x384xf32>
    %c0_155 = arith.constant 0 : index
    %c0_156 = arith.constant 0 : index
    %473 = vector.load %arg7[%c0_155, %c0_156] : memref<1x384xf32, #tpu.memory_space<vmem>>, vector<1x384xf32>
    %474 = vector.broadcast %473 : vector<1x384xf32> to vector<8x384xf32>
    %475 = arith.addf %472, %474 : vector<8x384xf32>
    %476 = arith.truncf %436 : vector<8x128xf32> to vector<8x128xbf16>
    %c0_157 = arith.constant 0 : index
    %c0_158 = arith.constant 0 : index
    %477 = vector.load %arg8[%c0_157, %c0_158] : memref<128x384xbf16, #tpu.memory_space<vmem>>, vector<128x384xbf16>
    %cst_159 = arith.constant dense<0.000000e+00> : vector<8x384xf32>
    %478 = tpu.matmul %476, %477, %cst_159 {dimension_numbers = #tpu.dot_dimension_numbers<[1], [0], [0], [1], [0, 0, 1, 1], [], []>} : vector<8x128xbf16>, vector<128x384xbf16>, vector<8x384xf32> -> vector<8x384xf32>
    %c0_160 = arith.constant 0 : index
    %c0_161 = arith.constant 0 : index
    %479 = vector.load %arg9[%c0_160, %c0_161] : memref<1x384xf32, #tpu.memory_space<vmem>>, vector<1x384xf32>
    %480 = vector.broadcast %479 : vector<1x384xf32> to vector<8x384xf32>
    %481 = arith.addf %478, %480 : vector<8x384xf32>
    %482 = vector.extract_strided_slice %475 {offsets = [0, 0], sizes = [8, 128], strides = [1, 1]} : vector<8x384xf32> to vector<8x128xf32>
    %483 = vector.extract_strided_slice %481 {offsets = [0, 0], sizes = [8, 128], strides = [1, 1]} : vector<8x384xf32> to vector<8x128xf32>
    %484 = arith.addf %482, %483 : vector<8x128xf32>
    %485 = arith.negf %484 : vector<8x128xf32>
    %486 = math.exp %485 : vector<8x128xf32>
    %cst_162 = arith.constant 1.000000e+00 : f32
    %487 = vector.broadcast %cst_162 : f32 to vector<8x128xf32>
    %488 = arith.addf %487, %486 : vector<8x128xf32>
    %489 = arith.divf %487, %488 : vector<8x128xf32>
    %490 = vector.extract_strided_slice %475 {offsets = [0, 128], sizes = [8, 128], strides = [1, 1]} : vector<8x384xf32> to vector<8x128xf32>
    %491 = vector.extract_strided_slice %481 {offsets = [0, 128], sizes = [8, 128], strides = [1, 1]} : vector<8x384xf32> to vector<8x128xf32>
    %492 = arith.addf %490, %491 : vector<8x128xf32>
    %493 = arith.negf %492 : vector<8x128xf32>
    %494 = math.exp %493 : vector<8x128xf32>
    %cst_163 = arith.constant 1.000000e+00 : f32
    %495 = vector.broadcast %cst_163 : f32 to vector<8x128xf32>
    %496 = arith.addf %495, %494 : vector<8x128xf32>
    %497 = arith.divf %495, %496 : vector<8x128xf32>
    %498 = vector.extract_strided_slice %475 {offsets = [0, 256], sizes = [8, 128], strides = [1, 1]} : vector<8x384xf32> to vector<8x128xf32>
    %499 = vector.extract_strided_slice %481 {offsets = [0, 256], sizes = [8, 128], strides = [1, 1]} : vector<8x384xf32> to vector<8x128xf32>
    %500 = arith.mulf %489, %499 : vector<8x128xf32>
    %501 = arith.addf %498, %500 : vector<8x128xf32>
    %502 = math.tanh %501 : vector<8x128xf32>
    %cst_164 = arith.constant 1.000000e+00 : f32
    %503 = vector.broadcast %cst_164 : f32 to vector<8x128xf32>
    %504 = arith.subf %503, %497 : vector<8x128xf32>
    %505 = arith.mulf %504, %502 : vector<8x128xf32>
    %506 = arith.mulf %497, %436 : vector<8x128xf32>
    %507 = arith.addf %505, %506 : vector<8x128xf32>
    %c56 = arith.constant 56 : index
    %c0_165 = arith.constant 0 : index
    %508 = vector.load %arg13[%c56, %c0_165] : memref<64x384xf32, #tpu.memory_space<vmem>>, vector<8x384xf32>
    %509 = arith.truncf %469 : vector<8x128xf32> to vector<8x128xbf16>
    %c0_166 = arith.constant 0 : index
    %c0_167 = arith.constant 0 : index
    %510 = vector.load %arg4[%c0_166, %c0_167] : memref<128x384xbf16, #tpu.memory_space<vmem>>, vector<128x384xbf16>
    %cst_168 = arith.constant dense<0.000000e+00> : vector<8x384xf32>
    %511 = tpu.matmul %509, %510, %cst_168 {dimension_numbers = #tpu.dot_dimension_numbers<[1], [0], [0], [1], [0, 0, 1, 1], [], []>} : vector<8x128xbf16>, vector<128x384xbf16>, vector<8x384xf32> -> vector<8x384xf32>
    %c0_169 = arith.constant 0 : index
    %c0_170 = arith.constant 0 : index
    %512 = vector.load %arg5[%c0_169, %c0_170] : memref<1x384xf32, #tpu.memory_space<vmem>>, vector<1x384xf32>
    %513 = vector.broadcast %512 : vector<1x384xf32> to vector<8x384xf32>
    %514 = arith.addf %511, %513 : vector<8x384xf32>
    %515 = vector.extract_strided_slice %508 {offsets = [0, 0], sizes = [8, 128], strides = [1, 1]} : vector<8x384xf32> to vector<8x128xf32>
    %516 = vector.extract_strided_slice %514 {offsets = [0, 0], sizes = [8, 128], strides = [1, 1]} : vector<8x384xf32> to vector<8x128xf32>
    %517 = arith.addf %515, %516 : vector<8x128xf32>
    %518 = arith.negf %517 : vector<8x128xf32>
    %519 = math.exp %518 : vector<8x128xf32>
    %cst_171 = arith.constant 1.000000e+00 : f32
    %520 = vector.broadcast %cst_171 : f32 to vector<8x128xf32>
    %521 = arith.addf %520, %519 : vector<8x128xf32>
    %522 = arith.divf %520, %521 : vector<8x128xf32>
    %523 = vector.extract_strided_slice %508 {offsets = [0, 128], sizes = [8, 128], strides = [1, 1]} : vector<8x384xf32> to vector<8x128xf32>
    %524 = vector.extract_strided_slice %514 {offsets = [0, 128], sizes = [8, 128], strides = [1, 1]} : vector<8x384xf32> to vector<8x128xf32>
    %525 = arith.addf %523, %524 : vector<8x128xf32>
    %526 = arith.negf %525 : vector<8x128xf32>
    %527 = math.exp %526 : vector<8x128xf32>
    %cst_172 = arith.constant 1.000000e+00 : f32
    %528 = vector.broadcast %cst_172 : f32 to vector<8x128xf32>
    %529 = arith.addf %528, %527 : vector<8x128xf32>
    %530 = arith.divf %528, %529 : vector<8x128xf32>
    %531 = vector.extract_strided_slice %508 {offsets = [0, 256], sizes = [8, 128], strides = [1, 1]} : vector<8x384xf32> to vector<8x128xf32>
    %532 = vector.extract_strided_slice %514 {offsets = [0, 256], sizes = [8, 128], strides = [1, 1]} : vector<8x384xf32> to vector<8x128xf32>
    %533 = arith.mulf %522, %532 : vector<8x128xf32>
    %534 = arith.addf %531, %533 : vector<8x128xf32>
    %535 = math.tanh %534 : vector<8x128xf32>
    %cst_173 = arith.constant 1.000000e+00 : f32
    %536 = vector.broadcast %cst_173 : f32 to vector<8x128xf32>
    %537 = arith.subf %536, %530 : vector<8x128xf32>
    %538 = arith.mulf %537, %535 : vector<8x128xf32>
    %539 = arith.mulf %530, %469 : vector<8x128xf32>
    %540 = arith.addf %538, %539 : vector<8x128xf32>
    %541 = arith.truncf %540 : vector<8x128xf32> to vector<8x128xbf16>
    %c0_174 = arith.constant 0 : index
    %c0_175 = arith.constant 0 : index
    %542 = vector.load %arg6[%c0_174, %c0_175] : memref<128x384xbf16, #tpu.memory_space<vmem>>, vector<128x384xbf16>
    %cst_176 = arith.constant dense<0.000000e+00> : vector<8x384xf32>
    %543 = tpu.matmul %541, %542, %cst_176 {dimension_numbers = #tpu.dot_dimension_numbers<[1], [0], [0], [1], [0, 0, 1, 1], [], []>} : vector<8x128xbf16>, vector<128x384xbf16>, vector<8x384xf32> -> vector<8x384xf32>
    %c0_177 = arith.constant 0 : index
    %c0_178 = arith.constant 0 : index
    %544 = vector.load %arg7[%c0_177, %c0_178] : memref<1x384xf32, #tpu.memory_space<vmem>>, vector<1x384xf32>
    %545 = vector.broadcast %544 : vector<1x384xf32> to vector<8x384xf32>
    %546 = arith.addf %543, %545 : vector<8x384xf32>
    %547 = arith.truncf %507 : vector<8x128xf32> to vector<8x128xbf16>
    %c0_179 = arith.constant 0 : index
    %c0_180 = arith.constant 0 : index
    %548 = vector.load %arg8[%c0_179, %c0_180] : memref<128x384xbf16, #tpu.memory_space<vmem>>, vector<128x384xbf16>
    %cst_181 = arith.constant dense<0.000000e+00> : vector<8x384xf32>
    %549 = tpu.matmul %547, %548, %cst_181 {dimension_numbers = #tpu.dot_dimension_numbers<[1], [0], [0], [1], [0, 0, 1, 1], [], []>} : vector<8x128xbf16>, vector<128x384xbf16>, vector<8x384xf32> -> vector<8x384xf32>
    %c0_182 = arith.constant 0 : index
    %c0_183 = arith.constant 0 : index
    %550 = vector.load %arg9[%c0_182, %c0_183] : memref<1x384xf32, #tpu.memory_space<vmem>>, vector<1x384xf32>
    %551 = vector.broadcast %550 : vector<1x384xf32> to vector<8x384xf32>
    %552 = arith.addf %549, %551 : vector<8x384xf32>
    %553 = vector.extract_strided_slice %546 {offsets = [0, 0], sizes = [8, 128], strides = [1, 1]} : vector<8x384xf32> to vector<8x128xf32>
    %554 = vector.extract_strided_slice %552 {offsets = [0, 0], sizes = [8, 128], strides = [1, 1]} : vector<8x384xf32> to vector<8x128xf32>
    %555 = arith.addf %553, %554 : vector<8x128xf32>
    %556 = arith.negf %555 : vector<8x128xf32>
    %557 = math.exp %556 : vector<8x128xf32>
    %cst_184 = arith.constant 1.000000e+00 : f32
    %558 = vector.broadcast %cst_184 : f32 to vector<8x128xf32>
    %559 = arith.addf %558, %557 : vector<8x128xf32>
    %560 = arith.divf %558, %559 : vector<8x128xf32>
    %561 = vector.extract_strided_slice %546 {offsets = [0, 128], sizes = [8, 128], strides = [1, 1]} : vector<8x384xf32> to vector<8x128xf32>
    %562 = vector.extract_strided_slice %552 {offsets = [0, 128], sizes = [8, 128], strides = [1, 1]} : vector<8x384xf32> to vector<8x128xf32>
    %563 = arith.addf %561, %562 : vector<8x128xf32>
    %564 = arith.negf %563 : vector<8x128xf32>
    %565 = math.exp %564 : vector<8x128xf32>
    %cst_185 = arith.constant 1.000000e+00 : f32
    %566 = vector.broadcast %cst_185 : f32 to vector<8x128xf32>
    %567 = arith.addf %566, %565 : vector<8x128xf32>
    %568 = arith.divf %566, %567 : vector<8x128xf32>
    %569 = vector.extract_strided_slice %546 {offsets = [0, 256], sizes = [8, 128], strides = [1, 1]} : vector<8x384xf32> to vector<8x128xf32>
    %570 = vector.extract_strided_slice %552 {offsets = [0, 256], sizes = [8, 128], strides = [1, 1]} : vector<8x384xf32> to vector<8x128xf32>
    %571 = arith.mulf %560, %570 : vector<8x128xf32>
    %572 = arith.addf %569, %571 : vector<8x128xf32>
    %573 = math.tanh %572 : vector<8x128xf32>
    %cst_186 = arith.constant 1.000000e+00 : f32
    %574 = vector.broadcast %cst_186 : f32 to vector<8x128xf32>
    %575 = arith.subf %574, %568 : vector<8x128xf32>
    %576 = arith.mulf %575, %573 : vector<8x128xf32>
    %577 = arith.mulf %568, %507 : vector<8x128xf32>
    %578 = arith.addf %576, %577 : vector<8x128xf32>
    %cst_187 = arith.constant 0.000000e+00 : f32
    %579 = vector.broadcast %cst_187 : f32 to vector<8x128xf32>
    %580 = arith.maximumf %578, %579 : vector<8x128xf32>
    %581 = arith.truncf %580 : vector<8x128xf32> to vector<8x128xbf16>
    %c0_188 = arith.constant 0 : index
    %c0_189 = arith.constant 0 : index
    %582 = vector.load %arg10[%c0_188, %c0_189] : memref<128x128xbf16, #tpu.memory_space<vmem>>, vector<128x128xbf16>
    %cst_190 = arith.constant dense<0.000000e+00> : vector<8x128xf32>
    %583 = tpu.matmul %581, %582, %cst_190 {dimension_numbers = #tpu.dot_dimension_numbers<[1], [0], [0], [1], [0, 0, 1, 1], [], []>} : vector<8x128xbf16>, vector<128x128xbf16>, vector<8x128xf32> -> vector<8x128xf32>
    %c0_191 = arith.constant 0 : index
    %c0_192 = arith.constant 0 : index
    %584 = vector.load %arg11[%c0_191, %c0_192] : memref<1x128xf32, #tpu.memory_space<vmem>>, vector<1x128xf32>
    %585 = vector.broadcast %584 : vector<1x128xf32> to vector<8x128xf32>
    %586 = arith.addf %583, %585 : vector<8x128xf32>
    %c0_193 = arith.constant 0 : index
    %c0_194 = arith.constant 0 : index
    %587 = vector.load %arg12[%c0_193, %c0_194] : memref<8x128xf32, #tpu.memory_space<vmem>>, vector<8x128xf32>
    tpu.vector_store %arg12[%c0_193, %c0_194], %586 {strides = array<i32>} : memref<8x128xf32, #tpu.memory_space<vmem>>, vector<8x128xf32>,
    return
  }
  func.func @transform_0(%arg0: i32) -> (i32, i32, i32) {
    %c0_i32 = arith.constant 0 : i32
    %c0_i32_0 = arith.constant 0 : i32
    %c0_i32_1 = arith.constant 0 : i32
    return %arg0, %c0_i32, %c0_i32_0 : i32, i32, i32
  }
  func.func @transform_1(%arg0: i32) -> (i32, i32) {
    %c0_i32 = arith.constant 0 : i32
    %c0_i32_0 = arith.constant 0 : i32
    %c0_i32_1 = arith.constant 0 : i32
    return %c0_i32, %c0_i32_0 : i32, i32
  }
  func.func @transform_2(%arg0: i32) -> (i32, i32) {
    %c0_i32 = arith.constant 0 : i32
    %c0_i32_0 = arith.constant 0 : i32
    %c0_i32_1 = arith.constant 0 : i32
    return %c0_i32, %c0_i32_0 : i32, i32
  }
  func.func @transform_3(%arg0: i32) -> (i32, i32) {
    %c0_i32 = arith.constant 0 : i32
    %c0_i32_0 = arith.constant 0 : i32
    %c0_i32_1 = arith.constant 0 : i32
    return %c0_i32, %c0_i32_0 : i32, i32
  }
  func.func @transform_4(%arg0: i32) -> (i32, i32) {
    %c0_i32 = arith.constant 0 : i32
    %c0_i32_0 = arith.constant 0 : i32
    %c0_i32_1 = arith.constant 0 : i32
    return %c0_i32, %c0_i32_0 : i32, i32
  }
  func.func @transform_5(%arg0: i32) -> (i32, i32) {
    %c0_i32 = arith.constant 0 : i32
    %c0_i32_0 = arith.constant 0 : i32
    %c0_i32_1 = arith.constant 0 : i32
    return %c0_i32, %c0_i32_0 : i32, i32
  }
  func.func @transform_6(%arg0: i32) -> (i32, i32) {
    %c0_i32 = arith.constant 0 : i32
    %c0_i32_0 = arith.constant 0 : i32
    %c0_i32_1 = arith.constant 0 : i32
    return %c0_i32, %c0_i32_0 : i32, i32
  }
  func.func @transform_7(%arg0: i32) -> (i32, i32) {
    %c0_i32 = arith.constant 0 : i32
    %c0_i32_0 = arith.constant 0 : i32
    %c0_i32_1 = arith.constant 0 : i32
    return %c0_i32, %c0_i32_0 : i32, i32
  }
  func.func @transform_8(%arg0: i32) -> (i32, i32) {
    %c0_i32 = arith.constant 0 : i32
    %c0_i32_0 = arith.constant 0 : i32
    %c0_i32_1 = arith.constant 0 : i32
    return %c0_i32, %c0_i32_0 : i32, i32
  }
  func.func @transform_9(%arg0: i32) -> (i32, i32) {
    %c0_i32 = arith.constant 0 : i32
    %c0_i32_0 = arith.constant 0 : i32
    %c0_i32_1 = arith.constant 0 : i32
    return %c0_i32, %c0_i32_0 : i32, i32
  }
  func.func @transform_10(%arg0: i32) -> (i32, i32) {
    %c0_i32 = arith.constant 0 : i32
    %c0_i32_0 = arith.constant 0 : i32
    %c0_i32_1 = arith.constant 0 : i32
    return %c0_i32, %c0_i32_0 : i32, i32
  }
  func.func @transform_11(%arg0: i32) -> (i32, i32) {
    %c0_i32 = arith.constant 0 : i32
    %c0_i32_0 = arith.constant 0 : i32
    return %arg0, %c0_i32 : i32, i32
  }
}

</mosaic_0001>

<llo_original>
// kernel: tpu_custom_call.1
$region0: #{tpu_custom_call.1}
  #allocation0 [shape = 'u32[]', space=smem, size = 0x4, offset = 0x4, fixed_abs, tag = 'smem constant byte address 0x4 - core index']
  #allocation1 [shape = 'u32[72,128]{1,0:T(1,128)}', space=vmem, size = 0x9000, scoped, tag = 'internal scratch']
  #allocation2 [shape = 'f32[64,384]{1,0:T(8,128)}', space=vmem, size = 0x18000, scoped, tag = 'scratch operand']
  %s0 = inlined_call_operand.vmem [shape: f32[1,64,16], index: 0, kind: input, shape index: {}]
  %s1 = inlined_call_operand.vmem [shape: bf16[16,384], index: 1, kind: input, shape index: {}]
  %s2 = inlined_call_operand.hbm [shape: f32[1,384], index: 2, kind: input, shape index: {}]
  %s3 = inlined_call_operand.hbm [shape: bf16[128,384], index: 3, kind: input, shape index: {}]
  %s4 = inlined_call_operand.hbm [shape: f32[1,384], index: 4, kind: input, shape index: {}]
  %s5 = inlined_call_operand.hbm [shape: bf16[128,384], index: 5, kind: input, shape index: {}]
  %s6 = inlined_call_operand.hbm [shape: f32[1,384], index: 6, kind: input, shape index: {}]
  %s7 = inlined_call_operand.hbm [shape: bf16[128,384], index: 7, kind: input, shape index: {}]
  %s8 = inlined_call_operand.hbm [shape: f32[1,384], index: 8, kind: input, shape index: {}]
  %s9 = inlined_call_operand.vmem [shape: bf16[128,128], index: 9, kind: input, shape index: {}]
  %s10 = inlined_call_operand.vmem [shape: f32[1,128], index: 10, kind: input, shape index: {}]
  %s11 = inlined_call_operand.hbm [shape: f32[8,128], index: 11, kind: output, shape index: {}]
  %s12 = sld [smem:[#allocation0]]
  $region82: #{tpu_custom_call.1} parent=0
    _
  %s14 = ssub.s32 1, %s12
  %s15 = scalar_select 0, %s14, %s12
  $region1: #{tpu_custom_call.1} parent=0
    #allocation3 [shape = 'u8[1536]{0}', space=vmem, size = 0x800, scoped, tag = 'input window, operand 2, single buffered']
    #allocation4 [shape = 's32[1]{0}', space=sflag, size = 0x4, scoped, tag = 'scoped memory for tpu_custom_call.1']
    #allocation5 [shape = 's32[1]{0}', space=sflag, size = 0x4, scoped, tag = 'scoped memory for tpu_custom_call.1']
    #allocation6 [shape = 'u8[98304]{0}', space=vmem, size = 0x18000, scoped, tag = 'input window, operand 3, single buffered']
    #allocation7 [shape = 's32[1]{0}', space=sflag, size = 0x4, scoped, tag = 'scoped memory for tpu_custom_call.1']
    #allocation8 [shape = 'u8[1536]{0}', space=vmem, size = 0x800, scoped, tag = 'input window, operand 4, single buffered']
    #allocation9 [shape = 'u8[98304]{0}', space=vmem, size = 0x18000, scoped, tag = 'input window, operand 5, single buffered']
    #allocation10 [shape = 's32[1]{0}', space=sflag, size = 0x4, scoped, tag = 'scoped memory for tpu_custom_call.1']
    #allocation11 [shape = 'u8[1536]{0}', space=vmem, size = 0x800, scoped, tag = 'input window, operand 6, single buffered']
    #allocation12 [shape = 'u8[98304]{0}', space=vmem, size = 0x18000, scoped, tag = 'input window, operand 7, single buffered']
    #allocation13 [shape = 's32[1]{0}', space=sflag, size = 0x4, scoped, tag = 'scoped memory for tpu_custom_call.1']
    #allocation14 [shape = 'u8[1536]{0}', space=vmem, size = 0x800, scoped, tag = 'input window, operand 8, single buffered']
    #allocation15 [shape = 'u8[4096]{0}', space=vmem, size = 0x1000, scoped, tag = 'output window, operand 0, single buffered']
    %16 = vsyncpa [#allocation4], 0
    %17 = vsyncpa [#allocation7], 0
    %18 = vsyncpa [#allocation10], 0
    %19 = vsyncpa [#allocation13], 0
    %20 = vsyncpa [#allocation5], 0
    // Predicated region
    $region2: #{tpu_custom_call.1} parent=1 // pred_check
      _
    $region3: #{tpu_custom_call.1} parent=1 // pred_check_branch
      %22 = sbr.rel (0) target = $region5
    $region4: #{tpu_custom_call.1} parent=1 // pred_region
      _
    $region5: #{tpu_custom_call.1} parent=1 // pred_fallthru
      _
    // Predicated region
    $region6: #{tpu_custom_call.1} parent=1 // pred_check
      _
    $region7: #{tpu_custom_call.1} parent=1 // pred_check_branch
      %24 = sbr.rel (0) target = $region9
    $region8: #{tpu_custom_call.1} parent=1 // pred_region
      _
    $region9: #{tpu_custom_call.1} parent=1 // pred_fallthru
      _
    // Predicated region
    $region10: #{tpu_custom_call.1} parent=1 // pred_check
      _
    $region11: #{tpu_custom_call.1} parent=1 // pred_check_branch
      %26 = sbr.rel (0) target = $region13
    $region12: #{tpu_custom_call.1} parent=1 // pred_region
      %28 = vsyncadd [#allocation4], 0
      %s30 = sshll.u32 %s2, 4
      %s31 = int_to_ptr.hbm [resolvable:$true] %s30
      %s32 = sshll.u32 [#allocation3], 4
      %s33 = int_to_ptr.vmem [resolvable:$true] %s32
      %35 = dma.hbm_to_vmem [thread:$0]  %s31, 48, %s33, [#allocation4]
    $region13: #{tpu_custom_call.1} parent=1 // pred_fallthru
      _
    // Predicated region
    $region14: #{tpu_custom_call.1} parent=1 // pred_check
      _
    $region15: #{tpu_custom_call.1} parent=1 // pred_check_branch
      %37 = sbr.rel (0) target = $region17
    $region16: #{tpu_custom_call.1} parent=1 // pred_region
      %39 = vsyncadd [#allocation7], 0
      %s40 = sshll.u32 %s3, 4
      %s41 = int_to_ptr.hbm [resolvable:$true] %s40
      %s42 = sshll.u32 [#allocation6], 4
      %s43 = int_to_ptr.vmem [resolvable:$true] %s42
      %48 = dma.hbm_to_vmem [thread:$0]  %s41, 3072, %s43, [#allocation7], 192, 192, 12
    $region17: #{tpu_custom_call.1} parent=1 // pred_fallthru
      _
    // Predicated region
    $region18: #{tpu_custom_call.1} parent=1 // pred_check
      _
    $region19: #{tpu_custom_call.1} parent=1 // pred_check_branch
      %50 = sbr.rel (0) target = $region21
    $region20: #{tpu_custom_call.1} parent=1 // pred_region
      %52 = vsyncadd [#allocation7], 0
      %s54 = sshll.u32 %s4, 4
      %s55 = int_to_ptr.hbm [resolvable:$true] %s54
      %s56 = sshll.u32 [#allocation8], 4
      %s57 = int_to_ptr.vmem [resolvable:$true] %s56
      %59 = dma.hbm_to_vmem [thread:$0]  %s55, 48, %s57, [#allocation7]
    $region21: #{tpu_custom_call.1} parent=1 // pred_fallthru
      _
    // Predicated region
    $region22: #{tpu_custom_call.1} parent=1 // pred_check
      _
    $region23: #{tpu_custom_call.1} parent=1 // pred_check_branch
      %61 = sbr.rel (0) target = $region25
    $region24: #{tpu_custom_call.1} parent=1 // pred_region
      %63 = vsyncadd [#allocation10], 0
      %s64 = sshll.u32 %s5, 4
      %s65 = int_to_ptr.hbm [resolvable:$true] %s64
      %s66 = sshll.u32 [#allocation9], 4
      %s67 = int_to_ptr.vmem [resolvable:$true] %s66
      %72 = dma.hbm_to_vmem [thread:$0]  %s65, 3072, %s67, [#allocation10], 192, 192, 12
    $region25: #{tpu_custom_call.1} parent=1 // pred_fallthru
      _
    // Predicated region
    $region26: #{tpu_custom_call.1} parent=1 // pred_check
      _
    $region27: #{tpu_custom_call.1} parent=1 // pred_check_branch
      %74 = sbr.rel (0) target = $region29
    $region28: #{tpu_custom_call.1} parent=1 // pred_region
      %76 = vsyncadd [#allocation10], 0
      %s78 = sshll.u32 %s6, 4
      %s79 = int_to_ptr.hbm [resolvable:$true] %s78
      %s80 = sshll.u32 [#allocation11], 4
      %s81 = int_to_ptr.vmem [resolvable:$true] %s80
      %83 = dma.hbm_to_vmem [thread:$0]  %s79, 48, %s81, [#allocation10]
    $region29: #{tpu_custom_call.1} parent=1 // pred_fallthru
      _
    // Predicated region
    $region30: #{tpu_custom_call.1} parent=1 // pred_check
      _
    $region31: #{tpu_custom_call.1} parent=1 // pred_check_branch
      %85 = sbr.rel (0) target = $region33
    $region32: #{tpu_custom_call.1} parent=1 // pred_region
      %87 = vsyncadd [#allocation13], 0
      %s88 = sshll.u32 %s7, 4
      %s89 = int_to_ptr.hbm [resolvable:$true] %s88
      %s90 = sshll.u32 [#allocation12], 4
      %s91 = int_to_ptr.vmem [resolvable:$true] %s90
      %96 = dma.hbm_to_vmem [thread:$0]  %s89, 3072, %s91, [#allocation13], 192, 192, 12
    $region33: #{tpu_custom_call.1} parent=1 // pred_fallthru
      _
    // Predicated region
    $region34: #{tpu_custom_call.1} parent=1 // pred_check
      _
    $region35: #{tpu_custom_call.1} parent=1 // pred_check_branch
      %98 = sbr.rel (0) target = $region37
    $region36: #{tpu_custom_call.1} parent=1 // pred_region
      %100 = vsyncadd [#allocation13], 0
      %s102 = sshll.u32 %s8, 4
      %s103 = int_to_ptr.hbm [resolvable:$true] %s102
      %s104 = sshll.u32 [#allocation14], 4
      %s105 = int_to_ptr.vmem [resolvable:$true] %s104
      %107 = dma.hbm_to_vmem [thread:$0]  %s103, 48, %s105, [#allocation13]
    $region37: #{tpu_custom_call.1} parent=1 // pred_fallthru
      _
    // Predicated region
    $region38: #{tpu_custom_call.1} parent=1 // pred_check
      _
    $region39: #{tpu_custom_call.1} parent=1 // pred_check_branch
      %109 = sbr.rel (0) target = $region41
    $region40: #{tpu_custom_call.1} parent=1 // pred_region
      _
    $region41: #{tpu_custom_call.1} parent=1 // pred_fallthru
      _
    // Predicated region
    $region42: #{tpu_custom_call.1} parent=1 // pred_check
      _
    $region43: #{tpu_custom_call.1} parent=1 // pred_check_branch
      %111 = sbr.rel (0) target = $region45
    $region44: #{tpu_custom_call.1} parent=1 // pred_region
      _
    $region45: #{tpu_custom_call.1} parent=1 // pred_fallthru
      _
    // Predicated region
    $region46: #{tpu_custom_call.1} parent=1 // pred_check
      _
    $region47: #{tpu_custom_call.1} parent=1 // pred_check_branch
      %113 = sbr.rel (0) target = $region49
    $region48: #{tpu_custom_call.1} parent=1 // pred_region
      %115 = dma.done [#allocation4], 48
    $region49: #{tpu_custom_call.1} parent=1 // pred_fallthru
      _
    // Predicated region
    $region50: #{tpu_custom_call.1} parent=1 // pred_check
      _
    $region51: #{tpu_custom_call.1} parent=1 // pred_check_branch
      %117 = sbr.rel (0) target = $region53
    $region52: #{tpu_custom_call.1} parent=1 // pred_region
      %119 = dma.done [#allocation7], 3072
    $region53: #{tpu_custom_call.1} parent=1 // pred_fallthru
      _
    // Predicated region
    $region54: #{tpu_custom_call.1} parent=1 // pred_check
      _
    $region55: #{tpu_custom_call.1} parent=1 // pred_check_branch
      %121 = sbr.rel (0) target = $region57
    $region56: #{tpu_custom_call.1} parent=1 // pred_region
      %123 = dma.done [#allocation7], 48
    $region57: #{tpu_custom_call.1} parent=1 // pred_fallthru
      _
    // Predicated region
    $region58: #{tpu_custom_call.1} parent=1 // pred_check
      _
    $region59: #{tpu_custom_call.1} parent=1 // pred_check_branch
      %125 = sbr.rel (0) target = $region61
    $region60: #{tpu_custom_call.1} parent=1 // pred_region
      %127 = dma.done [#allocation10], 3072
    $region61: #{tpu_custom_call.1} parent=1 // pred_fallthru
      _
    // Predicated region
    $region62: #{tpu_custom_call.1} parent=1 // pred_check
      _
    $region63: #{tpu_custom_call.1} parent=1 // pred_check_branch
      %129 = sbr.rel (0) target = $region65
    $region64: #{tpu_custom_call.1} parent=1 // pred_region
      %131 = dma.done [#allocation10], 48
    $region65: #{tpu_custom_call.1} parent=1 // pred_fallthru
      _
    // Predicated region
    $region66: #{tpu_custom_call.1} parent=1 // pred_check
      _
    $region67: #{tpu_custom_call.1} parent=1 // pred_check_branch
      %133 = sbr.rel (0) target = $region69
    $region68: #{tpu_custom_call.1} parent=1 // pred_region
      %135 = dma.done [#allocation13], 3072
    $region69: #{tpu_custom_call.1} parent=1 // pred_fallthru
      _
    // Predicated region
    $region70: #{tpu_custom_call.1} parent=1 // pred_check
      _
    $region71: #{tpu_custom_call.1} parent=1 // pred_check_branch
      %137 = sbr.rel (0) target = $region73
    $region72: #{tpu_custom_call.1} parent=1 // pred_region
      %139 = dma.done [#allocation13], 48
    $region73: #{tpu_custom_call.1} parent=1 // pred_fallthru
      _
    %v141 = vld [vmem:[%s0] sm:$0xff]
    %v142 = vld [vmem:[%s0 + $0x8] sm:$0xff]
    %v143 = vld [vmem:[%s0 + $0x10] sm:$0xff]
    %v144 = vld [vmem:[%s0 + $0x18] sm:$0xff]
    %v145 = vld [vmem:[%s0 + $0x20] sm:$0xff]
    %v146 = vld [vmem:[%s0 + $0x28] sm:$0xff]
    %v147 = vld [vmem:[%s0 + $0x30] sm:$0xff]
    %v148 = vld [vmem:[%s0 + $0x38] sm:$0xff]
    %v149 = vpack.c.bf16 %v142, %v141
    %v150 = vpack.c.bf16 %v144, %v143
    %v151 = vpack.c.bf16 %v146, %v145
    %v152 = vpack.c.bf16 %v148, %v147
    %v153 = vld [vmem:[%s1] sm:$0xff]
    %v154 = vld [vmem:[%s1 + $0x8] sm:$0xf]
    %v155 = vld [vmem:[%s1 + $0xc] sm:$0xff]
    %v156 = vld [vmem:[%s1 + $0x14] sm:$0xf]
    %v157 = vld [vmem:[#allocation3] sm:$0x7]
    %v159 = vperm.slane %v157, 0
    %v160 = vperm.slane %v157, 1
    %v161 = vperm.slane %v157, 2
    %v169 = vunpack.c.l.b16 %v153
    %v170 = vunpack.c.h.b16 %v153
    %v171 = vunpack.c.l.b16 %v154
    %v172 = vunpack.c.l.b16 %v155
    %v173 = vunpack.c.h.b16 %v155
    %v174 = vunpack.c.l.b16 %v156
    %v175 = vpack.c.b16 %v172, %v169
    %v176 = vpack.c.b16 %v173, %v170
    %v177 = vpack.c.b16 %v174, %v171
    %vm181 = vcmask 130048
    %v183 = vsel %vm181, %v149, 0
    %v186 = vsel %vm181, %v150, 0
    %v189 = vsel %vm181, %v151, 0
    %v192 = vsel %vm181, %v152, 0
    %194 = vmatpush.bf16.msra.mxu0 0
    %195 = vmatpush.bf16.msra.mxu0 0
    %196 = vmatpush.bf16.msra.mxu0 0
    %197 = vmatpush.bf16.msra.mxu0 0
    %198 = vmatpush.bf16.msra.mxu0 0
    %199 = vmatpush.bf16.msra.mxu0 0
    %200 = vmatpush.bf16.msra.mxu0 0
    %201 = vmatpush.bf16.msra.mxu0 %v175
    %202 = vmatmul.bf16.gmra.mxu0 %v183
    %v203 = vpop.f32.mrf.mxu0
    %v204 = vadd.f32 %v159, %v203
    %v205 = vpop.f32.mrf.mxu0
    %v206 = vadd.f32 %v159, %v205
    %207 = vmatmul.bf16.gmra.mxu0 %v186
    %v208 = vpop.f32.mrf.mxu0
    %v209 = vadd.f32 %v159, %v208
    %v210 = vpop.f32.mrf.mxu0
    %v211 = vadd.f32 %v159, %v210
    %212 = vmatmul.bf16.gmra.mxu0 %v189
    %v213 = vpop.f32.mrf.mxu0
    %v214 = vadd.f32 %v159, %v213
    %v215 = vpop.f32.mrf.mxu0
    %v216 = vadd.f32 %v159, %v215
    %217 = vmatmul.bf16.gmra.mxu0 %v192
    %v218 = vpop.f32.mrf.mxu0
    %v219 = vadd.f32 %v159, %v218
    %v220 = vpop.f32.mrf.mxu0
    %v221 = vadd.f32 %v159, %v220
    %222 = vdwg.mxu0
    %223 = vmatpush.bf16.msra.mxu0 0
    %224 = vmatpush.bf16.msra.mxu0 0
    %225 = vmatpush.bf16.msra.mxu0 0
    %226 = vmatpush.bf16.msra.mxu0 0
    %227 = vmatpush.bf16.msra.mxu0 0
    %228 = vmatpush.bf16.msra.mxu0 0
    %229 = vmatpush.bf16.msra.mxu0 0
    %230 = vmatpush.bf16.msra.mxu0 %v176
    %231 = vmatmul.bf16.gmra.mxu0 %v183
    %v232 = vpop.f32.mrf.mxu0
    %v233 = vadd.f32 %v160, %v232
    %v234 = vpop.f32.mrf.mxu0
    %v235 = vadd.f32 %v160, %v234
    %236 = vmatmul.bf16.gmra.mxu0 %v186
    %v237 = vpop.f32.mrf.mxu0
    %v238 = vadd.f32 %v160, %v237
    %v239 = vpop.f32.mrf.mxu0
    %v240 = vadd.f32 %v160, %v239
    %241 = vmatmul.bf16.gmra.mxu0 %v189
    %v242 = vpop.f32.mrf.mxu0
    %v243 = vadd.f32 %v160, %v242
    %v244 = vpop.f32.mrf.mxu0
    %v245 = vadd.f32 %v160, %v244
    %246 = vmatmul.bf16.gmra.mxu0 %v192
    %v247 = vpop.f32.mrf.mxu0
    %v248 = vadd.f32 %v160, %v247
    %v249 = vpop.f32.mrf.mxu0
    %v250 = vadd.f32 %v160, %v249
    %251 = vdwg.mxu0
    %252 = vmatpush.bf16.msra.mxu0 0
    %253 = vmatpush.bf16.msra.mxu0 0
    %254 = vmatpush.bf16.msra.mxu0 0
    %255 = vmatpush.bf16.msra.mxu0 0
    %256 = vmatpush.bf16.msra.mxu0 0
    %257 = vmatpush.bf16.msra.mxu0 0
    %258 = vmatpush.bf16.msra.mxu0 0
    %259 = vmatpush.bf16.msra.mxu0 %v177
    %260 = vmatmul.bf16.gmra.mxu0 %v183
    %v261 = vpop.f32.mrf.mxu0
    %v262 = vadd.f32 %v161, %v261
    %v263 = vpop.f32.mrf.mxu0
    %v264 = vadd.f32 %v161, %v263
    %265 = vmatmul.bf16.gmra.mxu0 %v186
    %v266 = vpop.f32.mrf.mxu0
    %v267 = vadd.f32 %v161, %v266
    %v268 = vpop.f32.mrf.mxu0
    %v269 = vadd.f32 %v161, %v268
    %270 = vmatmul.bf16.gmra.mxu0 %v189
    %v271 = vpop.f32.mrf.mxu0
    %v272 = vadd.f32 %v161, %v271
    %v273 = vpop.f32.mrf.mxu0
    %v274 = vadd.f32 %v161, %v273
    %275 = vmatmul.bf16.gmra.mxu0 %v192
    %v276 = vpop.f32.mrf.mxu0
    %v277 = vadd.f32 %v161, %v276
    %v278 = vpop.f32.mrf.mxu0
    %v279 = vadd.f32 %v161, %v278
    %280 = vdwg.mxu0
    %281 = vst [vmem:[#allocation2] sm:$0xff] %v204
    %282 = vst [vmem:[#allocation2 + $0x8] sm:$0xff] %v233
    %283 = vst [vmem:[#allocation2 + $0x10] sm:$0xff] %v262
    %284 = vst [vmem:[#allocation2 + $0x18] sm:$0xff] %v206
    %285 = vst [vmem:[#allocation2 + $0x20] sm:$0xff] %v235
    %286 = vst [vmem:[#allocation2 + $0x28] sm:$0xff] %v264
    %287 = vst [vmem:[#allocation2 + $0x30] sm:$0xff] %v209
    %288 = vst [vmem:[#allocation2 + $0x38] sm:$0xff] %v238
    %289 = vst [vmem:[#allocation2 + $0x40] sm:$0xff] %v267
    %290 = vst [vmem:[#allocation2 + $0x48] sm:$0xff] %v211
    %291 = vst [vmem:[#allocation2 + $0x50] sm:$0xff] %v240
    %292 = vst [vmem:[#allocation2 + $0x58] sm:$0xff] %v269
    %293 = vst [vmem:[#allocation2 + $0x60] sm:$0xff] %v214
    %294 = vst [vmem:[#allocation2 + $0x68] sm:$0xff] %v243
    %295 = vst [vmem:[#allocation2 + $0x70] sm:$0xff] %v272
    %296 = vst [vmem:[#allocation2 + $0x78] sm:$0xff] %v216
    %297 = vst [vmem:[#allocation2 + $0x80] sm:$0xff] %v245
    %298 = vst [vmem:[#allocation2 + $0x88] sm:$0xff] %v274
    %299 = vst [vmem:[#allocation2 + $0x90] sm:$0xff] %v219
    %300 = vst [vmem:[#allocation2 + $0x98] sm:$0xff] %v248
    %301 = vst [vmem:[#allocation2 + $0xa0] sm:$0xff] %v277
    %302 = vst [vmem:[#allocation2 + $0xa8] sm:$0xff] %v221
    %303 = vst [vmem:[#allocation2 + $0xb0] sm:$0xff] %v250
    %304 = vst [vmem:[#allocation2 + $0xb8] sm:$0xff] %v279
    %v305 = vld [vmem:[#allocation2] sm:$0xff]
    %v306 = vld [vmem:[#allocation2 + $0x8] sm:$0xff]
    %v307 = vld [vmem:[#allocation2 + $0x10] sm:$0xff]
    %v308 = vld [vmem:[#allocation6] sm:$0xff]
    %v309 = vld [vmem:[#allocation6 + $0x8] sm:$0xf]
    %v310 = vld [vmem:[#allocation6 + $0xc] sm:$0xff]
    %v311 = vld [vmem:[#allocation6 + $0x14] sm:$0xf]
    %v312 = vld [vmem:[#allocation6 + $0x18] sm:$0xff]
    %v313 = vld [vmem:[#allocation6 + $0x20] sm:$0xf]
    %v314 = vld [vmem:[#allocation6 + $0x24] sm:$0xff]
    %v315 = vld [vmem:[#allocation6 + $0x2c] sm:$0xf]
    %v316 = vld [vmem:[#allocation6 + $0x30] sm:$0xff]
    %v317 = vld [vmem:[#allocation6 + $0x38] sm:$0xf]
    %v318 = vld [vmem:[#allocation6 + $0x3c] sm:$0xff]
    %v319 = vld [vmem:[#allocation6 + $0x44] sm:$0xf]
    %v320 = vld [vmem:[#allocation6 + $0x48] sm:$0xff]
    %v321 = vld [vmem:[#allocation6 + $0x50] sm:$0xf]
    %v322 = vld [vmem:[#allocation6 + $0x54] sm:$0xff]
    %v323 = vld [vmem:[#allocation6 + $0x5c] sm:$0xf]
    %v324 = vld [vmem:[#allocation6 + $0x60] sm:$0xff]
    %v325 = vld [vmem:[#allocation6 + $0x68] sm:$0xf]
    %v326 = vld [vmem:[#allocation6 + $0x6c] sm:$0xff]
    %v327 = vld [vmem:[#allocation6 + $0x74] sm:$0xf]
    %v328 = vld [vmem:[#allocation6 + $0x78] sm:$0xff]
    %v329 = vld [vmem:[#allocation6 + $0x80] sm:$0xf]
    %v330 = vld [vmem:[#allocation6 + $0x84] sm:$0xff]
    %v331 = vld [vmem:[#allocation6 + $0x8c] sm:$0xf]
    %v332 = vld [vmem:[#allocation6 + $0x90] sm:$0xff]
    %v333 = vld [vmem:[#allocation6 + $0x98] sm:$0xf]
    %v334 = vld [vmem:[#allocation6 + $0x9c] sm:$0xff]
    %v335 = vld [vmem:[#allocation6 + $0xa4] sm:$0xf]
    %v336 = vld [vmem:[#allocation6 + $0xa8] sm:$0xff]
    %v337 = vld [vmem:[#allocation6 + $0xb0] sm:$0xf]
    %v338 = vld [vmem:[#allocation6 + $0xb4] sm:$0xff]
    %v339 = vld [vmem:[#allocation6 + $0xbc] sm:$0xf]
    %v340 = vld [vmem:[#allocation8] sm:$0x7]
    %v342 = vperm.slane %v340, 0
    %v343 = vperm.slane %v340, 1
    %v344 = vperm.slane %v340, 2
    %v380 = vunpack.c.l.b16 %v308
    %v381 = vunpack.c.h.b16 %v308
    %v382 = vunpack.c.l.b16 %v309
    %v383 = vunpack.c.l.b16 %v310
    %v384 = vunpack.c.h.b16 %v310
    %v385 = vunpack.c.l.b16 %v311
    %v386 = vunpack.c.l.b16 %v312
    %v387 = vunpack.c.h.b16 %v312
    %v388 = vunpack.c.l.b16 %v313
    %v389 = vunpack.c.l.b16 %v314
    %v390 = vunpack.c.h.b16 %v314
    %v391 = vunpack.c.l.b16 %v315
    %v392 = vunpack.c.l.b16 %v316
    %v393 = vunpack.c.h.b16 %v316
    %v394 = vunpack.c.l.b16 %v317
    %v395 = vunpack.c.l.b16 %v318
    %v396 = vunpack.c.h.b16 %v318
    %v397 = vunpack.c.l.b16 %v319
    %v398 = vunpack.c.l.b16 %v320
    %v399 = vunpack.c.h.b16 %v320
    %v400 = vunpack.c.l.b16 %v321
    %v401 = vunpack.c.l.b16 %v322
    %v402 = vunpack.c.h.b16 %v322
    %v403 = vunpack.c.l.b16 %v323
    %v404 = vunpack.c.l.b16 %v324
    %v405 = vunpack.c.h.b16 %v324
    %v406 = vunpack.c.l.b16 %v325
    %v407 = vunpack.c.l.b16 %v326
    %v408 = vunpack.c.h.b16 %v326
    %v409 = vunpack.c.l.b16 %v327
    %v410 = vunpack.c.l.b16 %v328
    %v411 = vunpack.c.h.b16 %v328
    %v412 = vunpack.c.l.b16 %v329
    %v413 = vunpack.c.l.b16 %v330
    %v414 = vunpack.c.h.b16 %v330
    %v415 = vunpack.c.l.b16 %v331
    %v416 = vunpack.c.l.b16 %v332
    %v417 = vunpack.c.h.b16 %v332
    %v418 = vunpack.c.l.b16 %v333
    %v419 = vunpack.c.l.b16 %v334
    %v420 = vunpack.c.h.b16 %v334
    %v421 = vunpack.c.l.b16 %v335
    %v422 = vunpack.c.l.b16 %v336
    %v423 = vunpack.c.h.b16 %v336
    %v424 = vunpack.c.l.b16 %v337
    %v425 = vunpack.c.l.b16 %v338
    %v426 = vunpack.c.h.b16 %v338
    %v427 = vunpack.c.l.b16 %v339
    %v428 = vpack.c.b16 %v383, %v380
    %v429 = vpack.c.b16 %v384, %v381
    %v430 = vpack.c.b16 %v385, %v382
    %v431 = vpack.c.b16 %v389, %v386
    %v432 = vpack.c.b16 %v390, %v387
    %v433 = vpack.c.b16 %v391, %v388
    %v434 = vpack.c.b16 %v395, %v392
    %v435 = vpack.c.b16 %v396, %v393
    %v436 = vpack.c.b16 %v397, %v394
    %v437 = vpack.c.b16 %v401, %v398
    %v438 = vpack.c.b16 %v402, %v399
    %v439 = vpack.c.b16 %v403, %v400
    %v440 = vpack.c.b16 %v407, %v404
    %v441 = vpack.c.b16 %v408, %v405
    %v442 = vpack.c.b16 %v409, %v406
    %v443 = vpack.c.b16 %v413, %v410
    %v444 = vpack.c.b16 %v414, %v411
    %v445 = vpack.c.b16 %v415, %v412
    %v446 = vpack.c.b16 %v419, %v416
    %v447 = vpack.c.b16 %v420, %v417
    %v448 = vpack.c.b16 %v421, %v418
    %v449 = vpack.c.b16 %v425, %v422
    %v450 = vpack.c.b16 %v426, %v423
    %v451 = vpack.c.b16 %v427, %v424
    %476 = vmatpush.bf16.msra.mxu0 %v449
    %477 = vmatpush.bf16.msra.mxu0 %v446
    %478 = vmatpush.bf16.msra.mxu0 %v443
    %479 = vmatpush.bf16.msra.mxu0 %v440
    %480 = vmatpush.bf16.msra.mxu0 %v437
    %481 = vmatpush.bf16.msra.mxu0 %v434
    %482 = vmatpush.bf16.msra.mxu0 %v431
    %483 = vmatpush.bf16.msra.mxu0 %v428
    %484 = vmatmul.bf16.gmra.mxu0 0
    %v485 = vpop.f32.mrf.mxu0
    %v486 = vadd.f32 %v342, %v485
    %v487 = vpop.f32.mrf.mxu0
    %488 = vdwg.mxu0
    %489 = vmatpush.bf16.msra.mxu0 %v450
    %490 = vmatpush.bf16.msra.mxu0 %v447
    %491 = vmatpush.bf16.msra.mxu0 %v444
    %492 = vmatpush.bf16.msra.mxu0 %v441
    %493 = vmatpush.bf16.msra.mxu0 %v438
    %494 = vmatpush.bf16.msra.mxu0 %v435
    %495 = vmatpush.bf16.msra.mxu0 %v432
    %496 = vmatpush.bf16.msra.mxu0 %v429
    %497 = vmatmul.bf16.gmra.mxu0 0
    %v498 = vpop.f32.mrf.mxu0
    %v499 = vadd.f32 %v343, %v498
    %v500 = vpop.f32.mrf.mxu0
    %501 = vdwg.mxu0
    %502 = vmatpush.bf16.msra.mxu0 %v451
    %503 = vmatpush.bf16.msra.mxu0 %v448
    %504 = vmatpush.bf16.msra.mxu0 %v445
    %505 = vmatpush.bf16.msra.mxu0 %v442
    %506 = vmatpush.bf16.msra.mxu0 %v439
    %507 = vmatpush.bf16.msra.mxu0 %v436
    %508 = vmatpush.bf16.msra.mxu0 %v433
    %509 = vmatpush.bf16.msra.mxu0 %v430
    %510 = vmatmul.bf16.gmra.mxu0 0
    %v511 = vpop.f32.mrf.mxu0
    %v512 = vadd.f32 %v344, %v511
    %v513 = vpop.f32.mrf.mxu0
    %514 = vdwg.mxu0
    %v515 = vadd.f32 %v305, %v486
    %v516 = vxor.u32 %v515, 2147483648
    %v517 = vmul.f32 %v516, 1.442695
    %v518 = vpow.pop %v517
    %v519 = vadd.f32 %v518, 1.0
    %v520 = vrcp.pop %v519
    %v521 = vmul.f32 %v519, %v520
    %v522 = vsub.f32 1.0, %v521
    %v523 = vmul.f32 %v520, %v522
    %v524 = vadd.f32 %v520, %v523
    %vm525 = vweird.f32 %v519
    %vm526 = vweird.f32 %v520
    %vm527 = vmor %vm525, %vm526
    %v528 = vsel %vm527, %v520, %v524
    %v529 = vand.u32 2147483647, %v519
    %vm530 = vcmp.eq.f32.partialorder %v529, 8.507059e+37
    %v531 = vand.u32 %v519, 2147483648
    %v532 = vor.u32 1.1754944e-38, %v531
    %v533 = vsel %vm530, %v532, %v528
    %v534 = vmul.f32 1.0, %v533
    %v535 = vadd.f32 %v306, %v499
    %v536 = vxor.u32 %v535, 2147483648
    %v537 = vmul.f32 %v536, 1.442695
    %v538 = vpow.pop %v537
    %v539 = vadd.f32 %v538, 1.0
    %v540 = vrcp.pop %v539
    %v541 = vmul.f32 %v539, %v540
    %v542 = vsub.f32 1.0, %v541
    %v543 = vmul.f32 %v540, %v542
    %v544 = vadd.f32 %v540, %v543
    %vm545 = vweird.f32 %v539
    %vm546 = vweird.f32 %v540
    %vm547 = vmor %vm545, %vm546
    %v548 = vsel %vm547, %v540, %v544
    %v549 = vand.u32 2147483647, %v539
    %vm550 = vcmp.eq.f32.partialorder %v549, 8.507059e+37
    %v551 = vand.u32 %v539, 2147483648
    %v552 = vor.u32 1.1754944e-38, %v551
    %v553 = vsel %vm550, %v552, %v548
    %v554 = vmul.f32 1.0, %v553
    %v555 = vmul.f32 %v534, %v512
    %v556 = vadd.f32 %v307, %v555
    %v557 = vtanh.pop %v556
    %v558 = vsub.f32 1.0, %v554
    %v559 = vmul.f32 %v558, %v557
    %v560 = vmul.f32 %v554, 0.0
    %v561 = vadd.f32 %v559, %v560
    %v562 = vpack.c.bf16 %v561, %v561
    %v563 = vld [vmem:[#allocation9] sm:$0xff]
    %v564 = vld [vmem:[#allocation9 + $0x8] sm:$0xf]
    %v565 = vld [vmem:[#allocation9 + $0xc] sm:$0xff]
    %v566 = vld [vmem:[#allocation9 + $0x14] sm:$0xf]
    %v567 = vld [vmem:[#allocation9 + $0x18] sm:$0xff]
    %v568 = vld [vmem:[#allocation9 + $0x20] sm:$0xf]
    %v569 = vld [vmem:[#allocation9 + $0x24] sm:$0xff]
    %v570 = vld [vmem:[#allocation9 + $0x2c] sm:$0xf]
    %v571 = vld [vmem:[#allocation9 + $0x30] sm:$0xff]
    %v572 = vld [vmem:[#allocation9 + $0x38] sm:$0xf]
    %v573 = vld [vmem:[#allocation9 + $0x3c] sm:$0xff]
    %v574 = vld [vmem:[#allocation9 + $0x44] sm:$0xf]
    %v575 = vld [vmem:[#allocation9 + $0x48] sm:$0xff]
    %v576 = vld [vmem:[#allocation9 + $0x50] sm:$0xf]
    %v577 = vld [vmem:[#allocation9 + $0x54] sm:$0xff]
    %v578 = vld [vmem:[#allocation9 + $0x5c] sm:$0xf]
    %v579 = vld [vmem:[#allocation9 + $0x60] sm:$0xff]
    %v580 = vld [vmem:[#allocation9 + $0x68] sm:$0xf]
    %v581 = vld [vmem:[#allocation9 + $0x6c] sm:$0xff]
    %v582 = vld [vmem:[#allocation9 + $0x74] sm:$0xf]
    %v583 = vld [vmem:[#allocation9 + $0x78] sm:$0xff]
    %v584 = vld [vmem:[#allocation9 + $0x80] sm:$0xf]
    %v585 = vld [vmem:[#allocation9 + $0x84] sm:$0xff]
    %v586 = vld [vmem:[#allocation9 + $0x8c] sm:$0xf]
    %v587 = vld [vmem:[#allocation9 + $0x90] sm:$0xff]
    %v588 = vld [vmem:[#allocation9 + $0x98] sm:$0xf]
    %v589 = vld [vmem:[#allocation9 + $0x9c] sm:$0xff]
    %v590 = vld [vmem:[#allocation9 + $0xa4] sm:$0xf]
    %v591 = vld [vmem:[#allocation9 + $0xa8] sm:$0xff]
    %v592 = vld [vmem:[#allocation9 + $0xb0] sm:$0xf]
    %v593 = vld [vmem:[#allocation9 + $0xb4] sm:$0xff]
    %v594 = vld [vmem:[#allocation9 + $0xbc] sm:$0xf]
    %v595 = vld [vmem:[#allocation11] sm:$0x7]
    %v597 = vperm.slane %v595, 0
    %v598 = vperm.slane %v595, 1
    %v599 = vperm.slane %v595, 2
    %v635 = vunpack.c.l.b16 %v563
    %v636 = vunpack.c.h.b16 %v563
    %v637 = vunpack.c.l.b16 %v564
    %v638 = vunpack.c.l.b16 %v565
    %v639 = vunpack.c.h.b16 %v565
    %v640 = vunpack.c.l.b16 %v566
    %v641 = vunpack.c.l.b16 %v567
    %v642 = vunpack.c.h.b16 %v567
    %v643 = vunpack.c.l.b16 %v568
    %v644 = vunpack.c.l.b16 %v569
    %v645 = vunpack.c.h.b16 %v569
    %v646 = vunpack.c.l.b16 %v570
    %v647 = vunpack.c.l.b16 %v571
    %v648 = vunpack.c.h.b16 %v571
    %v649 = vunpack.c.l.b16 %v572
    %v650 = vunpack.c.l.b16 %v573
    %v651 = vunpack.c.h.b16 %v573
    %v652 = vunpack.c.l.b16 %v574
    %v653 = vunpack.c.l.b16 %v575
    %v654 = vunpack.c.h.b16 %v575
    %v655 = vunpack.c.l.b16 %v576
    %v656 = vunpack.c.l.b16 %v577
    %v657 = vunpack.c.h.b16 %v577
    %v658 = vunpack.c.l.b16 %v578
    %v659 = vunpack.c.l.b16 %v579
    %v660 = vunpack.c.h.b16 %v579
    %v661 = vunpack.c.l.b16 %v580
    %v662 = vunpack.c.l.b16 %v581
    %v663 = vunpack.c.h.b16 %v581
    %v664 = vunpack.c.l.b16 %v582
    %v665 = vunpack.c.l.b16 %v583
    %v666 = vunpack.c.h.b16 %v583
    %v667 = vunpack.c.l.b16 %v584
    %v668 = vunpack.c.l.b16 %v585
    %v669 = vunpack.c.h.b16 %v585
    %v670 = vunpack.c.l.b16 %v586
    %v671 = vunpack.c.l.b16 %v587
    %v672 = vunpack.c.h.b16 %v587
    %v673 = vunpack.c.l.b16 %v588
    %v674 = vunpack.c.l.b16 %v589
    %v675 = vunpack.c.h.b16 %v589
    %v676 = vunpack.c.l.b16 %v590
    %v677 = vunpack.c.l.b16 %v591
    %v678 = vunpack.c.h.b16 %v591
    %v679 = vunpack.c.l.b16 %v592
    %v680 = vunpack.c.l.b16 %v593
    %v681 = vunpack.c.h.b16 %v593
    %v682 = vunpack.c.l.b16 %v594
    %v683 = vpack.c.b16 %v638, %v635
    %v684 = vpack.c.b16 %v639, %v636
    %v685 = vpack.c.b16 %v640, %v637
    %v686 = vpack.c.b16 %v644, %v641
    %v687 = vpack.c.b16 %v645, %v642
    %v688 = vpack.c.b16 %v646, %v643
    %v689 = vpack.c.b16 %v650, %v647
    %v690 = vpack.c.b16 %v651, %v648
    %v691 = vpack.c.b16 %v652, %v649
    %v692 = vpack.c.b16 %v656, %v653
    %v693 = vpack.c.b16 %v657, %v654
    %v694 = vpack.c.b16 %v658, %v655
    %v695 = vpack.c.b16 %v662, %v659
    %v696 = vpack.c.b16 %v663, %v660
    %v697 = vpack.c.b16 %v664, %v661
    %v698 = vpack.c.b16 %v668, %v665
    %v699 = vpack.c.b16 %v669, %v666
    %v700 = vpack.c.b16 %v670, %v667
    %v701 = vpack.c.b16 %v674, %v671
    %v702 = vpack.c.b16 %v675, %v672
    %v703 = vpack.c.b16 %v676, %v673
    %v704 = vpack.c.b16 %v680, %v677
    %v705 = vpack.c.b16 %v681, %v678
    %v706 = vpack.c.b16 %v682, %v679
    %731 = vmatpush.bf16.msra.mxu0 %v704
    %732 = vmatpush.bf16.msra.mxu0 %v701
    %733 = vmatpush.bf16.msra.mxu0 %v698
    %734 = vmatpush.bf16.msra.mxu0 %v695
    %735 = vmatpush.bf16.msra.mxu0 %v692
    %736 = vmatpush.bf16.msra.mxu0 %v689
    %737 = vmatpush.bf16.msra.mxu0 %v686
    %738 = vmatpush.bf16.msra.mxu0 %v683
    %739 = vmatmul.bf16.gmra.mxu0 %v562
    %v740 = vpop.f32.mrf.mxu0
    %v741 = vadd.f32 %v597, %v740
    %v742 = vpop.f32.mrf.mxu0
    %743 = vdwg.mxu0
    %744 = vmatpush.bf16.msra.mxu0 %v705
    %745 = vmatpush.bf16.msra.mxu0 %v702
    %746 = vmatpush.bf16.msra.mxu0 %v699
    %747 = vmatpush.bf16.msra.mxu0 %v696
    %748 = vmatpush.bf16.msra.mxu0 %v693
    %749 = vmatpush.bf16.msra.mxu0 %v690
    %750 = vmatpush.bf16.msra.mxu0 %v687
    %751 = vmatpush.bf16.msra.mxu0 %v684
    %752 = vmatmul.bf16.gmra.mxu0 %v562
    %v753 = vpop.f32.mrf.mxu0
    %v754 = vadd.f32 %v598, %v753
    %v755 = vpop.f32.mrf.mxu0
    %756 = vdwg.mxu0
    %757 = vmatpush.bf16.msra.mxu0 %v706
    %758 = vmatpush.bf16.msra.mxu0 %v703
    %759 = vmatpush.bf16.msra.mxu0 %v700
    %760 = vmatpush.bf16.msra.mxu0 %v697
    %761 = vmatpush.bf16.msra.mxu0 %v694
    %762 = vmatpush.bf16.msra.mxu0 %v691
    %763 = vmatpush.bf16.msra.mxu0 %v688
    %764 = vmatpush.bf16.msra.mxu0 %v685
    %765 = vmatmul.bf16.gmra.mxu0 %v562
    %v766 = vpop.f32.mrf.mxu0
    %v767 = vadd.f32 %v599, %v766
    %v768 = vpop.f32.mrf.mxu0
    %769 = vdwg.mxu0
    %v770 = vld [vmem:[#allocation12] sm:$0xff]
    %v771 = vld [vmem:[#allocation12 + $0x8] sm:$0xf]
    %v772 = vld [vmem:[#allocation12 + $0xc] sm:$0xff]
    %v773 = vld [vmem:[#allocation12 + $0x14] sm:$0xf]
    %v774 = vld [vmem:[#allocation12 + $0x18] sm:$0xff]
    %v775 = vld [vmem:[#allocation12 + $0x20] sm:$0xf]
    %v776 = vld [vmem:[#allocation12 + $0x24] sm:$0xff]
    %v777 = vld [vmem:[#allocation12 + $0x2c] sm:$0xf]
    %v778 = vld [vmem:[#allocation12 + $0x30] sm:$0xff]
    %v779 = vld [vmem:[#allocation12 + $0x38] sm:$0xf]
    %v780 = vld [vmem:[#allocation12 + $0x3c] sm:$0xff]
    %v781 = vld [vmem:[#allocation12 + $0x44] sm:$0xf]
    %v782 = vld [vmem:[#allocation12 + $0x48] sm:$0xff]
    %v783 = vld [vmem:[#allocation12 + $0x50] sm:$0xf]
    %v784 = vld [vmem:[#allocation12 + $0x54] sm:$0xff]
    %v785 = vld [vmem:[#allocation12 + $0x5c] sm:$0xf]
    %v786 = vld [vmem:[#allocation12 + $0x60] sm:$0xff]
    %v787 = vld [vmem:[#allocation12 + $0x68] sm:$0xf]
    %v788 = vld [vmem:[#allocation12 + $0x6c] sm:$0xff]
    %v789 = vld [vmem:[#allocation12 + $0x74] sm:$0xf]
    %v790 = vld [vmem:[#allocation12 + $0x78] sm:$0xff]
    %v791 = vld [vmem:[#allocation12 + $0x80] sm:$0xf]
    %v792 = vld [vmem:[#allocation12 + $0x84] sm:$0xff]
    %v793 = vld [vmem:[#allocation12 + $0x8c] sm:$0xf]
    %v794 = vld [vmem:[#allocation12 + $0x90] sm:$0xff]
    %v795 = vld [vmem:[#allocation12 + $0x98] sm:$0xf]
    %v796 = vld [vmem:[#allocation12 + $0x9c] sm:$0xff]
    %v797 = vld [vmem:[#allocation12 + $0xa4] sm:$0xf]
    %v798 = vld [vmem:[#allocation12 + $0xa8] sm:$0xff]
    %v799 = vld [vmem:[#allocation12 + $0xb0] sm:$0xf]
    %v800 = vld [vmem:[#allocation12 + $0xb4] sm:$0xff]
    %v801 = vld [vmem:[#allocation12 + $0xbc] sm:$0xf]
    %v802 = vld [vmem:[#allocation14] sm:$0x7]
    %v804 = vperm.slane %v802, 0
    %v805 = vperm.slane %v802, 1
    %v806 = vperm.slane %v802, 2
    %v842 = vunpack.c.l.b16 %v770
    %v843 = vunpack.c.h.b16 %v770
    %v844 = vunpack.c.l.b16 %v771
    %v845 = vunpack.c.l.b16 %v772
    %v846 = vunpack.c.h.b16 %v772
    %v847 = vunpack.c.l.b16 %v773
    %v848 = vunpack.c.l.b16 %v774
    %v849 = vunpack.c.h.b16 %v774
    %v850 = vunpack.c.l.b16 %v775
    %v851 = vunpack.c.l.b16 %v776
    %v852 = vunpack.c.h.b16 %v776
    %v853 = vunpack.c.l.b16 %v777
    %v854 = vunpack.c.l.b16 %v778
    %v855 = vunpack.c.h.b16 %v778
    %v856 = vunpack.c.l.b16 %v779
    %v857 = vunpack.c.l.b16 %v780
    %v858 = vunpack.c.h.b16 %v780
    %v859 = vunpack.c.l.b16 %v781
    %v860 = vunpack.c.l.b16 %v782
    %v861 = vunpack.c.h.b16 %v782
    %v862 = vunpack.c.l.b16 %v783
    %v863 = vunpack.c.l.b16 %v784
    %v864 = vunpack.c.h.b16 %v784
    %v865 = vunpack.c.l.b16 %v785
    %v866 = vunpack.c.l.b16 %v786
    %v867 = vunpack.c.h.b16 %v786
    %v868 = vunpack.c.l.b16 %v787
    %v869 = vunpack.c.l.b16 %v788
    %v870 = vunpack.c.h.b16 %v788
    %v871 = vunpack.c.l.b16 %v789
    %v872 = vunpack.c.l.b16 %v790
    %v873 = vunpack.c.h.b16 %v790
    %v874 = vunpack.c.l.b16 %v791
    %v875 = vunpack.c.l.b16 %v792
    %v876 = vunpack.c.h.b16 %v792
    %v877 = vunpack.c.l.b16 %v793
    %v878 = vunpack.c.l.b16 %v794
    %v879 = vunpack.c.h.b16 %v794
    %v880 = vunpack.c.l.b16 %v795
    %v881 = vunpack.c.l.b16 %v796
    %v882 = vunpack.c.h.b16 %v796
    %v883 = vunpack.c.l.b16 %v797
    %v884 = vunpack.c.l.b16 %v798
    %v885 = vunpack.c.h.b16 %v798
    %v886 = vunpack.c.l.b16 %v799
    %v887 = vunpack.c.l.b16 %v800
    %v888 = vunpack.c.h.b16 %v800
    %v889 = vunpack.c.l.b16 %v801
    %v890 = vpack.c.b16 %v845, %v842
    %v891 = vpack.c.b16 %v846, %v843
    %v892 = vpack.c.b16 %v847, %v844
    %v893 = vpack.c.b16 %v851, %v848
    %v894 = vpack.c.b16 %v852, %v849
    %v895 = vpack.c.b16 %v853, %v850
    %v896 = vpack.c.b16 %v857, %v854
    %v897 = vpack.c.b16 %v858, %v855
    %v898 = vpack.c.b16 %v859, %v856
    %v899 = vpack.c.b16 %v863, %v860
    %v900 = vpack.c.b16 %v864, %v861
    %v901 = vpack.c.b16 %v865, %v862
    %v902 = vpack.c.b16 %v869, %v866
    %v903 = vpack.c.b16 %v870, %v867
    %v904 = vpack.c.b16 %v871, %v868
    %v905 = vpack.c.b16 %v875, %v872
    %v906 = vpack.c.b16 %v876, %v873
    %v907 = vpack.c.b16 %v877, %v874
    %v908 = vpack.c.b16 %v881, %v878
    %v909 = vpack.c.b16 %v882, %v879
    %v910 = vpack.c.b16 %v883, %v880
    %v911 = vpack.c.b16 %v887, %v884
    %v912 = vpack.c.b16 %v888, %v885
    %v913 = vpack.c.b16 %v889, %v886
    %938 = vmatpush.bf16.msra.mxu0 %v911
    %939 = vmatpush.bf16.msra.mxu0 %v908
    %940 = vmatpush.bf16.msra.mxu0 %v905
    %941 = vmatpush.bf16.msra.mxu0 %v902
    %942 = vmatpush.bf16.msra.mxu0 %v899
    %943 = vmatpush.bf16.msra.mxu0 %v896
    %944 = vmatpush.bf16.msra.mxu0 %v893
    %945 = vmatpush.bf16.msra.mxu0 %v890
    %946 = vmatmul.bf16.gmra.mxu0 0
    %v947 = vpop.f32.mrf.mxu0
    %v948 = vadd.f32 %v804, %v947
    %v949 = vpop.f32.mrf.mxu0
    %950 = vdwg.mxu0
    %951 = vmatpush.bf16.msra.mxu0 %v912
    %952 = vmatpush.bf16.msra.mxu0 %v909
    %953 = vmatpush.bf16.msra.mxu0 %v906
    %954 = vmatpush.bf16.msra.mxu0 %v903
    %955 = vmatpush.bf16.msra.mxu0 %v900
    %956 = vmatpush.bf16.msra.mxu0 %v897
    %957 = vmatpush.bf16.msra.mxu0 %v894
    %958 = vmatpush.bf16.msra.mxu0 %v891
    %959 = vmatmul.bf16.gmra.mxu0 0
    %v960 = vpop.f32.mrf.mxu0
    %v961 = vadd.f32 %v805, %v960
    %v962 = vpop.f32.mrf.mxu0
    %963 = vdwg.mxu0
    %964 = vmatpush.bf16.msra.mxu0 %v913
    %965 = vmatpush.bf16.msra.mxu0 %v910
    %966 = vmatpush.bf16.msra.mxu0 %v907
    %967 = vmatpush.bf16.msra.mxu0 %v904
    %968 = vmatpush.bf16.msra.mxu0 %v901
    %969 = vmatpush.bf16.msra.mxu0 %v898
    %970 = vmatpush.bf16.msra.mxu0 %v895
    %971 = vmatpush.bf16.msra.mxu0 %v892
    %972 = vmatmul.bf16.gmra.mxu0 0
    %v973 = vpop.f32.mrf.mxu0
    %v974 = vadd.f32 %v806, %v973
    %v975 = vpop.f32.mrf.mxu0
    %976 = vdwg.mxu0
    %v977 = vadd.f32 %v741, %v948
    %v978 = vxor.u32 %v977, 2147483648
    %v979 = vmul.f32 %v978, 1.442695
    %v980 = vpow.pop %v979
    %v981 = vadd.f32 %v980, 1.0
    %v982 = vrcp.pop %v981
    %v983 = vmul.f32 %v981, %v982
    %v984 = vsub.f32 1.0, %v983
    %v985 = vmul.f32 %v982, %v984
    %v986 = vadd.f32 %v982, %v985
    %vm987 = vweird.f32 %v981
    %vm988 = vweird.f32 %v982
    %vm989 = vmor %vm987, %vm988
    %v990 = vsel %vm989, %v982, %v986
    %v991 = vand.u32 2147483647, %v981
    %vm992 = vcmp.eq.f32.partialorder %v991, 8.507059e+37
    %v993 = vand.u32 %v981, 2147483648
    %v994 = vor.u32 1.1754944e-38, %v993
    %v995 = vsel %vm992, %v994, %v990
    %v996 = vmul.f32 1.0, %v995
    %v997 = vadd.f32 %v754, %v961
    %v998 = vxor.u32 %v997, 2147483648
    %v999 = vmul.f32 %v998, 1.442695
    %v1000 = vpow.pop %v999
    %v1001 = vadd.f32 %v1000, 1.0
    %v1002 = vrcp.pop %v1001
    %v1003 = vmul.f32 %v1001, %v1002
    %v1004 = vsub.f32 1.0, %v1003
    %v1005 = vmul.f32 %v1002, %v1004
    %v1006 = vadd.f32 %v1002, %v1005
    %vm1007 = vweird.f32 %v1001
    %vm1008 = vweird.f32 %v1002
    %vm1009 = vmor %vm1007, %vm1008
    %v1010 = vsel %vm1009, %v1002, %v1006
    %v1011 = vand.u32 2147483647, %v1001
    %vm1012 = vcmp.eq.f32.partialorder %v1011, 8.507059e+37
    %v1013 = vand.u32 %v1001, 2147483648
    %v1014 = vor.u32 1.1754944e-38, %v1013
    %v1015 = vsel %vm1012, %v1014, %v1010
    %v1016 = vmul.f32 1.0, %v1015
    %v1017 = vmul.f32 %v996, %v974
    %v1018 = vadd.f32 %v767, %v1017
    %v1019 = vtanh.pop %v1018
    %v1020 = vsub.f32 1.0, %v1016
    %v1021 = vmul.f32 %v1020, %v1019
    %v1022 = vmul.f32 %v1016, 0.0
    %v1023 = vadd.f32 %v1021, %v1022
    %v1024 = vld [vmem:[#allocation2 + $0x18] sm:$0xff]
    %v1025 = vld [vmem:[#allocation2 + $0x20] sm:$0xff]
    %v1026 = vld [vmem:[#allocation2 + $0x28] sm:$0xff]
    %1027 = vmatpush.bf16.msra.mxu0 %v449
    %1028 = vmatpush.bf16.msra.mxu0 %v446
    %1029 = vmatpush.bf16.msra.mxu0 %v443
    %1030 = vmatpush.bf16.msra.mxu0 %v440
    %1031 = vmatpush.bf16.msra.mxu0 %v437
    %1032 = vmatpush.bf16.msra.mxu0 %v434
    %1033 = vmatpush.bf16.msra.mxu0 %v431
    %1034 = vmatpush.bf16.msra.mxu0 %v428
    %1035 = vmatmul.bf16.gmra.mxu0 %v562
    %v1036 = vpop.f32.mrf.mxu0
    %v1037 = vadd.f32 %v342, %v1036
    %v1038 = vpop.f32.mrf.mxu0
    %1039 = vdwg.mxu0
    %1040 = vmatpush.bf16.msra.mxu0 %v450
    %1041 = vmatpush.bf16.msra.mxu0 %v447
    %1042 = vmatpush.bf16.msra.mxu0 %v444
    %1043 = vmatpush.bf16.msra.mxu0 %v441
    %1044 = vmatpush.bf16.msra.mxu0 %v438
    %1045 = vmatpush.bf16.msra.mxu0 %v435
    %1046 = vmatpush.bf16.msra.mxu0 %v432
    %1047 = vmatpush.bf16.msra.mxu0 %v429
    %1048 = vmatmul.bf16.gmra.mxu0 %v562
    %v1049 = vpop.f32.mrf.mxu0
    %v1050 = vadd.f32 %v343, %v1049
    %v1051 = vpop.f32.mrf.mxu0
    %1052 = vdwg.mxu0
    %1053 = vmatpush.bf16.msra.mxu0 %v451
    %1054 = vmatpush.bf16.msra.mxu0 %v448
    %1055 = vmatpush.bf16.msra.mxu0 %v445
    %1056 = vmatpush.bf16.msra.mxu0 %v442
    %1057 = vmatpush.bf16.msra.mxu0 %v439
    %1058 = vmatpush.bf16.msra.mxu0 %v436
    %1059 = vmatpush.bf16.msra.mxu0 %v433
    %1060 = vmatpush.bf16.msra.mxu0 %v430
    %1061 = vmatmul.bf16.gmra.mxu0 %v562
    %v1062 = vpop.f32.mrf.mxu0
    %v1063 = vadd.f32 %v344, %v1062
    %v1064 = vpop.f32.mrf.mxu0
    %1065 = vdwg.mxu0
    %v1066 = vadd.f32 %v1024, %v1037
    %v1067 = vxor.u32 %v1066, 2147483648
    %v1068 = vmul.f32 %v1067, 1.442695
    %v1069 = vpow.pop %v1068
    %v1070 = vadd.f32 %v1069, 1.0
    %v1071 = vrcp.pop %v1070
    %v1072 = vmul.f32 %v1070, %v1071
    %v1073 = vsub.f32 1.0, %v1072
    %v1074 = vmul.f32 %v1071, %v1073
    %v1075 = vadd.f32 %v1071, %v1074
    %vm1076 = vweird.f32 %v1070
    %vm1077 = vweird.f32 %v1071
    %vm1078 = vmor %vm1076, %vm1077
    %v1079 = vsel %vm1078, %v1071, %v1075
    %v1080 = vand.u32 2147483647, %v1070
    %vm1081 = vcmp.eq.f32.partialorder %v1080, 8.507059e+37
    %v1082 = vand.u32 %v1070, 2147483648
    %v1083 = vor.u32 1.1754944e-38, %v1082
    %v1084 = vsel %vm1081, %v1083, %v1079
    %v1085 = vmul.f32 1.0, %v1084
    %v1086 = vadd.f32 %v1025, %v1050
    %v1087 = vxor.u32 %v1086, 2147483648
    %v1088 = vmul.f32 %v1087, 1.442695
    %v1089 = vpow.pop %v1088
    %v1090 = vadd.f32 %v1089, 1.0
    %v1091 = vrcp.pop %v1090
    %v1092 = vmul.f32 %v1090, %v1091
    %v1093 = vsub.f32 1.0, %v1092
    %v1094 = vmul.f32 %v1091, %v1093
    %v1095 = vadd.f32 %v1091, %v1094
    %vm1096 = vweird.f32 %v1090
    %vm1097 = vweird.f32 %v1091
    %vm1098 = vmor %vm1096, %vm1097
    %v1099 = vsel %vm1098, %v1091, %v1095
    %v1100 = vand.u32 2147483647, %v1090
    %vm1101 = vcmp.eq.f32.partialorder %v1100, 8.507059e+37
    %v1102 = vand.u32 %v1090, 2147483648
    %v1103 = vor.u32 1.1754944e-38, %v1102
    %v1104 = vsel %vm1101, %v1103, %v1099
    %v1105 = vmul.f32 1.0, %v1104
    %v1106 = vmul.f32 %v1085, %v1063
    %v1107 = vadd.f32 %v1026, %v1106
    %v1108 = vtanh.pop %v1107
    %v1109 = vsub.f32 1.0, %v1105
    %v1110 = vmul.f32 %v1109, %v1108
    %v1111 = vmul.f32 %v1105, %v561
    %v1112 = vadd.f32 %v1110, %v1111
    %v1113 = vpack.c.bf16 %v1112, %v1112
    %1114 = vmatpush.bf16.msra.mxu0 %v704
    %1115 = vmatpush.bf16.msra.mxu0 %v701
    %1116 = vmatpush.bf16.msra.mxu0 %v698
    %1117 = vmatpush.bf16.msra.mxu0 %v695
    %1118 = vmatpush.bf16.msra.mxu0 %v692
    %1119 = vmatpush.bf16.msra.mxu0 %v689
    %1120 = vmatpush.bf16.msra.mxu0 %v686
    %1121 = vmatpush.bf16.msra.mxu0 %v683
    %1122 = vmatmul.bf16.gmra.mxu0 %v1113
    %v1123 = vpop.f32.mrf.mxu0
    %v1124 = vadd.f32 %v597, %v1123
    %v1125 = vpop.f32.mrf.mxu0
    %1126 = vdwg.mxu0
    %1127 = vmatpush.bf16.msra.mxu0 %v705
    %1128 = vmatpush.bf16.msra.mxu0 %v702
    %1129 = vmatpush.bf16.msra.mxu0 %v699
    %1130 = vmatpush.bf16.msra.mxu0 %v696
    %1131 = vmatpush.bf16.msra.mxu0 %v693
    %1132 = vmatpush.bf16.msra.mxu0 %v690
    %1133 = vmatpush.bf16.msra.mxu0 %v687
    %1134 = vmatpush.bf16.msra.mxu0 %v684
    %1135 = vmatmul.bf16.gmra.mxu0 %v1113
    %v1136 = vpop.f32.mrf.mxu0
    %v1137 = vadd.f32 %v598, %v1136
    %v1138 = vpop.f32.mrf.mxu0
    %1139 = vdwg.mxu0
    %1140 = vmatpush.bf16.msra.mxu0 %v706
    %1141 = vmatpush.bf16.msra.mxu0 %v703
    %1142 = vmatpush.bf16.msra.mxu0 %v700
    %1143 = vmatpush.bf16.msra.mxu0 %v697
    %1144 = vmatpush.bf16.msra.mxu0 %v694
    %1145 = vmatpush.bf16.msra.mxu0 %v691
    %1146 = vmatpush.bf16.msra.mxu0 %v688
    %1147 = vmatpush.bf16.msra.mxu0 %v685
    %1148 = vmatmul.bf16.gmra.mxu0 %v1113
    %v1149 = vpop.f32.mrf.mxu0
    %v1150 = vadd.f32 %v599, %v1149
    %v1151 = vpop.f32.mrf.mxu0
    %1152 = vdwg.mxu0
    %v1153 = vpack.c.bf16 %v1023, %v1023
    %1154 = vmatpush.bf16.msra.mxu0 %v911
    %1155 = vmatpush.bf16.msra.mxu0 %v908
    %1156 = vmatpush.bf16.msra.mxu0 %v905
    %1157 = vmatpush.bf16.msra.mxu0 %v902
    %1158 = vmatpush.bf16.msra.mxu0 %v899
    %1159 = vmatpush.bf16.msra.mxu0 %v896
    %1160 = vmatpush.bf16.msra.mxu0 %v893
    %1161 = vmatpush.bf16.msra.mxu0 %v890
    %1162 = vmatmul.bf16.gmra.mxu0 %v1153
    %v1163 = vpop.f32.mrf.mxu0
    %v1164 = vadd.f32 %v804, %v1163
    %v1165 = vpop.f32.mrf.mxu0
    %1166 = vdwg.mxu0
    %1167 = vmatpush.bf16.msra.mxu0 %v912
    %1168 = vmatpush.bf16.msra.mxu0 %v909
    %1169 = vmatpush.bf16.msra.mxu0 %v906
    %1170 = vmatpush.bf16.msra.mxu0 %v903
    %1171 = vmatpush.bf16.msra.mxu0 %v900
    %1172 = vmatpush.bf16.msra.mxu0 %v897
    %1173 = vmatpush.bf16.msra.mxu0 %v894
    %1174 = vmatpush.bf16.msra.mxu0 %v891
    %1175 = vmatmul.bf16.gmra.mxu0 %v1153
    %v1176 = vpop.f32.mrf.mxu0
    %v1177 = vadd.f32 %v805, %v1176
    %v1178 = vpop.f32.mrf.mxu0
    %1179 = vdwg.mxu0
    %1180 = vmatpush.bf16.msra.mxu0 %v913
    %1181 = vmatpush.bf16.msra.mxu0 %v910
    %1182 = vmatpush.bf16.msra.mxu0 %v907
    %1183 = vmatpush.bf16.msra.mxu0 %v904
    %1184 = vmatpush.bf16.msra.mxu0 %v901
    %1185 = vmatpush.bf16.msra.mxu0 %v898
    %1186 = vmatpush.bf16.msra.mxu0 %v895
    %1187 = vmatpush.bf16.msra.mxu0 %v892
    %1188 = vmatmul.bf16.gmra.mxu0 %v1153
    %v1189 = vpop.f32.mrf.mxu0
    %v1190 = vadd.f32 %v806, %v1189
    %v1191 = vpop.f32.mrf.mxu0
    %1192 = vdwg.mxu0
    %v1193 = vadd.f32 %v1124, %v1164
    %v1194 = vxor.u32 %v1193, 2147483648
    %v1195 = vmul.f32 %v1194, 1.442695
    %v1196 = vpow.pop %v1195
    %v1197 = vadd.f32 %v1196, 1.0
    %v1198 = vrcp.pop %v1197
    %v1199 = vmul.f32 %v1197, %v1198
    %v1200 = vsub.f32 1.0, %v1199
    %v1201 = vmul.f32 %v1198, %v1200
    %v1202 = vadd.f32 %v1198, %v1201
    %vm1203 = vweird.f32 %v1197
    %vm1204 = vweird.f32 %v1198
    %vm1205 = vmor %vm1203, %vm1204
    %v1206 = vsel %vm1205, %v1198, %v1202
    %v1207 = vand.u32 2147483647, %v1197
    %vm1208 = vcmp.eq.f32.partialorder %v1207, 8.507059e+37
    %v1209 = vand.u32 %v1197, 2147483648
    %v1210 = vor.u32 1.1754944e-38, %v1209
    %v1211 = vsel %vm1208, %v1210, %v1206
    %v1212 = vmul.f32 1.0, %v1211
    %v1213 = vadd.f32 %v1137, %v1177
    %v1214 = vxor.u32 %v1213, 2147483648
    %v1215 = vmul.f32 %v1214, 1.442695
    %v1216 = vpow.pop %v1215
    %v1217 = vadd.f32 %v1216, 1.0
    %v1218 = vrcp.pop %v1217
    %v1219 = vmul.f32 %v1217, %v1218
    %v1220 = vsub.f32 1.0, %v1219
    %v1221 = vmul.f32 %v1218, %v1220
    %v1222 = vadd.f32 %v1218, %v1221
    %vm1223 = vweird.f32 %v1217
    %vm1224 = vweird.f32 %v1218
    %vm1225 = vmor %vm1223, %vm1224
    %v1226 = vsel %vm1225, %v1218, %v1222
    %v1227 = vand.u32 2147483647, %v1217
    %vm1228 = vcmp.eq.f32.partialorder %v1227, 8.507059e+37
    %v1229 = vand.u32 %v1217, 2147483648
    %v1230 = vor.u32 1.1754944e-38, %v1229
    %v1231 = vsel %vm1228, %v1230, %v1226
    %v1232 = vmul.f32 1.0, %v1231
    %v1233 = vmul.f32 %v1212, %v1190
    %v1234 = vadd.f32 %v1150, %v1233
    %v1235 = vtanh.pop %v1234
    %v1236 = vsub.f32 1.0, %v1232
    %v1237 = vmul.f32 %v1236, %v1235
    %v1238 = vmul.f32 %v1232, %v1023
    %v1239 = vadd.f32 %v1237, %v1238
    %v1240 = vld [vmem:[#allocation2 + $0x30] sm:$0xff]
    %v1241 = vld [vmem:[#allocation2 + $0x38] sm:$0xff]
    %v1242 = vld [vmem:[#allocation2 + $0x40] sm:$0xff]
    %1243 = vmatpush.bf16.msra.mxu0 %v449
    %1244 = vmatpush.bf16.msra.mxu0 %v446
    %1245 = vmatpush.bf16.msra.mxu0 %v443
    %1246 = vmatpush.bf16.msra.mxu0 %v440
    %1247 = vmatpush.bf16.msra.mxu0 %v437
    %1248 = vmatpush.bf16.msra.mxu0 %v434
    %1249 = vmatpush.bf16.msra.mxu0 %v431
    %1250 = vmatpush.bf16.msra.mxu0 %v428
    %1251 = vmatmul.bf16.gmra.mxu0 %v1113
    %v1252 = vpop.f32.mrf.mxu0
    %v1253 = vadd.f32 %v342, %v1252
    %v1254 = vpop.f32.mrf.mxu0
    %1255 = vdwg.mxu0
    %1256 = vmatpush.bf16.msra.mxu0 %v450
    %1257 = vmatpush.bf16.msra.mxu0 %v447
    %1258 = vmatpush.bf16.msra.mxu0 %v444
    %1259 = vmatpush.bf16.msra.mxu0 %v441
    %1260 = vmatpush.bf16.msra.mxu0 %v438
    %1261 = vmatpush.bf16.msra.mxu0 %v435
    %1262 = vmatpush.bf16.msra.mxu0 %v432
    %1263 = vmatpush.bf16.msra.mxu0 %v429
    %1264 = vmatmul.bf16.gmra.mxu0 %v1113
    %v1265 = vpop.f32.mrf.mxu0
    %v1266 = vadd.f32 %v343, %v1265
    %v1267 = vpop.f32.mrf.mxu0
    %1268 = vdwg.mxu0
    %1269 = vmatpush.bf16.msra.mxu0 %v451
    %1270 = vmatpush.bf16.msra.mxu0 %v448
    %1271 = vmatpush.bf16.msra.mxu0 %v445
    %1272 = vmatpush.bf16.msra.mxu0 %v442
    %1273 = vmatpush.bf16.msra.mxu0 %v439
    %1274 = vmatpush.bf16.msra.mxu0 %v436
    %1275 = vmatpush.bf16.msra.mxu0 %v433
    %1276 = vmatpush.bf16.msra.mxu0 %v430
    %1277 = vmatmul.bf16.gmra.mxu0 %v1113
    %v1278 = vpop.f32.mrf.mxu0
    %v1279 = vadd.f32 %v344, %v1278
    %v1280 = vpop.f32.mrf.mxu0
    %1281 = vdwg.mxu0
    %v1282 = vadd.f32 %v1240, %v1253
    %v1283 = vxor.u32 %v1282, 2147483648
    %v1284 = vmul.f32 %v1283, 1.442695
    %v1285 = vpow.pop %v1284
    %v1286 = vadd.f32 %v1285, 1.0
    %v1287 = vrcp.pop %v1286
    %v1288 = vmul.f32 %v1286, %v1287
    %v1289 = vsub.f32 1.0, %v1288
    %v1290 = vmul.f32 %v1287, %v1289
    %v1291 = vadd.f32 %v1287, %v1290
    %vm1292 = vweird.f32 %v1286
    %vm1293 = vweird.f32 %v1287
    %vm1294 = vmor %vm1292, %vm1293
    %v1295 = vsel %vm1294, %v1287, %v1291
    %v1296 = vand.u32 2147483647, %v1286
    %vm1297 = vcmp.eq.f32.partialorder %v1296, 8.507059e+37
    %v1298 = vand.u32 %v1286, 2147483648
    %v1299 = vor.u32 1.1754944e-38, %v1298
    %v1300 = vsel %vm1297, %v1299, %v1295
    %v1301 = vmul.f32 1.0, %v1300
    %v1302 = vadd.f32 %v1241, %v1266
    %v1303 = vxor.u32 %v1302, 2147483648
    %v1304 = vmul.f32 %v1303, 1.442695
    %v1305 = vpow.pop %v1304
    %v1306 = vadd.f32 %v1305, 1.0
    %v1307 = vrcp.pop %v1306
    %v1308 = vmul.f32 %v1306, %v1307
    %v1309 = vsub.f32 1.0, %v1308
    %v1310 = vmul.f32 %v1307, %v1309
    %v1311 = vadd.f32 %v1307, %v1310
    %vm1312 = vweird.f32 %v1306
    %vm1313 = vweird.f32 %v1307
    %vm1314 = vmor %vm1312, %vm1313
    %v1315 = vsel %vm1314, %v1307, %v1311
    %v1316 = vand.u32 2147483647, %v1306
    %vm1317 = vcmp.eq.f32.partialorder %v1316, 8.507059e+37
    %v1318 = vand.u32 %v1306, 2147483648
    %v1319 = vor.u32 1.1754944e-38, %v1318
    %v1320 = vsel %vm1317, %v1319, %v1315
    %v1321 = vmul.f32 1.0, %v1320
    %v1322 = vmul.f32 %v1301, %v1279
    %v1323 = vadd.f32 %v1242, %v1322
    %v1324 = vtanh.pop %v1323
    %v1325 = vsub.f32 1.0, %v1321
    %v1326 = vmul.f32 %v1325, %v1324
    %v1327 = vmul.f32 %v1321, %v1112
    %v1328 = vadd.f32 %v1326, %v1327
    %v1329 = vpack.c.bf16 %v1328, %v1328
    %1330 = vmatpush.bf16.msra.mxu0 %v704
    %1331 = vmatpush.bf16.msra.mxu0 %v701
    %1332 = vmatpush.bf16.msra.mxu0 %v698
    %1333 = vmatpush.bf16.msra.mxu0 %v695
    %1334 = vmatpush.bf16.msra.mxu0 %v692
    %1335 = vmatpush.bf16.msra.mxu0 %v689
    %1336 = vmatpush.bf16.msra.mxu0 %v686
    %1337 = vmatpush.bf16.msra.mxu0 %v683
    %1338 = vmatmul.bf16.gmra.mxu0 %v1329
    %v1339 = vpop.f32.mrf.mxu0
    %v1340 = vadd.f32 %v597, %v1339
    %v1341 = vpop.f32.mrf.mxu0
    %1342 = vdwg.mxu0
    %1343 = vmatpush.bf16.msra.mxu0 %v705
    %1344 = vmatpush.bf16.msra.mxu0 %v702
    %1345 = vmatpush.bf16.msra.mxu0 %v699
    %1346 = vmatpush.bf16.msra.mxu0 %v696
    %1347 = vmatpush.bf16.msra.mxu0 %v693
    %1348 = vmatpush.bf16.msra.mxu0 %v690
    %1349 = vmatpush.bf16.msra.mxu0 %v687
    %1350 = vmatpush.bf16.msra.mxu0 %v684
    %1351 = vmatmul.bf16.gmra.mxu0 %v1329
    %v1352 = vpop.f32.mrf.mxu0
    %v1353 = vadd.f32 %v598, %v1352
    %v1354 = vpop.f32.mrf.mxu0
    %1355 = vdwg.mxu0
    %1356 = vmatpush.bf16.msra.mxu0 %v706
    %1357 = vmatpush.bf16.msra.mxu0 %v703
    %1358 = vmatpush.bf16.msra.mxu0 %v700
    %1359 = vmatpush.bf16.msra.mxu0 %v697
    %1360 = vmatpush.bf16.msra.mxu0 %v694
    %1361 = vmatpush.bf16.msra.mxu0 %v691
    %1362 = vmatpush.bf16.msra.mxu0 %v688
    %1363 = vmatpush.bf16.msra.mxu0 %v685
    %1364 = vmatmul.bf16.gmra.mxu0 %v1329
    %v1365 = vpop.f32.mrf.mxu0
    %v1366 = vadd.f32 %v599, %v1365
    %v1367 = vpop.f32.mrf.mxu0
    %1368 = vdwg.mxu0
    %v1369 = vpack.c.bf16 %v1239, %v1239
    %1370 = vmatpush.bf16.msra.mxu0 %v911
    %1371 = vmatpush.bf16.msra.mxu0 %v908
    %1372 = vmatpush.bf16.msra.mxu0 %v905
    %1373 = vmatpush.bf16.msra.mxu0 %v902
    %1374 = vmatpush.bf16.msra.mxu0 %v899
    %1375 = vmatpush.bf16.msra.mxu0 %v896
    %1376 = vmatpush.bf16.msra.mxu0 %v893
    %1377 = vmatpush.bf16.msra.mxu0 %v890
    %1378 = vmatmul.bf16.gmra.mxu0 %v1369
    %v1379 = vpop.f32.mrf.mxu0
    %v1380 = vadd.f32 %v804, %v1379
    %v1381 = vpop.f32.mrf.mxu0
    %1382 = vdwg.mxu0
    %1383 = vmatpush.bf16.msra.mxu0 %v912
    %1384 = vmatpush.bf16.msra.mxu0 %v909
    %1385 = vmatpush.bf16.msra.mxu0 %v906
    %1386 = vmatpush.bf16.msra.mxu0 %v903
    %1387 = vmatpush.bf16.msra.mxu0 %v900
    %1388 = vmatpush.bf16.msra.mxu0 %v897
    %1389 = vmatpush.bf16.msra.mxu0 %v894
    %1390 = vmatpush.bf16.msra.mxu0 %v891
    %1391 = vmatmul.bf16.gmra.mxu0 %v1369
    %v1392 = vpop.f32.mrf.mxu0
    %v1393 = vadd.f32 %v805, %v1392
    %v1394 = vpop.f32.mrf.mxu0
    %1395 = vdwg.mxu0
    %1396 = vmatpush.bf16.msra.mxu0 %v913
    %1397 = vmatpush.bf16.msra.mxu0 %v910
    %1398 = vmatpush.bf16.msra.mxu0 %v907
    %1399 = vmatpush.bf16.msra.mxu0 %v904
    %1400 = vmatpush.bf16.msra.mxu0 %v901
    %1401 = vmatpush.bf16.msra.mxu0 %v898
    %1402 = vmatpush.bf16.msra.mxu0 %v895
    %1403 = vmatpush.bf16.msra.mxu0 %v892
    %1404 = vmatmul.bf16.gmra.mxu0 %v1369
    %v1405 = vpop.f32.mrf.mxu0
    %v1406 = vadd.f32 %v806, %v1405
    %v1407 = vpop.f32.mrf.mxu0
    %1408 = vdwg.mxu0
    %v1409 = vadd.f32 %v1340, %v1380
    %v1410 = vxor.u32 %v1409, 2147483648
    %v1411 = vmul.f32 %v1410, 1.442695
    %v1412 = vpow.pop %v1411
    %v1413 = vadd.f32 %v1412, 1.0
    %v1414 = vrcp.pop %v1413
    %v1415 = vmul.f32 %v1413, %v1414
    %v1416 = vsub.f32 1.0, %v1415
    %v1417 = vmul.f32 %v1414, %v1416
    %v1418 = vadd.f32 %v1414, %v1417
    %vm1419 = vweird.f32 %v1413
    %vm1420 = vweird.f32 %v1414
    %vm1421 = vmor %vm1419, %vm1420
    %v1422 = vsel %vm1421, %v1414, %v1418
    %v1423 = vand.u32 2147483647, %v1413
    %vm1424 = vcmp.eq.f32.partialorder %v1423, 8.507059e+37
    %v1425 = vand.u32 %v1413, 2147483648
    %v1426 = vor.u32 1.1754944e-38, %v1425
    %v1427 = vsel %vm1424, %v1426, %v1422
    %v1428 = vmul.f32 1.0, %v1427
    %v1429 = vadd.f32 %v1353, %v1393
    %v1430 = vxor.u32 %v1429, 2147483648
    %v1431 = vmul.f32 %v1430, 1.442695
    %v1432 = vpow.pop %v1431
    %v1433 = vadd.f32 %v1432, 1.0
    %v1434 = vrcp.pop %v1433
    %v1435 = vmul.f32 %v1433, %v1434
    %v1436 = vsub.f32 1.0, %v1435
    %v1437 = vmul.f32 %v1434, %v1436
    %v1438 = vadd.f32 %v1434, %v1437
    %vm1439 = vweird.f32 %v1433
    %vm1440 = vweird.f32 %v1434
    %vm1441 = vmor %vm1439, %vm1440
    %v1442 = vsel %vm1441, %v1434, %v1438
    %v1443 = vand.u32 2147483647, %v1433
    %vm1444 = vcmp.eq.f32.partialorder %v1443, 8.507059e+37
    %v1445 = vand.u32 %v1433, 2147483648
    %v1446 = vor.u32 1.1754944e-38, %v1445
    %v1447 = vsel %vm1444, %v1446, %v1442
    %v1448 = vmul.f32 1.0, %v1447
    %v1449 = vmul.f32 %v1428, %v1406
    %v1450 = vadd.f32 %v1366, %v1449
    %v1451 = vtanh.pop %v1450
    %v1452 = vsub.f32 1.0, %v1448
    %v1453 = vmul.f32 %v1452, %v1451
    %v1454 = vmul.f32 %v1448, %v1239
    %v1455 = vadd.f32 %v1453, %v1454
    %v1456 = vld [vmem:[#allocation2 + $0x48] sm:$0xff]
    %v1457 = vld [vmem:[#allocation2 + $0x50] sm:$0xff]
    %v1458 = vld [vmem:[#allocation2 + $0x58] sm:$0xff]
    %1459 = vmatpush.bf16.msra.mxu0 %v449
    %1460 = vmatpush.bf16.msra.mxu0 %v446
    %1461 = vmatpush.bf16.msra.mxu0 %v443
    %1462 = vmatpush.bf16.msra.mxu0 %v440
    %1463 = vmatpush.bf16.msra.mxu0 %v437
    %1464 = vmatpush.bf16.msra.mxu0 %v434
    %1465 = vmatpush.bf16.msra.mxu0 %v431
    %1466 = vmatpush.bf16.msra.mxu0 %v428
    %1467 = vmatmul.bf16.gmra.mxu0 %v1329
    %v1468 = vpop.f32.mrf.mxu0
    %v1469 = vadd.f32 %v342, %v1468
    %v1470 = vpop.f32.mrf.mxu0
    %1471 = vdwg.mxu0
    %1472 = vmatpush.bf16.msra.mxu0 %v450
    %1473 = vmatpush.bf16.msra.mxu0 %v447
    %1474 = vmatpush.bf16.msra.mxu0 %v444
    %1475 = vmatpush.bf16.msra.mxu0 %v441
    %1476 = vmatpush.bf16.msra.mxu0 %v438
    %1477 = vmatpush.bf16.msra.mxu0 %v435
    %1478 = vmatpush.bf16.msra.mxu0 %v432
    %1479 = vmatpush.bf16.msra.mxu0 %v429
    %1480 = vmatmul.bf16.gmra.mxu0 %v1329
    %v1481 = vpop.f32.mrf.mxu0
    %v1482 = vadd.f32 %v343, %v1481
    %v1483 = vpop.f32.mrf.mxu0
    %1484 = vdwg.mxu0
    %1485 = vmatpush.bf16.msra.mxu0 %v451
    %1486 = vmatpush.bf16.msra.mxu0 %v448
    %1487 = vmatpush.bf16.msra.mxu0 %v445
    %1488 = vmatpush.bf16.msra.mxu0 %v442
    %1489 = vmatpush.bf16.msra.mxu0 %v439
    %1490 = vmatpush.bf16.msra.mxu0 %v436
    %1491 = vmatpush.bf16.msra.mxu0 %v433
    %1492 = vmatpush.bf16.msra.mxu0 %v430
    %1493 = vmatmul.bf16.gmra.mxu0 %v1329
    %v1494 = vpop.f32.mrf.mxu0
    %v1495 = vadd.f32 %v344, %v1494
    %v1496 = vpop.f32.mrf.mxu0
    %1497 = vdwg.mxu0
    %v1498 = vadd.f32 %v1456, %v1469
    %v1499 = vxor.u32 %v1498, 2147483648
    %v1500 = vmul.f32 %v1499, 1.442695
    %v1501 = vpow.pop %v1500
    %v1502 = vadd.f32 %v1501, 1.0
    %v1503 = vrcp.pop %v1502
    %v1504 = vmul.f32 %v1502, %v1503
    %v1505 = vsub.f32 1.0, %v1504
    %v1506 = vmul.f32 %v1503, %v1505
    %v1507 = vadd.f32 %v1503, %v1506
    %vm1508 = vweird.f32 %v1502
    %vm1509 = vweird.f32 %v1503
    %vm1510 = vmor %vm1508, %vm1509
    %v1511 = vsel %vm1510, %v1503, %v1507
    %v1512 = vand.u32 2147483647, %v1502
    %vm1513 = vcmp.eq.f32.partialorder %v1512, 8.507059e+37
    %v1514 = vand.u32 %v1502, 2147483648
    %v1515 = vor.u32 1.1754944e-38, %v1514
    %v1516 = vsel %vm1513, %v1515, %v1511
    %v1517 = vmul.f32 1.0, %v1516
    %v1518 = vadd.f32 %v1457, %v1482
    %v1519 = vxor.u32 %v1518, 2147483648
    %v1520 = vmul.f32 %v1519, 1.442695
    %v1521 = vpow.pop %v1520
    %v1522 = vadd.f32 %v1521, 1.0
    %v1523 = vrcp.pop %v1522
    %v1524 = vmul.f32 %v1522, %v1523
    %v1525 = vsub.f32 1.0, %v1524
    %v1526 = vmul.f32 %v1523, %v1525
    %v1527 = vadd.f32 %v1523, %v1526
    %vm1528 = vweird.f32 %v1522
    %vm1529 = vweird.f32 %v1523
    %vm1530 = vmor %vm1528, %vm1529
    %v1531 = vsel %vm1530, %v1523, %v1527
    %v1532 = vand.u32 2147483647, %v1522
    %vm1533 = vcmp.eq.f32.partialorder %v1532, 8.507059e+37
    %v1534 = vand.u32 %v1522, 2147483648
    %v1535 = vor.u32 1.1754944e-38, %v1534
    %v1536 = vsel %vm1533, %v1535, %v1531
    %v1537 = vmul.f32 1.0, %v1536
    %v1538 = vmul.f32 %v1517, %v1495
    %v1539 = vadd.f32 %v1458, %v1538
    %v1540 = vtanh.pop %v1539
    %v1541 = vsub.f32 1.0, %v1537
    %v1542 = vmul.f32 %v1541, %v1540
    %v1543 = vmul.f32 %v1537, %v1328
    %v1544 = vadd.f32 %v1542, %v1543
    %v1545 = vpack.c.bf16 %v1544, %v1544
    %1546 = vmatpush.bf16.msra.mxu0 %v704
    %1547 = vmatpush.bf16.msra.mxu0 %v701
    %1548 = vmatpush.bf16.msra.mxu0 %v698
    %1549 = vmatpush.bf16.msra.mxu0 %v695
    %1550 = vmatpush.bf16.msra.mxu0 %v692
    %1551 = vmatpush.bf16.msra.mxu0 %v689
    %1552 = vmatpush.bf16.msra.mxu0 %v686
    %1553 = vmatpush.bf16.msra.mxu0 %v683
    %1554 = vmatmul.bf16.gmra.mxu0 %v1545
    %v1555 = vpop.f32.mrf.mxu0
    %v1556 = vadd.f32 %v597, %v1555
    %v1557 = vpop.f32.mrf.mxu0
    %1558 = vdwg.mxu0
    %1559 = vmatpush.bf16.msra.mxu0 %v705
    %1560 = vmatpush.bf16.msra.mxu0 %v702
    %1561 = vmatpush.bf16.msra.mxu0 %v699
    %1562 = vmatpush.bf16.msra.mxu0 %v696
    %1563 = vmatpush.bf16.msra.mxu0 %v693
    %1564 = vmatpush.bf16.msra.mxu0 %v690
    %1565 = vmatpush.bf16.msra.mxu0 %v687
    %1566 = vmatpush.bf16.msra.mxu0 %v684
    %1567 = vmatmul.bf16.gmra.mxu0 %v1545
    %v1568 = vpop.f32.mrf.mxu0
    %v1569 = vadd.f32 %v598, %v1568
    %v1570 = vpop.f32.mrf.mxu0
    %1571 = vdwg.mxu0
    %1572 = vmatpush.bf16.msra.mxu0 %v706
    %1573 = vmatpush.bf16.msra.mxu0 %v703
    %1574 = vmatpush.bf16.msra.mxu0 %v700
    %1575 = vmatpush.bf16.msra.mxu0 %v697
    %1576 = vmatpush.bf16.msra.mxu0 %v694
    %1577 = vmatpush.bf16.msra.mxu0 %v691
    %1578 = vmatpush.bf16.msra.mxu0 %v688
    %1579 = vmatpush.bf16.msra.mxu0 %v685
    %1580 = vmatmul.bf16.gmra.mxu0 %v1545
    %v1581 = vpop.f32.mrf.mxu0
    %v1582 = vadd.f32 %v599, %v1581
    %v1583 = vpop.f32.mrf.mxu0
    %1584 = vdwg.mxu0
    %v1585 = vpack.c.bf16 %v1455, %v1455
    %1586 = vmatpush.bf16.msra.mxu0 %v911
    %1587 = vmatpush.bf16.msra.mxu0 %v908
    %1588 = vmatpush.bf16.msra.mxu0 %v905
    %1589 = vmatpush.bf16.msra.mxu0 %v902
    %1590 = vmatpush.bf16.msra.mxu0 %v899
    %1591 = vmatpush.bf16.msra.mxu0 %v896
    %1592 = vmatpush.bf16.msra.mxu0 %v893
    %1593 = vmatpush.bf16.msra.mxu0 %v890
    %1594 = vmatmul.bf16.gmra.mxu0 %v1585
    %v1595 = vpop.f32.mrf.mxu0
    %v1596 = vadd.f32 %v804, %v1595
    %v1597 = vpop.f32.mrf.mxu0
    %1598 = vdwg.mxu0
    %1599 = vmatpush.bf16.msra.mxu0 %v912
    %1600 = vmatpush.bf16.msra.mxu0 %v909
    %1601 = vmatpush.bf16.msra.mxu0 %v906
    %1602 = vmatpush.bf16.msra.mxu0 %v903
    %1603 = vmatpush.bf16.msra.mxu0 %v900
    %1604 = vmatpush.bf16.msra.mxu0 %v897
    %1605 = vmatpush.bf16.msra.mxu0 %v894
    %1606 = vmatpush.bf16.msra.mxu0 %v891
    %1607 = vmatmul.bf16.gmra.mxu0 %v1585
    %v1608 = vpop.f32.mrf.mxu0
    %v1609 = vadd.f32 %v805, %v1608
    %v1610 = vpop.f32.mrf.mxu0
    %1611 = vdwg.mxu0
    %1612 = vmatpush.bf16.msra.mxu0 %v913
    %1613 = vmatpush.bf16.msra.mxu0 %v910
    %1614 = vmatpush.bf16.msra.mxu0 %v907
    %1615 = vmatpush.bf16.msra.mxu0 %v904
    %1616 = vmatpush.bf16.msra.mxu0 %v901
    %1617 = vmatpush.bf16.msra.mxu0 %v898
    %1618 = vmatpush.bf16.msra.mxu0 %v895
    %1619 = vmatpush.bf16.msra.mxu0 %v892
    %1620 = vmatmul.bf16.gmra.mxu0 %v1585
    %v1621 = vpop.f32.mrf.mxu0
    %v1622 = vadd.f32 %v806, %v1621
    %v1623 = vpop.f32.mrf.mxu0
    %1624 = vdwg.mxu0
    %v1625 = vadd.f32 %v1556, %v1596
    %v1626 = vxor.u32 %v1625, 2147483648
    %v1627 = vmul.f32 %v1626, 1.442695
    %v1628 = vpow.pop %v1627
    %v1629 = vadd.f32 %v1628, 1.0
    %v1630 = vrcp.pop %v1629
    %v1631 = vmul.f32 %v1629, %v1630
    %v1632 = vsub.f32 1.0, %v1631
    %v1633 = vmul.f32 %v1630, %v1632
    %v1634 = vadd.f32 %v1630, %v1633
    %vm1635 = vweird.f32 %v1629
    %vm1636 = vweird.f32 %v1630
    %vm1637 = vmor %vm1635, %vm1636
    %v1638 = vsel %vm1637, %v1630, %v1634
    %v1639 = vand.u32 2147483647, %v1629
    %vm1640 = vcmp.eq.f32.partialorder %v1639, 8.507059e+37
    %v1641 = vand.u32 %v1629, 2147483648
    %v1642 = vor.u32 1.1754944e-38, %v1641
    %v1643 = vsel %vm1640, %v1642, %v1638
    %v1644 = vmul.f32 1.0, %v1643
    %v1645 = vadd.f32 %v1569, %v1609
    %v1646 = vxor.u32 %v1645, 2147483648
    %v1647 = vmul.f32 %v1646, 1.442695
    %v1648 = vpow.pop %v1647
    %v1649 = vadd.f32 %v1648, 1.0
    %v1650 = vrcp.pop %v1649
    %v1651 = vmul.f32 %v1649, %v1650
    %v1652 = vsub.f32 1.0, %v1651
    %v1653 = vmul.f32 %v1650, %v1652
    %v1654 = vadd.f32 %v1650, %v1653
    %vm1655 = vweird.f32 %v1649
    %vm1656 = vweird.f32 %v1650
    %vm1657 = vmor %vm1655, %vm1656
    %v1658 = vsel %vm1657, %v1650, %v1654
    %v1659 = vand.u32 2147483647, %v1649
    %vm1660 = vcmp.eq.f32.partialorder %v1659, 8.507059e+37
    %v1661 = vand.u32 %v1649, 2147483648
    %v1662 = vor.u32 1.1754944e-38, %v1661
    %v1663 = vsel %vm1660, %v1662, %v1658
    %v1664 = vmul.f32 1.0, %v1663
    %v1665 = vmul.f32 %v1644, %v1622
    %v1666 = vadd.f32 %v1582, %v1665
    %v1667 = vtanh.pop %v1666
    %v1668 = vsub.f32 1.0, %v1664
    %v1669 = vmul.f32 %v1668, %v1667
    %v1670 = vmul.f32 %v1664, %v1455
    %v1671 = vadd.f32 %v1669, %v1670
    %v1672 = vld [vmem:[#allocation2 + $0x60] sm:$0xff]
    %v1673 = vld [vmem:[#allocation2 + $0x68] sm:$0xff]
    %v1674 = vld [vmem:[#allocation2 + $0x70] sm:$0xff]
    %1675 = vmatpush.bf16.msra.mxu0 %v449
    %1676 = vmatpush.bf16.msra.mxu0 %v446
    %1677 = vmatpush.bf16.msra.mxu0 %v443
    %1678 = vmatpush.bf16.msra.mxu0 %v440
    %1679 = vmatpush.bf16.msra.mxu0 %v437
    %1680 = vmatpush.bf16.msra.mxu0 %v434
    %1681 = vmatpush.bf16.msra.mxu0 %v431
    %1682 = vmatpush.bf16.msra.mxu0 %v428
    %1683 = vmatmul.bf16.gmra.mxu0 %v1545
    %v1684 = vpop.f32.mrf.mxu0
    %v1685 = vadd.f32 %v342, %v1684
    %v1686 = vpop.f32.mrf.mxu0
    %1687 = vdwg.mxu0
    %1688 = vmatpush.bf16.msra.mxu0 %v450
    %1689 = vmatpush.bf16.msra.mxu0 %v447
    %1690 = vmatpush.bf16.msra.mxu0 %v444
    %1691 = vmatpush.bf16.msra.mxu0 %v441
    %1692 = vmatpush.bf16.msra.mxu0 %v438
    %1693 = vmatpush.bf16.msra.mxu0 %v435
    %1694 = vmatpush.bf16.msra.mxu0 %v432
    %1695 = vmatpush.bf16.msra.mxu0 %v429
    %1696 = vmatmul.bf16.gmra.mxu0 %v1545
    %v1697 = vpop.f32.mrf.mxu0
    %v1698 = vadd.f32 %v343, %v1697
    %v1699 = vpop.f32.mrf.mxu0
    %1700 = vdwg.mxu0
    %1701 = vmatpush.bf16.msra.mxu0 %v451
    %1702 = vmatpush.bf16.msra.mxu0 %v448
    %1703 = vmatpush.bf16.msra.mxu0 %v445
    %1704 = vmatpush.bf16.msra.mxu0 %v442
    %1705 = vmatpush.bf16.msra.mxu0 %v439
    %1706 = vmatpush.bf16.msra.mxu0 %v436
    %1707 = vmatpush.bf16.msra.mxu0 %v433
    %1708 = vmatpush.bf16.msra.mxu0 %v430
    %1709 = vmatmul.bf16.gmra.mxu0 %v1545
    %v1710 = vpop.f32.mrf.mxu0
    %v1711 = vadd.f32 %v344, %v1710
    %v1712 = vpop.f32.mrf.mxu0
    %1713 = vdwg.mxu0
    %v1714 = vadd.f32 %v1672, %v1685
    %v1715 = vxor.u32 %v1714, 2147483648
    %v1716 = vmul.f32 %v1715, 1.442695
    %v1717 = vpow.pop %v1716
    %v1718 = vadd.f32 %v1717, 1.0
    %v1719 = vrcp.pop %v1718
    %v1720 = vmul.f32 %v1718, %v1719
    %v1721 = vsub.f32 1.0, %v1720
    %v1722 = vmul.f32 %v1719, %v1721
    %v1723 = vadd.f32 %v1719, %v1722
    %vm1724 = vweird.f32 %v1718
    %vm1725 = vweird.f32 %v1719
    %vm1726 = vmor %vm1724, %vm1725
    %v1727 = vsel %vm1726, %v1719, %v1723
    %v1728 = vand.u32 2147483647, %v1718
    %vm1729 = vcmp.eq.f32.partialorder %v1728, 8.507059e+37
    %v1730 = vand.u32 %v1718, 2147483648
    %v1731 = vor.u32 1.1754944e-38, %v1730
    %v1732 = vsel %vm1729, %v1731, %v1727
    %v1733 = vmul.f32 1.0, %v1732
    %v1734 = vadd.f32 %v1673, %v1698
    %v1735 = vxor.u32 %v1734, 2147483648
    %v1736 = vmul.f32 %v1735, 1.442695
    %v1737 = vpow.pop %v1736
    %v1738 = vadd.f32 %v1737, 1.0
    %v1739 = vrcp.pop %v1738
    %v1740 = vmul.f32 %v1738, %v1739
    %v1741 = vsub.f32 1.0, %v1740
    %v1742 = vmul.f32 %v1739, %v1741
    %v1743 = vadd.f32 %v1739, %v1742
    %vm1744 = vweird.f32 %v1738
    %vm1745 = vweird.f32 %v1739
    %vm1746 = vmor %vm1744, %vm1745
    %v1747 = vsel %vm1746, %v1739, %v1743
    %v1748 = vand.u32 2147483647, %v1738
    %vm1749 = vcmp.eq.f32.partialorder %v1748, 8.507059e+37
    %v1750 = vand.u32 %v1738, 2147483648
    %v1751 = vor.u32 1.1754944e-38, %v1750
    %v1752 = vsel %vm1749, %v1751, %v1747
    %v1753 = vmul.f32 1.0, %v1752
    %v1754 = vmul.f32 %v1733, %v1711
    %v1755 = vadd.f32 %v1674, %v1754
    %v1756 = vtanh.pop %v1755
    %v1757 = vsub.f32 1.0, %v1753
    %v1758 = vmul.f32 %v1757, %v1756
    %v1759 = vmul.f32 %v1753, %v1544
    %v1760 = vadd.f32 %v1758, %v1759
    %v1761 = vpack.c.bf16 %v1760, %v1760
    %1762 = vmatpush.bf16.msra.mxu0 %v704
    %1763 = vmatpush.bf16.msra.mxu0 %v701
    %1764 = vmatpush.bf16.msra.mxu0 %v698
    %1765 = vmatpush.bf16.msra.mxu0 %v695
    %1766 = vmatpush.bf16.msra.mxu0 %v692
    %1767 = vmatpush.bf16.msra.mxu0 %v689
    %1768 = vmatpush.bf16.msra.mxu0 %v686
    %1769 = vmatpush.bf16.msra.mxu0 %v683
    %1770 = vmatmul.bf16.gmra.mxu0 %v1761
    %v1771 = vpop.f32.mrf.mxu0
    %v1772 = vadd.f32 %v597, %v1771
    %v1773 = vpop.f32.mrf.mxu0
    %1774 = vdwg.mxu0
    %1775 = vmatpush.bf16.msra.mxu0 %v705
    %1776 = vmatpush.bf16.msra.mxu0 %v702
    %1777 = vmatpush.bf16.msra.mxu0 %v699
    %1778 = vmatpush.bf16.msra.mxu0 %v696
    %1779 = vmatpush.bf16.msra.mxu0 %v693
    %1780 = vmatpush.bf16.msra.mxu0 %v690
    %1781 = vmatpush.bf16.msra.mxu0 %v687
    %1782 = vmatpush.bf16.msra.mxu0 %v684
    %1783 = vmatmul.bf16.gmra.mxu0 %v1761
    %v1784 = vpop.f32.mrf.mxu0
    %v1785 = vadd.f32 %v598, %v1784
    %v1786 = vpop.f32.mrf.mxu0
    %1787 = vdwg.mxu0
    %1788 = vmatpush.bf16.msra.mxu0 %v706
    %1789 = vmatpush.bf16.msra.mxu0 %v703
    %1790 = vmatpush.bf16.msra.mxu0 %v700
    %1791 = vmatpush.bf16.msra.mxu0 %v697
    %1792 = vmatpush.bf16.msra.mxu0 %v694
    %1793 = vmatpush.bf16.msra.mxu0 %v691
    %1794 = vmatpush.bf16.msra.mxu0 %v688
    %1795 = vmatpush.bf16.msra.mxu0 %v685
    %1796 = vmatmul.bf16.gmra.mxu0 %v1761
    %v1797 = vpop.f32.mrf.mxu0
    %v1798 = vadd.f32 %v599, %v1797
    %v1799 = vpop.f32.mrf.mxu0
    %1800 = vdwg.mxu0
    %v1801 = vpack.c.bf16 %v1671, %v1671
    %1802 = vmatpush.bf16.msra.mxu0 %v911
    %1803 = vmatpush.bf16.msra.mxu0 %v908
    %1804 = vmatpush.bf16.msra.mxu0 %v905
    %1805 = vmatpush.bf16.msra.mxu0 %v902
    %1806 = vmatpush.bf16.msra.mxu0 %v899
    %1807 = vmatpush.bf16.msra.mxu0 %v896
    %1808 = vmatpush.bf16.msra.mxu0 %v893
    %1809 = vmatpush.bf16.msra.mxu0 %v890
    %1810 = vmatmul.bf16.gmra.mxu0 %v1801
    %v1811 = vpop.f32.mrf.mxu0
    %v1812 = vadd.f32 %v804, %v1811
    %v1813 = vpop.f32.mrf.mxu0
    %1814 = vdwg.mxu0
    %1815 = vmatpush.bf16.msra.mxu0 %v912
    %1816 = vmatpush.bf16.msra.mxu0 %v909
    %1817 = vmatpush.bf16.msra.mxu0 %v906
    %1818 = vmatpush.bf16.msra.mxu0 %v903
    %1819 = vmatpush.bf16.msra.mxu0 %v900
    %1820 = vmatpush.bf16.msra.mxu0 %v897
    %1821 = vmatpush.bf16.msra.mxu0 %v894
    %1822 = vmatpush.bf16.msra.mxu0 %v891
    %1823 = vmatmul.bf16.gmra.mxu0 %v1801
    %v1824 = vpop.f32.mrf.mxu0
    %v1825 = vadd.f32 %v805, %v1824
    %v1826 = vpop.f32.mrf.mxu0
    %1827 = vdwg.mxu0
    %1828 = vmatpush.bf16.msra.mxu0 %v913
    %1829 = vmatpush.bf16.msra.mxu0 %v910
    %1830 = vmatpush.bf16.msra.mxu0 %v907
    %1831 = vmatpush.bf16.msra.mxu0 %v904
    %1832 = vmatpush.bf16.msra.mxu0 %v901
    %1833 = vmatpush.bf16.msra.mxu0 %v898
    %1834 = vmatpush.bf16.msra.mxu0 %v895
    %1835 = vmatpush.bf16.msra.mxu0 %v892
    %1836 = vmatmul.bf16.gmra.mxu0 %v1801
    %v1837 = vpop.f32.mrf.mxu0
    %v1838 = vadd.f32 %v806, %v1837
    %v1839 = vpop.f32.mrf.mxu0
    %1840 = vdwg.mxu0
    %v1841 = vadd.f32 %v1772, %v1812
    %v1842 = vxor.u32 %v1841, 2147483648
    %v1843 = vmul.f32 %v1842, 1.442695
    %v1844 = vpow.pop %v1843
    %v1845 = vadd.f32 %v1844, 1.0
    %v1846 = vrcp.pop %v1845
    %v1847 = vmul.f32 %v1845, %v1846
    %v1848 = vsub.f32 1.0, %v1847
    %v1849 = vmul.f32 %v1846, %v1848
    %v1850 = vadd.f32 %v1846, %v1849
    %vm1851 = vweird.f32 %v1845
    %vm1852 = vweird.f32 %v1846
    %vm1853 = vmor %vm1851, %vm1852
    %v1854 = vsel %vm1853, %v1846, %v1850
    %v1855 = vand.u32 2147483647, %v1845
    %vm1856 = vcmp.eq.f32.partialorder %v1855, 8.507059e+37
    %v1857 = vand.u32 %v1845, 2147483648
    %v1858 = vor.u32 1.1754944e-38, %v1857
    %v1859 = vsel %vm1856, %v1858, %v1854
    %v1860 = vmul.f32 1.0, %v1859
    %v1861 = vadd.f32 %v1785, %v1825
    %v1862 = vxor.u32 %v1861, 2147483648
    %v1863 = vmul.f32 %v1862, 1.442695
    %v1864 = vpow.pop %v1863
    %v1865 = vadd.f32 %v1864, 1.0
    %v1866 = vrcp.pop %v1865
    %v1867 = vmul.f32 %v1865, %v1866
    %v1868 = vsub.f32 1.0, %v1867
    %v1869 = vmul.f32 %v1866, %v1868
    %v1870 = vadd.f32 %v1866, %v1869
    %vm1871 = vweird.f32 %v1865
    %vm1872 = vweird.f32 %v1866
    %vm1873 = vmor %vm1871, %vm1872
    %v1874 = vsel %vm1873, %v1866, %v1870
    %v1875 = vand.u32 2147483647, %v1865
    %vm1876 = vcmp.eq.f32.partialorder %v1875, 8.507059e+37
    %v1877 = vand.u32 %v1865, 2147483648
    %v1878 = vor.u32 1.1754944e-38, %v1877
    %v1879 = vsel %vm1876, %v1878, %v1874
    %v1880 = vmul.f32 1.0, %v1879
    %v1881 = vmul.f32 %v1860, %v1838
    %v1882 = vadd.f32 %v1798, %v1881
    %v1883 = vtanh.pop %v1882
    %v1884 = vsub.f32 1.0, %v1880
    %v1885 = vmul.f32 %v1884, %v1883
    %v1886 = vmul.f32 %v1880, %v1671
    %v1887 = vadd.f32 %v1885, %v1886
    %v1888 = vld [vmem:[#allocation2 + $0x78] sm:$0xff]
    %v1889 = vld [vmem:[#allocation2 + $0x80] sm:$0xff]
    %v1890 = vld [vmem:[#allocation2 + $0x88] sm:$0xff]
    %1891 = vmatpush.bf16.msra.mxu0 %v449
    %1892 = vmatpush.bf16.msra.mxu0 %v446
    %1893 = vmatpush.bf16.msra.mxu0 %v443
    %1894 = vmatpush.bf16.msra.mxu0 %v440
    %1895 = vmatpush.bf16.msra.mxu0 %v437
    %1896 = vmatpush.bf16.msra.mxu0 %v434
    %1897 = vmatpush.bf16.msra.mxu0 %v431
    %1898 = vmatpush.bf16.msra.mxu0 %v428
    %1899 = vmatmul.bf16.gmra.mxu0 %v1761
    %v1900 = vpop.f32.mrf.mxu0
    %v1901 = vadd.f32 %v342, %v1900
    %v1902 = vpop.f32.mrf.mxu0
    %1903 = vdwg.mxu0
    %1904 = vmatpush.bf16.msra.mxu0 %v450
    %1905 = vmatpush.bf16.msra.mxu0 %v447
    %1906 = vmatpush.bf16.msra.mxu0 %v444
    %1907 = vmatpush.bf16.msra.mxu0 %v441
    %1908 = vmatpush.bf16.msra.mxu0 %v438
    %1909 = vmatpush.bf16.msra.mxu0 %v435
    %1910 = vmatpush.bf16.msra.mxu0 %v432
    %1911 = vmatpush.bf16.msra.mxu0 %v429
    %1912 = vmatmul.bf16.gmra.mxu0 %v1761
    %v1913 = vpop.f32.mrf.mxu0
    %v1914 = vadd.f32 %v343, %v1913
    %v1915 = vpop.f32.mrf.mxu0
    %1916 = vdwg.mxu0
    %1917 = vmatpush.bf16.msra.mxu0 %v451
    %1918 = vmatpush.bf16.msra.mxu0 %v448
    %1919 = vmatpush.bf16.msra.mxu0 %v445
    %1920 = vmatpush.bf16.msra.mxu0 %v442
    %1921 = vmatpush.bf16.msra.mxu0 %v439
    %1922 = vmatpush.bf16.msra.mxu0 %v436
    %1923 = vmatpush.bf16.msra.mxu0 %v433
    %1924 = vmatpush.bf16.msra.mxu0 %v430
    %1925 = vmatmul.bf16.gmra.mxu0 %v1761
    %v1926 = vpop.f32.mrf.mxu0
    %v1927 = vadd.f32 %v344, %v1926
    %v1928 = vpop.f32.mrf.mxu0
    %1929 = vdwg.mxu0
    %v1930 = vadd.f32 %v1888, %v1901
    %v1931 = vxor.u32 %v1930, 2147483648
    %v1932 = vmul.f32 %v1931, 1.442695
    %v1933 = vpow.pop %v1932
    %v1934 = vadd.f32 %v1933, 1.0
    %v1935 = vrcp.pop %v1934
    %v1936 = vmul.f32 %v1934, %v1935
    %v1937 = vsub.f32 1.0, %v1936
    %v1938 = vmul.f32 %v1935, %v1937
    %v1939 = vadd.f32 %v1935, %v1938
    %vm1940 = vweird.f32 %v1934
    %vm1941 = vweird.f32 %v1935
    %vm1942 = vmor %vm1940, %vm1941
    %v1943 = vsel %vm1942, %v1935, %v1939
    %v1944 = vand.u32 2147483647, %v1934
    %vm1945 = vcmp.eq.f32.partialorder %v1944, 8.507059e+37
    %v1946 = vand.u32 %v1934, 2147483648
    %v1947 = vor.u32 1.1754944e-38, %v1946
    %v1948 = vsel %vm1945, %v1947, %v1943
    %v1949 = vmul.f32 1.0, %v1948
    %v1950 = vadd.f32 %v1889, %v1914
    %v1951 = vxor.u32 %v1950, 2147483648
    %v1952 = vmul.f32 %v1951, 1.442695
    %v1953 = vpow.pop %v1952
    %v1954 = vadd.f32 %v1953, 1.0
    %v1955 = vrcp.pop %v1954
    %v1956 = vmul.f32 %v1954, %v1955
    %v1957 = vsub.f32 1.0, %v1956
    %v1958 = vmul.f32 %v1955, %v1957
    %v1959 = vadd.f32 %v1955, %v1958
    %vm1960 = vweird.f32 %v1954
    %vm1961 = vweird.f32 %v1955
    %vm1962 = vmor %vm1960, %vm1961
    %v1963 = vsel %vm1962, %v1955, %v1959
    %v1964 = vand.u32 2147483647, %v1954
    %vm1965 = vcmp.eq.f32.partialorder %v1964, 8.507059e+37
    %v1966 = vand.u32 %v1954, 2147483648
    %v1967 = vor.u32 1.1754944e-38, %v1966
    %v1968 = vsel %vm1965, %v1967, %v1963
    %v1969 = vmul.f32 1.0, %v1968
    %v1970 = vmul.f32 %v1949, %v1927
    %v1971 = vadd.f32 %v1890, %v1970
    %v1972 = vtanh.pop %v1971
    %v1973 = vsub.f32 1.0, %v1969
    %v1974 = vmul.f32 %v1973, %v1972
    %v1975 = vmul.f32 %v1969, %v1760
    %v1976 = vadd.f32 %v1974, %v1975
    %v1977 = vpack.c.bf16 %v1976, %v1976
    %1978 = vmatpush.bf16.msra.mxu0 %v704
    %1979 = vmatpush.bf16.msra.mxu0 %v701
    %1980 = vmatpush.bf16.msra.mxu0 %v698
    %1981 = vmatpush.bf16.msra.mxu0 %v695
    %1982 = vmatpush.bf16.msra.mxu0 %v692
    %1983 = vmatpush.bf16.msra.mxu0 %v689
    %1984 = vmatpush.bf16.msra.mxu0 %v686
    %1985 = vmatpush.bf16.msra.mxu0 %v683
    %1986 = vmatmul.bf16.gmra.mxu0 %v1977
    %v1987 = vpop.f32.mrf.mxu0
    %v1988 = vadd.f32 %v597, %v1987
    %v1989 = vpop.f32.mrf.mxu0
    %1990 = vdwg.mxu0
    %1991 = vmatpush.bf16.msra.mxu0 %v705
    %1992 = vmatpush.bf16.msra.mxu0 %v702
    %1993 = vmatpush.bf16.msra.mxu0 %v699
    %1994 = vmatpush.bf16.msra.mxu0 %v696
    %1995 = vmatpush.bf16.msra.mxu0 %v693
    %1996 = vmatpush.bf16.msra.mxu0 %v690
    %1997 = vmatpush.bf16.msra.mxu0 %v687
    %1998 = vmatpush.bf16.msra.mxu0 %v684
    %1999 = vmatmul.bf16.gmra.mxu0 %v1977
    %v2000 = vpop.f32.mrf.mxu0
    %v2001 = vadd.f32 %v598, %v2000
    %v2002 = vpop.f32.mrf.mxu0
    %2003 = vdwg.mxu0
    %2004 = vmatpush.bf16.msra.mxu0 %v706
    %2005 = vmatpush.bf16.msra.mxu0 %v703
    %2006 = vmatpush.bf16.msra.mxu0 %v700
    %2007 = vmatpush.bf16.msra.mxu0 %v697
    %2008 = vmatpush.bf16.msra.mxu0 %v694
    %2009 = vmatpush.bf16.msra.mxu0 %v691
    %2010 = vmatpush.bf16.msra.mxu0 %v688
    %2011 = vmatpush.bf16.msra.mxu0 %v685
    %2012 = vmatmul.bf16.gmra.mxu0 %v1977
    %v2013 = vpop.f32.mrf.mxu0
    %v2014 = vadd.f32 %v599, %v2013
    %v2015 = vpop.f32.mrf.mxu0
    %2016 = vdwg.mxu0
    %v2017 = vpack.c.bf16 %v1887, %v1887
    %2018 = vmatpush.bf16.msra.mxu0 %v911
    %2019 = vmatpush.bf16.msra.mxu0 %v908
    %2020 = vmatpush.bf16.msra.mxu0 %v905
    %2021 = vmatpush.bf16.msra.mxu0 %v902
    %2022 = vmatpush.bf16.msra.mxu0 %v899
    %2023 = vmatpush.bf16.msra.mxu0 %v896
    %2024 = vmatpush.bf16.msra.mxu0 %v893
    %2025 = vmatpush.bf16.msra.mxu0 %v890
    %2026 = vmatmul.bf16.gmra.mxu0 %v2017
    %v2027 = vpop.f32.mrf.mxu0
    %v2028 = vadd.f32 %v804, %v2027
    %v2029 = vpop.f32.mrf.mxu0
    %2030 = vdwg.mxu0
    %2031 = vmatpush.bf16.msra.mxu0 %v912
    %2032 = vmatpush.bf16.msra.mxu0 %v909
    %2033 = vmatpush.bf16.msra.mxu0 %v906
    %2034 = vmatpush.bf16.msra.mxu0 %v903
    %2035 = vmatpush.bf16.msra.mxu0 %v900
    %2036 = vmatpush.bf16.msra.mxu0 %v897
    %2037 = vmatpush.bf16.msra.mxu0 %v894
    %2038 = vmatpush.bf16.msra.mxu0 %v891
    %2039 = vmatmul.bf16.gmra.mxu0 %v2017
    %v2040 = vpop.f32.mrf.mxu0
    %v2041 = vadd.f32 %v805, %v2040
    %v2042 = vpop.f32.mrf.mxu0
    %2043 = vdwg.mxu0
    %2044 = vmatpush.bf16.msra.mxu0 %v913
    %2045 = vmatpush.bf16.msra.mxu0 %v910
    %2046 = vmatpush.bf16.msra.mxu0 %v907
    %2047 = vmatpush.bf16.msra.mxu0 %v904
    %2048 = vmatpush.bf16.msra.mxu0 %v901
    %2049 = vmatpush.bf16.msra.mxu0 %v898
    %2050 = vmatpush.bf16.msra.mxu0 %v895
    %2051 = vmatpush.bf16.msra.mxu0 %v892
    %2052 = vmatmul.bf16.gmra.mxu0 %v2017
    %v2053 = vpop.f32.mrf.mxu0
    %v2054 = vadd.f32 %v806, %v2053
    %v2055 = vpop.f32.mrf.mxu0
    %2056 = vdwg.mxu0
    %v2057 = vadd.f32 %v1988, %v2028
    %v2058 = vxor.u32 %v2057, 2147483648
    %v2059 = vmul.f32 %v2058, 1.442695
    %v2060 = vpow.pop %v2059
    %v2061 = vadd.f32 %v2060, 1.0
    %v2062 = vrcp.pop %v2061
    %v2063 = vmul.f32 %v2061, %v2062
    %v2064 = vsub.f32 1.0, %v2063
    %v2065 = vmul.f32 %v2062, %v2064
    %v2066 = vadd.f32 %v2062, %v2065
    %vm2067 = vweird.f32 %v2061
    %vm2068 = vweird.f32 %v2062
    %vm2069 = vmor %vm2067, %vm2068
    %v2070 = vsel %vm2069, %v2062, %v2066
    %v2071 = vand.u32 2147483647, %v2061
    %vm2072 = vcmp.eq.f32.partialorder %v2071, 8.507059e+37
    %v2073 = vand.u32 %v2061, 2147483648
    %v2074 = vor.u32 1.1754944e-38, %v2073
    %v2075 = vsel %vm2072, %v2074, %v2070
    %v2076 = vmul.f32 1.0, %v2075
    %v2077 = vadd.f32 %v2001, %v2041
    %v2078 = vxor.u32 %v2077, 2147483648
    %v2079 = vmul.f32 %v2078, 1.442695
    %v2080 = vpow.pop %v2079
    %v2081 = vadd.f32 %v2080, 1.0
    %v2082 = vrcp.pop %v2081
    %v2083 = vmul.f32 %v2081, %v2082
    %v2084 = vsub.f32 1.0, %v2083
    %v2085 = vmul.f32 %v2082, %v2084
    %v2086 = vadd.f32 %v2082, %v2085
    %vm2087 = vweird.f32 %v2081
    %vm2088 = vweird.f32 %v2082
    %vm2089 = vmor %vm2087, %vm2088
    %v2090 = vsel %vm2089, %v2082, %v2086
    %v2091 = vand.u32 2147483647, %v2081
    %vm2092 = vcmp.eq.f32.partialorder %v2091, 8.507059e+37
    %v2093 = vand.u32 %v2081, 2147483648
    %v2094 = vor.u32 1.1754944e-38, %v2093
    %v2095 = vsel %vm2092, %v2094, %v2090
    %v2096 = vmul.f32 1.0, %v2095
    %v2097 = vmul.f32 %v2076, %v2054
    %v2098 = vadd.f32 %v2014, %v2097
    %v2099 = vtanh.pop %v2098
    %v2100 = vsub.f32 1.0, %v2096
    %v2101 = vmul.f32 %v2100, %v2099
    %v2102 = vmul.f32 %v2096, %v1887
    %v2103 = vadd.f32 %v2101, %v2102
    %v2104 = vld [vmem:[#allocation2 + $0x90] sm:$0xff]
    %v2105 = vld [vmem:[#allocation2 + $0x98] sm:$0xff]
    %v2106 = vld [vmem:[#allocation2 + $0xa0] sm:$0xff]
    %2107 = vmatpush.bf16.msra.mxu0 %v449
    %2108 = vmatpush.bf16.msra.mxu0 %v446
    %2109 = vmatpush.bf16.msra.mxu0 %v443
    %2110 = vmatpush.bf16.msra.mxu0 %v440
    %2111 = vmatpush.bf16.msra.mxu0 %v437
    %2112 = vmatpush.bf16.msra.mxu0 %v434
    %2113 = vmatpush.bf16.msra.mxu0 %v431
    %2114 = vmatpush.bf16.msra.mxu0 %v428
    %2115 = vmatmul.bf16.gmra.mxu0 %v1977
    %v2116 = vpop.f32.mrf.mxu0
    %v2117 = vadd.f32 %v342, %v2116
    %v2118 = vpop.f32.mrf.mxu0
    %2119 = vdwg.mxu0
    %2120 = vmatpush.bf16.msra.mxu0 %v450
    %2121 = vmatpush.bf16.msra.mxu0 %v447
    %2122 = vmatpush.bf16.msra.mxu0 %v444
    %2123 = vmatpush.bf16.msra.mxu0 %v441
    %2124 = vmatpush.bf16.msra.mxu0 %v438
    %2125 = vmatpush.bf16.msra.mxu0 %v435
    %2126 = vmatpush.bf16.msra.mxu0 %v432
    %2127 = vmatpush.bf16.msra.mxu0 %v429
    %2128 = vmatmul.bf16.gmra.mxu0 %v1977
    %v2129 = vpop.f32.mrf.mxu0
    %v2130 = vadd.f32 %v343, %v2129
    %v2131 = vpop.f32.mrf.mxu0
    %2132 = vdwg.mxu0
    %2133 = vmatpush.bf16.msra.mxu0 %v451
    %2134 = vmatpush.bf16.msra.mxu0 %v448
    %2135 = vmatpush.bf16.msra.mxu0 %v445
    %2136 = vmatpush.bf16.msra.mxu0 %v442
    %2137 = vmatpush.bf16.msra.mxu0 %v439
    %2138 = vmatpush.bf16.msra.mxu0 %v436
    %2139 = vmatpush.bf16.msra.mxu0 %v433
    %2140 = vmatpush.bf16.msra.mxu0 %v430
    %2141 = vmatmul.bf16.gmra.mxu0 %v1977
    %v2142 = vpop.f32.mrf.mxu0
    %v2143 = vadd.f32 %v344, %v2142
    %v2144 = vpop.f32.mrf.mxu0
    %2145 = vdwg.mxu0
    %v2146 = vadd.f32 %v2104, %v2117
    %v2147 = vxor.u32 %v2146, 2147483648
    %v2148 = vmul.f32 %v2147, 1.442695
    %v2149 = vpow.pop %v2148
    %v2150 = vadd.f32 %v2149, 1.0
    %v2151 = vrcp.pop %v2150
    %v2152 = vmul.f32 %v2150, %v2151
    %v2153 = vsub.f32 1.0, %v2152
    %v2154 = vmul.f32 %v2151, %v2153
    %v2155 = vadd.f32 %v2151, %v2154
    %vm2156 = vweird.f32 %v2150
    %vm2157 = vweird.f32 %v2151
    %vm2158 = vmor %vm2156, %vm2157
    %v2159 = vsel %vm2158, %v2151, %v2155
    %v2160 = vand.u32 2147483647, %v2150
    %vm2161 = vcmp.eq.f32.partialorder %v2160, 8.507059e+37
    %v2162 = vand.u32 %v2150, 2147483648
    %v2163 = vor.u32 1.1754944e-38, %v2162
    %v2164 = vsel %vm2161, %v2163, %v2159
    %v2165 = vmul.f32 1.0, %v2164
    %v2166 = vadd.f32 %v2105, %v2130
    %v2167 = vxor.u32 %v2166, 2147483648
    %v2168 = vmul.f32 %v2167, 1.442695
    %v2169 = vpow.pop %v2168
    %v2170 = vadd.f32 %v2169, 1.0
    %v2171 = vrcp.pop %v2170
    %v2172 = vmul.f32 %v2170, %v2171
    %v2173 = vsub.f32 1.0, %v2172
    %v2174 = vmul.f32 %v2171, %v2173
    %v2175 = vadd.f32 %v2171, %v2174
    %vm2176 = vweird.f32 %v2170
    %vm2177 = vweird.f32 %v2171
    %vm2178 = vmor %vm2176, %vm2177
    %v2179 = vsel %vm2178, %v2171, %v2175
    %v2180 = vand.u32 2147483647, %v2170
    %vm2181 = vcmp.eq.f32.partialorder %v2180, 8.507059e+37
    %v2182 = vand.u32 %v2170, 2147483648
    %v2183 = vor.u32 1.1754944e-38, %v2182
    %v2184 = vsel %vm2181, %v2183, %v2179
    %v2185 = vmul.f32 1.0, %v2184
    %v2186 = vmul.f32 %v2165, %v2143
    %v2187 = vadd.f32 %v2106, %v2186
    %v2188 = vtanh.pop %v2187
    %v2189 = vsub.f32 1.0, %v2185
    %v2190 = vmul.f32 %v2189, %v2188
    %v2191 = vmul.f32 %v2185, %v1976
    %v2192 = vadd.f32 %v2190, %v2191
    %v2193 = vpack.c.bf16 %v2192, %v2192
    %2194 = vmatpush.bf16.msra.mxu0 %v704
    %2195 = vmatpush.bf16.msra.mxu0 %v701
    %2196 = vmatpush.bf16.msra.mxu0 %v698
    %2197 = vmatpush.bf16.msra.mxu0 %v695
    %2198 = vmatpush.bf16.msra.mxu0 %v692
    %2199 = vmatpush.bf16.msra.mxu0 %v689
    %2200 = vmatpush.bf16.msra.mxu0 %v686
    %2201 = vmatpush.bf16.msra.mxu0 %v683
    %2202 = vmatmul.bf16.gmra.mxu0 %v2193
    %v2203 = vpop.f32.mrf.mxu0
    %v2204 = vadd.f32 %v597, %v2203
    %v2205 = vpop.f32.mrf.mxu0
    %2206 = vdwg.mxu0
    %2207 = vmatpush.bf16.msra.mxu0 %v705
    %2208 = vmatpush.bf16.msra.mxu0 %v702
    %2209 = vmatpush.bf16.msra.mxu0 %v699
    %2210 = vmatpush.bf16.msra.mxu0 %v696
    %2211 = vmatpush.bf16.msra.mxu0 %v693
    %2212 = vmatpush.bf16.msra.mxu0 %v690
    %2213 = vmatpush.bf16.msra.mxu0 %v687
    %2214 = vmatpush.bf16.msra.mxu0 %v684
    %2215 = vmatmul.bf16.gmra.mxu0 %v2193
    %v2216 = vpop.f32.mrf.mxu0
    %v2217 = vadd.f32 %v598, %v2216
    %v2218 = vpop.f32.mrf.mxu0
    %2219 = vdwg.mxu0
    %2220 = vmatpush.bf16.msra.mxu0 %v706
    %2221 = vmatpush.bf16.msra.mxu0 %v703
    %2222 = vmatpush.bf16.msra.mxu0 %v700
    %2223 = vmatpush.bf16.msra.mxu0 %v697
    %2224 = vmatpush.bf16.msra.mxu0 %v694
    %2225 = vmatpush.bf16.msra.mxu0 %v691
    %2226 = vmatpush.bf16.msra.mxu0 %v688
    %2227 = vmatpush.bf16.msra.mxu0 %v685
    %2228 = vmatmul.bf16.gmra.mxu0 %v2193
    %v2229 = vpop.f32.mrf.mxu0
    %v2230 = vadd.f32 %v599, %v2229
    %v2231 = vpop.f32.mrf.mxu0
    %2232 = vdwg.mxu0
    %v2233 = vpack.c.bf16 %v2103, %v2103
    %2234 = vmatpush.bf16.msra.mxu0 %v911
    %2235 = vmatpush.bf16.msra.mxu0 %v908
    %2236 = vmatpush.bf16.msra.mxu0 %v905
    %2237 = vmatpush.bf16.msra.mxu0 %v902
    %2238 = vmatpush.bf16.msra.mxu0 %v899
    %2239 = vmatpush.bf16.msra.mxu0 %v896
    %2240 = vmatpush.bf16.msra.mxu0 %v893
    %2241 = vmatpush.bf16.msra.mxu0 %v890
    %2242 = vmatmul.bf16.gmra.mxu0 %v2233
    %v2243 = vpop.f32.mrf.mxu0
    %v2244 = vadd.f32 %v804, %v2243
    %v2245 = vpop.f32.mrf.mxu0
    %2246 = vdwg.mxu0
    %2247 = vmatpush.bf16.msra.mxu0 %v912
    %2248 = vmatpush.bf16.msra.mxu0 %v909
    %2249 = vmatpush.bf16.msra.mxu0 %v906
    %2250 = vmatpush.bf16.msra.mxu0 %v903
    %2251 = vmatpush.bf16.msra.mxu0 %v900
    %2252 = vmatpush.bf16.msra.mxu0 %v897
    %2253 = vmatpush.bf16.msra.mxu0 %v894
    %2254 = vmatpush.bf16.msra.mxu0 %v891
    %2255 = vmatmul.bf16.gmra.mxu0 %v2233
    %v2256 = vpop.f32.mrf.mxu0
    %v2257 = vadd.f32 %v805, %v2256
    %v2258 = vpop.f32.mrf.mxu0
    %2259 = vdwg.mxu0
    %2260 = vmatpush.bf16.msra.mxu0 %v913
    %2261 = vmatpush.bf16.msra.mxu0 %v910
    %2262 = vmatpush.bf16.msra.mxu0 %v907
    %2263 = vmatpush.bf16.msra.mxu0 %v904
    %2264 = vmatpush.bf16.msra.mxu0 %v901
    %2265 = vmatpush.bf16.msra.mxu0 %v898
    %2266 = vmatpush.bf16.msra.mxu0 %v895
    %2267 = vmatpush.bf16.msra.mxu0 %v892
    %2268 = vmatmul.bf16.gmra.mxu0 %v2233
    %v2269 = vpop.f32.mrf.mxu0
    %v2270 = vadd.f32 %v806, %v2269
    %v2271 = vpop.f32.mrf.mxu0
    %2272 = vdwg.mxu0
    %v2273 = vadd.f32 %v2204, %v2244
    %v2274 = vxor.u32 %v2273, 2147483648
    %v2275 = vmul.f32 %v2274, 1.442695
    %v2276 = vpow.pop %v2275
    %v2277 = vadd.f32 %v2276, 1.0
    %v2278 = vrcp.pop %v2277
    %v2279 = vmul.f32 %v2277, %v2278
    %v2280 = vsub.f32 1.0, %v2279
    %v2281 = vmul.f32 %v2278, %v2280
    %v2282 = vadd.f32 %v2278, %v2281
    %vm2283 = vweird.f32 %v2277
    %vm2284 = vweird.f32 %v2278
    %vm2285 = vmor %vm2283, %vm2284
    %v2286 = vsel %vm2285, %v2278, %v2282
    %v2287 = vand.u32 2147483647, %v2277
    %vm2288 = vcmp.eq.f32.partialorder %v2287, 8.507059e+37
    %v2289 = vand.u32 %v2277, 2147483648
    %v2290 = vor.u32 1.1754944e-38, %v2289
    %v2291 = vsel %vm2288, %v2290, %v2286
    %v2292 = vmul.f32 1.0, %v2291
    %v2293 = vadd.f32 %v2217, %v2257
    %v2294 = vxor.u32 %v2293, 2147483648
    %v2295 = vmul.f32 %v2294, 1.442695
    %v2296 = vpow.pop %v2295
    %v2297 = vadd.f32 %v2296, 1.0
    %v2298 = vrcp.pop %v2297
    %v2299 = vmul.f32 %v2297, %v2298
    %v2300 = vsub.f32 1.0, %v2299
    %v2301 = vmul.f32 %v2298, %v2300
    %v2302 = vadd.f32 %v2298, %v2301
    %vm2303 = vweird.f32 %v2297
    %vm2304 = vweird.f32 %v2298
    %vm2305 = vmor %vm2303, %vm2304
    %v2306 = vsel %vm2305, %v2298, %v2302
    %v2307 = vand.u32 2147483647, %v2297
    %vm2308 = vcmp.eq.f32.partialorder %v2307, 8.507059e+37
    %v2309 = vand.u32 %v2297, 2147483648
    %v2310 = vor.u32 1.1754944e-38, %v2309
    %v2311 = vsel %vm2308, %v2310, %v2306
    %v2312 = vmul.f32 1.0, %v2311
    %v2313 = vmul.f32 %v2292, %v2270
    %v2314 = vadd.f32 %v2230, %v2313
    %v2315 = vtanh.pop %v2314
    %v2316 = vsub.f32 1.0, %v2312
    %v2317 = vmul.f32 %v2316, %v2315
    %v2318 = vmul.f32 %v2312, %v2103
    %v2319 = vadd.f32 %v2317, %v2318
    %v2320 = vld [vmem:[#allocation2 + $0xa8] sm:$0xff]
    %v2321 = vld [vmem:[#allocation2 + $0xb0] sm:$0xff]
    %v2322 = vld [vmem:[#allocation2 + $0xb8] sm:$0xff]
    %2323 = vmatpush.bf16.msra.mxu0 %v449
    %2324 = vmatpush.bf16.msra.mxu0 %v446
    %2325 = vmatpush.bf16.msra.mxu0 %v443
    %2326 = vmatpush.bf16.msra.mxu0 %v440
    %2327 = vmatpush.bf16.msra.mxu0 %v437
    %2328 = vmatpush.bf16.msra.mxu0 %v434
    %2329 = vmatpush.bf16.msra.mxu0 %v431
    %2330 = vmatpush.bf16.msra.mxu0 %v428
    %2331 = vmatmul.bf16.gmra.mxu0 %v2193
    %v2332 = vpop.f32.mrf.mxu0
    %v2333 = vadd.f32 %v342, %v2332
    %v2334 = vpop.f32.mrf.mxu0
    %2335 = vdwg.mxu0
    %2336 = vmatpush.bf16.msra.mxu0 %v450
    %2337 = vmatpush.bf16.msra.mxu0 %v447
    %2338 = vmatpush.bf16.msra.mxu0 %v444
    %2339 = vmatpush.bf16.msra.mxu0 %v441
    %2340 = vmatpush.bf16.msra.mxu0 %v438
    %2341 = vmatpush.bf16.msra.mxu0 %v435
    %2342 = vmatpush.bf16.msra.mxu0 %v432
    %2343 = vmatpush.bf16.msra.mxu0 %v429
    %2344 = vmatmul.bf16.gmra.mxu0 %v2193
    %v2345 = vpop.f32.mrf.mxu0
    %v2346 = vadd.f32 %v343, %v2345
    %v2347 = vpop.f32.mrf.mxu0
    %2348 = vdwg.mxu0
    %2349 = vmatpush.bf16.msra.mxu0 %v451
    %2350 = vmatpush.bf16.msra.mxu0 %v448
    %2351 = vmatpush.bf16.msra.mxu0 %v445
    %2352 = vmatpush.bf16.msra.mxu0 %v442
    %2353 = vmatpush.bf16.msra.mxu0 %v439
    %2354 = vmatpush.bf16.msra.mxu0 %v436
    %2355 = vmatpush.bf16.msra.mxu0 %v433
    %2356 = vmatpush.bf16.msra.mxu0 %v430
    %2357 = vmatmul.bf16.gmra.mxu0 %v2193
    %v2358 = vpop.f32.mrf.mxu0
    %v2359 = vadd.f32 %v344, %v2358
    %v2360 = vpop.f32.mrf.mxu0
    %2361 = vdwg.mxu0
    %v2362 = vadd.f32 %v2320, %v2333
    %v2363 = vxor.u32 %v2362, 2147483648
    %v2364 = vmul.f32 %v2363, 1.442695
    %v2365 = vpow.pop %v2364
    %v2366 = vadd.f32 %v2365, 1.0
    %v2367 = vrcp.pop %v2366
    %v2368 = vmul.f32 %v2366, %v2367
    %v2369 = vsub.f32 1.0, %v2368
    %v2370 = vmul.f32 %v2367, %v2369
    %v2371 = vadd.f32 %v2367, %v2370
    %vm2372 = vweird.f32 %v2366
    %vm2373 = vweird.f32 %v2367
    %vm2374 = vmor %vm2372, %vm2373
    %v2375 = vsel %vm2374, %v2367, %v2371
    %v2376 = vand.u32 2147483647, %v2366
    %vm2377 = vcmp.eq.f32.partialorder %v2376, 8.507059e+37
    %v2378 = vand.u32 %v2366, 2147483648
    %v2379 = vor.u32 1.1754944e-38, %v2378
    %v2380 = vsel %vm2377, %v2379, %v2375
    %v2381 = vmul.f32 1.0, %v2380
    %v2382 = vadd.f32 %v2321, %v2346
    %v2383 = vxor.u32 %v2382, 2147483648
    %v2384 = vmul.f32 %v2383, 1.442695
    %v2385 = vpow.pop %v2384
    %v2386 = vadd.f32 %v2385, 1.0
    %v2387 = vrcp.pop %v2386
    %v2388 = vmul.f32 %v2386, %v2387
    %v2389 = vsub.f32 1.0, %v2388
    %v2390 = vmul.f32 %v2387, %v2389
    %v2391 = vadd.f32 %v2387, %v2390
    %vm2392 = vweird.f32 %v2386
    %vm2393 = vweird.f32 %v2387
    %vm2394 = vmor %vm2392, %vm2393
    %v2395 = vsel %vm2394, %v2387, %v2391
    %v2396 = vand.u32 2147483647, %v2386
    %vm2397 = vcmp.eq.f32.partialorder %v2396, 8.507059e+37
    %v2398 = vand.u32 %v2386, 2147483648
    %v2399 = vor.u32 1.1754944e-38, %v2398
    %v2400 = vsel %vm2397, %v2399, %v2395
    %v2401 = vmul.f32 1.0, %v2400
    %v2402 = vmul.f32 %v2381, %v2359
    %v2403 = vadd.f32 %v2322, %v2402
    %v2404 = vtanh.pop %v2403
    %v2405 = vsub.f32 1.0, %v2401
    %v2406 = vmul.f32 %v2405, %v2404
    %v2407 = vmul.f32 %v2401, %v2192
    %v2408 = vadd.f32 %v2406, %v2407
    %v2409 = vpack.c.bf16 %v2408, %v2408
    %2410 = vmatpush.bf16.msra.mxu0 %v704
    %2411 = vmatpush.bf16.msra.mxu0 %v701
    %2412 = vmatpush.bf16.msra.mxu0 %v698
    %2413 = vmatpush.bf16.msra.mxu0 %v695
    %2414 = vmatpush.bf16.msra.mxu0 %v692
    %2415 = vmatpush.bf16.msra.mxu0 %v689
    %2416 = vmatpush.bf16.msra.mxu0 %v686
    %2417 = vmatpush.bf16.msra.mxu0 %v683
    %2418 = vmatmul.bf16.gmra.mxu0 %v2409
    %v2419 = vpop.f32.mrf.mxu0
    %v2420 = vadd.f32 %v597, %v2419
    %v2421 = vpop.f32.mrf.mxu0
    %2422 = vdwg.mxu0
    %2423 = vmatpush.bf16.msra.mxu0 %v705
    %2424 = vmatpush.bf16.msra.mxu0 %v702
    %2425 = vmatpush.bf16.msra.mxu0 %v699
    %2426 = vmatpush.bf16.msra.mxu0 %v696
    %2427 = vmatpush.bf16.msra.mxu0 %v693
    %2428 = vmatpush.bf16.msra.mxu0 %v690
    %2429 = vmatpush.bf16.msra.mxu0 %v687
    %2430 = vmatpush.bf16.msra.mxu0 %v684
    %2431 = vmatmul.bf16.gmra.mxu0 %v2409
    %v2432 = vpop.f32.mrf.mxu0
    %v2433 = vadd.f32 %v598, %v2432
    %v2434 = vpop.f32.mrf.mxu0
    %2435 = vdwg.mxu0
    %2436 = vmatpush.bf16.msra.mxu0 %v706
    %2437 = vmatpush.bf16.msra.mxu0 %v703
    %2438 = vmatpush.bf16.msra.mxu0 %v700
    %2439 = vmatpush.bf16.msra.mxu0 %v697
    %2440 = vmatpush.bf16.msra.mxu0 %v694
    %2441 = vmatpush.bf16.msra.mxu0 %v691
    %2442 = vmatpush.bf16.msra.mxu0 %v688
    %2443 = vmatpush.bf16.msra.mxu0 %v685
    %2444 = vmatmul.bf16.gmra.mxu0 %v2409
    %v2445 = vpop.f32.mrf.mxu0
    %v2446 = vadd.f32 %v599, %v2445
    %v2447 = vpop.f32.mrf.mxu0
    %2448 = vdwg.mxu0
    %v2449 = vpack.c.bf16 %v2319, %v2319
    %2450 = vmatpush.bf16.msra.mxu0 %v911
    %2451 = vmatpush.bf16.msra.mxu0 %v908
    %2452 = vmatpush.bf16.msra.mxu0 %v905
    %2453 = vmatpush.bf16.msra.mxu0 %v902
    %2454 = vmatpush.bf16.msra.mxu0 %v899
    %2455 = vmatpush.bf16.msra.mxu0 %v896
    %2456 = vmatpush.bf16.msra.mxu0 %v893
    %2457 = vmatpush.bf16.msra.mxu0 %v890
    %2458 = vmatmul.bf16.gmra.mxu0 %v2449
    %v2459 = vpop.f32.mrf.mxu0
    %v2460 = vadd.f32 %v804, %v2459
    %v2461 = vpop.f32.mrf.mxu0
    %2462 = vdwg.mxu0
    %2463 = vmatpush.bf16.msra.mxu0 %v912
    %2464 = vmatpush.bf16.msra.mxu0 %v909
    %2465 = vmatpush.bf16.msra.mxu0 %v906
    %2466 = vmatpush.bf16.msra.mxu0 %v903
    %2467 = vmatpush.bf16.msra.mxu0 %v900
    %2468 = vmatpush.bf16.msra.mxu0 %v897
    %2469 = vmatpush.bf16.msra.mxu0 %v894
    %2470 = vmatpush.bf16.msra.mxu0 %v891
    %2471 = vmatmul.bf16.gmra.mxu0 %v2449
    %v2472 = vpop.f32.mrf.mxu0
    %v2473 = vadd.f32 %v805, %v2472
    %v2474 = vpop.f32.mrf.mxu0
    %2475 = vdwg.mxu0
    %2476 = vmatpush.bf16.msra.mxu0 %v913
    %2477 = vmatpush.bf16.msra.mxu0 %v910
    %2478 = vmatpush.bf16.msra.mxu0 %v907
    %2479 = vmatpush.bf16.msra.mxu0 %v904
    %2480 = vmatpush.bf16.msra.mxu0 %v901
    %2481 = vmatpush.bf16.msra.mxu0 %v898
    %2482 = vmatpush.bf16.msra.mxu0 %v895
    %2483 = vmatpush.bf16.msra.mxu0 %v892
    %2484 = vmatmul.bf16.gmra.mxu0 %v2449
    %v2485 = vpop.f32.mrf.mxu0
    %v2486 = vadd.f32 %v806, %v2485
    %v2487 = vpop.f32.mrf.mxu0
    %2488 = vdwg.mxu0
    %v2489 = vadd.f32 %v2420, %v2460
    %v2490 = vxor.u32 %v2489, 2147483648
    %v2491 = vmul.f32 %v2490, 1.442695
    %v2492 = vpow.pop %v2491
    %v2493 = vadd.f32 %v2492, 1.0
    %v2494 = vrcp.pop %v2493
    %v2495 = vmul.f32 %v2493, %v2494
    %v2496 = vsub.f32 1.0, %v2495
    %v2497 = vmul.f32 %v2494, %v2496
    %v2498 = vadd.f32 %v2494, %v2497
    %vm2499 = vweird.f32 %v2493
    %vm2500 = vweird.f32 %v2494
    %vm2501 = vmor %vm2499, %vm2500
    %v2502 = vsel %vm2501, %v2494, %v2498
    %v2503 = vand.u32 2147483647, %v2493
    %vm2504 = vcmp.eq.f32.partialorder %v2503, 8.507059e+37
    %v2505 = vand.u32 %v2493, 2147483648
    %v2506 = vor.u32 1.1754944e-38, %v2505
    %v2507 = vsel %vm2504, %v2506, %v2502
    %v2508 = vmul.f32 1.0, %v2507
    %v2509 = vadd.f32 %v2433, %v2473
    %v2510 = vxor.u32 %v2509, 2147483648
    %v2511 = vmul.f32 %v2510, 1.442695
    %v2512 = vpow.pop %v2511
    %v2513 = vadd.f32 %v2512, 1.0
    %v2514 = vrcp.pop %v2513
    %v2515 = vmul.f32 %v2513, %v2514
    %v2516 = vsub.f32 1.0, %v2515
    %v2517 = vmul.f32 %v2514, %v2516
    %v2518 = vadd.f32 %v2514, %v2517
    %vm2519 = vweird.f32 %v2513
    %vm2520 = vweird.f32 %v2514
    %vm2521 = vmor %vm2519, %vm2520
    %v2522 = vsel %vm2521, %v2514, %v2518
    %v2523 = vand.u32 2147483647, %v2513
    %vm2524 = vcmp.eq.f32.partialorder %v2523, 8.507059e+37
    %v2525 = vand.u32 %v2513, 2147483648
    %v2526 = vor.u32 1.1754944e-38, %v2525
    %v2527 = vsel %vm2524, %v2526, %v2522
    %v2528 = vmul.f32 1.0, %v2527
    %v2529 = vmul.f32 %v2508, %v2486
    %v2530 = vadd.f32 %v2446, %v2529
    %v2531 = vtanh.pop %v2530
    %v2532 = vsub.f32 1.0, %v2528
    %v2533 = vmul.f32 %v2532, %v2531
    %v2534 = vmul.f32 %v2528, %v2319
    %v2535 = vadd.f32 %v2533, %v2534
    %v2536 = vmax.f32 %v2535, 0.0
    %v2537 = vpack.c.bf16 %v2536, %v2536
    %v2538 = vld [vmem:[%s9] sm:$0xf]
    %v2539 = vld [vmem:[%s9 + $0x4] sm:$0xf]
    %v2540 = vld [vmem:[%s9 + $0x8] sm:$0xf]
    %v2541 = vld [vmem:[%s9 + $0xc] sm:$0xf]
    %v2542 = vld [vmem:[%s9 + $0x10] sm:$0xf]
    %v2543 = vld [vmem:[%s9 + $0x14] sm:$0xf]
    %v2544 = vld [vmem:[%s9 + $0x18] sm:$0xf]
    %v2545 = vld [vmem:[%s9 + $0x1c] sm:$0xf]
    %v2546 = vld [vmem:[%s9 + $0x20] sm:$0xf]
    %v2547 = vld [vmem:[%s9 + $0x24] sm:$0xf]
    %v2548 = vld [vmem:[%s9 + $0x28] sm:$0xf]
    %v2549 = vld [vmem:[%s9 + $0x2c] sm:$0xf]
    %v2550 = vld [vmem:[%s9 + $0x30] sm:$0xf]
    %v2551 = vld [vmem:[%s9 + $0x34] sm:$0xf]
    %v2552 = vld [vmem:[%s9 + $0x38] sm:$0xf]
    %v2553 = vld [vmem:[%s9 + $0x3c] sm:$0xf]
    %v2554 = vld [vmem:[%s10] sm:$0x1]
    %v2556 = vperm.slane %v2554, 0
    %v2574 = vunpack.c.l.b16 %v2538
    %v2575 = vunpack.c.l.b16 %v2539
    %v2576 = vunpack.c.l.b16 %v2540
    %v2577 = vunpack.c.l.b16 %v2541
    %v2578 = vunpack.c.l.b16 %v2542
    %v2579 = vunpack.c.l.b16 %v2543
    %v2580 = vunpack.c.l.b16 %v2544
    %v2581 = vunpack.c.l.b16 %v2545
    %v2582 = vunpack.c.l.b16 %v2546
    %v2583 = vunpack.c.l.b16 %v2547
    %v2584 = vunpack.c.l.b16 %v2548
    %v2585 = vunpack.c.l.b16 %v2549
    %v2586 = vunpack.c.l.b16 %v2550
    %v2587 = vunpack.c.l.b16 %v2551
    %v2588 = vunpack.c.l.b16 %v2552
    %v2589 = vunpack.c.l.b16 %v2553
    %v2590 = vpack.c.b16 %v2575, %v2574
    %v2591 = vpack.c.b16 %v2577, %v2576
    %v2592 = vpack.c.b16 %v2579, %v2578
    %v2593 = vpack.c.b16 %v2581, %v2580
    %v2594 = vpack.c.b16 %v2583, %v2582
    %v2595 = vpack.c.b16 %v2585, %v2584
    %v2596 = vpack.c.b16 %v2587, %v2586
    %v2597 = vpack.c.b16 %v2589, %v2588
    %2606 = vmatpush.bf16.msra.mxu0 %v2597
    %2607 = vmatpush.bf16.msra.mxu0 %v2596
    %2608 = vmatpush.bf16.msra.mxu0 %v2595
    %2609 = vmatpush.bf16.msra.mxu0 %v2594
    %2610 = vmatpush.bf16.msra.mxu0 %v2593
    %2611 = vmatpush.bf16.msra.mxu0 %v2592
    %2612 = vmatpush.bf16.msra.mxu0 %v2591
    %2613 = vmatpush.bf16.msra.mxu0 %v2590
    %2614 = vmatmul.bf16.gmra.mxu0 %v2537
    %v2615 = vpop.f32.mrf.mxu0
    %v2616 = vadd.f32 %v2556, %v2615
    %v2617 = vpop.f32.mrf.mxu0
    %2618 = vdwg.mxu0
    %2619 = vst [vmem:[#allocation15] sm:$0xff] %v2616
    // Predicated region
    $region74: #{tpu_custom_call.1} parent=1 // pred_check
      _
    $region75: #{tpu_custom_call.1} parent=1 // pred_check_branch
      %2621 = sbr.rel (0) target = $region77
    $region76: #{tpu_custom_call.1} parent=1 // pred_region
      %2623 = vsyncadd [#allocation5], 0
      %s2625 = sshll.u32 [#allocation15], 4
      %s2626 = int_to_ptr.vmem [resolvable:$true] %s2625
      %s2627 = sshll.u32 %s11, 4
      %s2628 = int_to_ptr.hbm [resolvable:$true] %s2627
      %2630 = dma.vmem_to_hbm [thread:$0]  %s2626, 128, %s2628, [#allocation5]
    $region77: #{tpu_custom_call.1} parent=1 // pred_fallthru
      _
    // Predicated region
    $region78: #{tpu_custom_call.1} parent=1 // pred_check
      _
    $region79: #{tpu_custom_call.1} parent=1 // pred_check_branch
      %2632 = sbr.rel (0) target = $region81
    $region80: #{tpu_custom_call.1} parent=1 // pred_region
      %2634 = dma.done [#allocation5], 128
    $region81: #{tpu_custom_call.1} parent=1 // pred_fallthru
      _
    %2635 = vsyncpa [#allocation4], 1
    %2636 = vsyncpa [#allocation7], 1
    %2637 = vsyncpa [#allocation10], 1
    %2638 = vsyncpa [#allocation13], 1
    %2639 = vsyncpa [#allocation5], 1

</llo_original>
